<compile_context>
chip_gen: v5e
topology: v5e:2x2
jax: 0.10.0
libtpu: 0.0.40
codegen_flags: <defaults>
</compile_context>

<pallas_src>
import numpy as np
import jax
import jax.numpy as jnp
from jax.experimental import pallas as pl
from jax.experimental.pallas import tpu as pltpu


# Flattened spatial sizes of the three stages (24x24 -> 12x12 -> 6x6), lane-padded.
_HWP = {24: 640, 12: 256, 6: 128}

_ARG_ORDER = (
    "m24", "m12", "m6", "sel1", "sel2", "hsel",
    "wi", "sci", "bi",
    "w1", "sc1", "b1",
    "w2", "sc2", "b2",
    "wa1", "sca1", "ba1",
    "w3", "sc3", "b3",
    "w4", "sc4", "b4",
    "wa2", "sca2", "ba2",
    "w5", "sc5", "b5",
    "w6", "sc6", "b6",
    "wa3",
)


# ----------------------------------------------------------------------------
# In-kernel building blocks (operate on values; traced inline into the kernel)
# ----------------------------------------------------------------------------

def _conv3x3_relu_bn(x, w_ref, scale_ref, bias_ref, mask_ref, row_w):
    """3x3 'same' conv (zero pad) + ReLU + folded-BN affine.

    x:        (Cin, HWp) f32, spatial flattened row-major in the lane dim.
    w_ref:    (Cout, 9*Cin) bf16, K index = (dy*3 + dx)*Cin + ci.
    mask_ref: (9, HWp) f32 validity masks (fold the conv zero padding + lane pad).
    """
    hwp = x.shape[1]
    mask = mask_ref[...]
    taps = []
    for dy in range(3):
        for dx in range(3):
            t = dy * 3 + dx
            s = (dy - 1) * row_w + (dx - 1)          # flat offset of this tap
            shifted = x if s == 0 else pltpu.roll(x, shift=(-s) % hwp, axis=1)
            taps.append(shifted * mask[t:t + 1, :])  # zero out invalid / wrapped lanes
    patch = jnp.concatenate(taps, axis=0).astype(jnp.bfloat16)   # (9*Cin, HWp)
    acc = jnp.dot(w_ref[...], patch, preferred_element_type=jnp.float32)
    acc = jnp.maximum(acc, 0.0)                      # ReLU before BN, as in NetS6
    return acc * scale_ref[...] + bias_ref[...]      # folded BatchNorm (f32)


def _maxpool2x2_at_anchors(x, row_w):
    """Max over each 2x2 window, left at the window's top-left (anchor) lane."""
    hwp = x.shape[1]
    m = jnp.maximum(x, pltpu.roll(x, shift=hwp - 1, axis=1))           # cols x, x+1
    return jnp.maximum(m, pltpu.roll(m, shift=hwp - row_w, axis=1))    # rows y, y+1


def _pool_antman_bn(x, w_ref, scale_ref, bias_ref, sel_ref, row_w):
    """maxpool(2,2) -> 1x1 conv -> folded-BN affine (an 'antman' block)."""
    m = _maxpool2x2_at_anchors(x, row_w).astype(jnp.bfloat16)          # (Cin, HWp)
    t = jnp.dot(w_ref[...], m, preferred_element_type=jnp.float32)     # 1x1 conv
    pooled = jnp.dot(t, sel_ref[...],                                  # stride-2 select
                     preferred_element_type=jnp.float32)               # (Cout, HWq_p)
    return pooled * scale_ref[...] + bias_ref[...]


def _pool_antman_head(x, w_ref, head_sel_ref, row_w):
    """maxpool(2,2) -> 1x1 conv -> global 3x3 avg pool -> log_softmax, all fused.

    The average over the 3x3 pooled positions commutes with the (linear) 1x1 conv,
    so it is folded into a (1, HWp) selection row applied before the conv.
    """
    m = _maxpool2x2_at_anchors(x, row_w)                               # (Cin, HWp) f32
    v = jax.lax.dot_general(head_sel_ref[...], m,
                            (((1,), (1,)), ((), ())),
                            preferred_element_type=jnp.float32)        # (1, Cin)
    logits = jnp.dot(v, w_ref[...], preferred_element_type=jnp.float32)  # (1, 10)
    z = logits - jnp.max(logits, axis=1, keepdims=True)
    return z - jnp.log(jnp.sum(jnp.exp(z), axis=1, keepdims=True))     # log_softmax


# ----------------------------------------------------------------------------
# The fused kernel (one grid step == one sample of the batch)
# ----------------------------------------------------------------------------

def _nets6_kernel(x_ref,
                  m24, m12, m6, sel1, sel2, hsel,
                  wi, sci, bi,
                  w1, sc1, b1,
                  w2, sc2, b2,
                  wa1, sca1, ba1,
                  w3, sc3, b3,
                  w4, sc4, b4,
                  wa2, sca2, ba2,
                  w5, sc5, b5,
                  w6, sc6, b6,
                  wa3,
                  o_ref):
    x = x_ref[...]                                                  # (8, 640) f32

    # stage 1: 24x24
    x = _conv3x3_relu_bn(x, wi, sci, bi, m24, 24)
    x = _conv3x3_relu_bn(x, w1, sc1, b1, m24, 24)
    x = _conv3x3_relu_bn(x, w2, sc2, b2, m24, 24)
    x = _pool_antman_bn(x, wa1, sca1, ba1, sel1, 24)                # -> (8, 256)
    # TODO(synk): F.dropout(x, 0.1) (training-mode, stochastic) -> identity here.

    # stage 2: 12x12
    x = _conv3x3_relu_bn(x, w3, sc3, b3, m12, 12)
    x = _conv3x3_relu_bn(x, w4, sc4, b4, m12, 12)
    x = _pool_antman_bn(x, wa2, sca2, ba2, sel2, 12)                # -> (8, 128)
    # TODO(synk): second F.dropout(x, 0.1) -> identity here.

    # stage 3: 6x6 + fused head
    x = _conv3x3_relu_bn(x, w5, sc5, b5, m6, 6)
    x = _conv3x3_relu_bn(x, w6, sc6, b6, m6, 6)
    o_ref[...] = _pool_antman_head(x, wa3, hsel, 6)                 # (1, 10)


# ----------------------------------------------------------------------------
# Constant tables (masks / selection matrices), weight packing, init
# ----------------------------------------------------------------------------

def _conv_masks(h, w, hwp):
    """(9, hwp) f32: mask[t, p]=1 iff output position p has a valid tap t source."""
    m = np.zeros((9, hwp), np.float32)
    ys, xs = np.divmod(np.arange(h * w), w)
    for dy in range(3):
        for dx in range(3):
            ok = ((ys + dy - 1 >= 0) & (ys + dy - 1 < h) &
                  (xs + dx - 1 >= 0) & (xs + dx - 1 < w))
            m[dy * 3 + dx, :h * w] = ok.astype(np.float32)
    return m


def _pool_select(h, w, hwp, hwq_p):
    """(hwp, hwq_p) 0/1 matrix mapping 2x2-window anchors to the pooled layout."""
    hh, wh = h // 2, w // 2
    s = np.zeros((hwp, hwq_p), np.float32)
    for q in range(hh * wh):
        yq, xq = divmod(q, wh)
        s[(2 * yq) * w + 2 * xq, q] = 1.0
    return s


def _head_select(h, w, hwp):
    """(1, hwp): uniform average over the 3x3 pooled anchors (avg_pool2d(3) folded)."""
    hh, wh = h // 2, w // 2
    s = np.zeros((1, hwp), np.float32)
    for q in range(hh * wh):
        yq, xq = divmod(q, wh)
        s[0, (2 * yq) * w + 2 * xq] = 1.0 / (hh * wh)
    return s


def _pack_conv3x3(w_oihw, cin_pad=None):
    """(Cout, Cin, 3, 3) -> (Cout, 9*Cin_pad) bf16 with K index (dy*3+dx)*Cin_pad+ci."""
    cout, cin = w_oihw.shape[:2]
    cin_pad = cin if cin_pad is None else cin_pad
    w = jnp.transpose(w_oihw, (0, 2, 3, 1))                  # (Cout, 3, 3, Cin)
    if cin_pad > cin:
        w = jnp.pad(w, ((0, 0), (0, 0), (0, 0), (0, cin_pad - cin)))
    return w.reshape(cout, 9 * cin_pad).astype(jnp.bfloat16)


def _bn_fold(key, c, eps=1e-5):
    k1, k2, k3, k4 = jax.random.split(key, 4)
    gamma = 1.0 + 0.1 * jax.random.normal(k1, (c,), jnp.float32)
    beta = 0.1 * jax.random.normal(k2, (c,), jnp.float32)
    mean = 0.1 * jax.random.normal(k3, (c,), jnp.float32)
    var = 1.0 + 0.1 * jax.random.uniform(k4, (c,), jnp.float32)
    scale = gamma / jnp.sqrt(var + eps)
    bias = beta - mean * scale
    return scale.reshape(c, 1), bias.reshape(c, 1)


def _conv_w(key, cout, cin, k):
    fan_in = cin * k * k
    return jax.random.normal(key, (cout, cin, k, k), jnp.float32) / np.sqrt(fan_in)


def _conv1x1_w(key, cout, cin):
    return jax.random.normal(key, (cout, cin), jnp.float32) / np.sqrt(cin)


def init_params(key, n=8):
    assert n % 8 == 0, "channel counts are kept sublane-aligned"
    ks = jax.random.split(key, 19)
    p = {}
    # conv stack (logical PyTorch OIHW weights, packed for the kernel)
    p["wi"] = _pack_conv3x3(_conv_w(ks[0], n, 1, 3), cin_pad=8)
    p["sci"], p["bi"] = _bn_fold(ks[1], n)
    p["w1"] = _pack_conv3x3(_conv_w(ks[2], 2 * n, n, 3))
    p["sc1"], p["b1"] = _bn_fold(ks[3], 2 * n)
    p["w2"] = _pack_conv3x3(_conv_w(ks[4], 4 * n, 2 * n, 3))
    p["sc2"], p["b2"] = _bn_fold(ks[5], 4 * n)
    p["wa1"] = _conv1x1_w(ks[6], n, 4 * n).astype(jnp.bfloat16)
    p["sca1"], p["ba1"] = _bn_fold(ks[7], n)
    p["w3"] = _pack_conv3x3(_conv_w(ks[8], 2 * n, n, 3))
    p["sc3"], p["b3"] = _bn_fold(ks[9], 2 * n)
    p["w4"] = _pack_conv3x3(_conv_w(ks[10], 4 * n, 2 * n, 3))
    p["sc4"], p["b4"] = _bn_fold(ks[11], 4 * n)
    p["wa2"] = _conv1x1_w(ks[12], n, 4 * n).astype(jnp.bfloat16)
    p["sca2"], p["ba2"] = _bn_fold(ks[13], n)
    p["w5"] = _pack_conv3x3(_conv_w(ks[14], 2 * n, n, 3))
    p["sc5"], p["b5"] = _bn_fold(ks[15], 2 * n)
    p["w6"] = _pack_conv3x3(_conv_w(ks[16], 4 * n, 2 * n, 3))
    p["sc6"], p["b6"] = _bn_fold(ks[17], 4 * n)
    # final 1x1 conv, stored transposed (Cin, 10) for the fused head matmul (f32)
    p["wa3"] = jnp.transpose(_conv1x1_w(ks[18], 10, 4 * n)).astype(jnp.float32)

    # constant tables: conv boundary masks, pool selection matrices, head average
    p["m24"] = jnp.asarray(_conv_masks(24, 24, _HWP[24]))
    p["m12"] = jnp.asarray(_conv_masks(12, 12, _HWP[12]))
    p["m6"] = jnp.asarray(_conv_masks(6, 6, _HWP[6]))
    p["sel1"] = jnp.asarray(_pool_select(24, 24, _HWP[24], _HWP[12]))
    p["sel2"] = jnp.asarray(_pool_select(12, 12, _HWP[12], _HWP[6]))
    p["hsel"] = jnp.asarray(_head_select(6, 6, _HWP[6]))
    return p


# ----------------------------------------------------------------------------
# Forward (single fused pallas_call, batch on a "parallel" grid axis)
# ----------------------------------------------------------------------------

@jax.jit
def nets6_forward(x_nchw, params):
    n_batch, c, h, w = x_nchw.shape
    assert (c, h, w) == (1, 24, 24), "NetS6 head requires 1x24x24 inputs"
    hwp = _HWP[24]

    # NCHW flattened IS the kernel's channel-major layout: (N, C, H*W), then pad the
    # channel dim to a sublane multiple and the spatial dim to a lane multiple.
    x = x_nchw.astype(jnp.float32).reshape(n_batch, c, h * w)
    x = jnp.pad(x, ((0, 0), (0, 8 - c), (0, hwp - h * w)))

    consts = [params[k] for k in _ARG_ORDER]
    in_specs = [pl.BlockSpec((None, 8, hwp), lambda i: (i, 0, 0))]
    in_specs += [pl.BlockSpec(a.shape, lambda i: (0, 0)) for a in consts]

    out = pl.pallas_call(
        _nets6_kernel,
        out_shape=jax.ShapeDtypeStruct((n_batch, 1, 10), jnp.float32),
        grid=(n_batch,),
        in_specs=in_specs,
        out_specs=pl.BlockSpec((None, 1, 10), lambda i: (i, 0, 0)),
        compiler_params=pltpu.CompilerParams(
            dimension_semantics=("parallel",)),
    )(x, *consts)
    return out.reshape(n_batch, 10)


# ----------------------------------------------------------------------------
# Main
# ----------------------------------------------------------------------------

if __name__ == "__main__":
    key = jax.random.PRNGKey(0)
    k_param, k_x = jax.random.split(key)

    params = init_params(k_param, n=8)

    # Architecture requires spatial 24 -> 12 -> 6 -> 3 -> 1:  (2, 1, 24, 24) NCHW.
    x = jax.random.normal(k_x, (2, 1, 24, 24), jnp.float32)

    out = jax.block_until_ready(nets6_forward(x, params))

    assert out.shape == (2, 10), out.shape
    assert bool(jnp.all(jnp.isfinite(out)))
    # log_softmax rows must logsumexp to ~0.
    assert bool(jnp.all(jnp.abs(jax.scipy.special.logsumexp(out, axis=-1)) < 1e-4))

    print("KERNEL_OK")
</pallas_src>

<mosaic_0001>
module attributes {stable_mosaic.version = 11 : i64} {
  func.func @_nets6_kernel(%arg0: i32, %arg1: memref<1x8x640xf32, #tpu.memory_space<vmem>>, %arg2: memref<9x640xf32, #tpu.memory_space<vmem>>, %arg3: memref<9x256xf32, #tpu.memory_space<vmem>>, %arg4: memref<9x128xf32, #tpu.memory_space<vmem>>, %arg5: memref<640x256xf32, #tpu.memory_space<vmem>>, %arg6: memref<256x128xf32, #tpu.memory_space<vmem>>, %arg7: memref<1x128xf32, #tpu.memory_space<vmem>>, %arg8: memref<8x72xbf16, #tpu.memory_space<vmem>>, %arg9: memref<8x1xf32, #tpu.memory_space<vmem>>, %arg10: memref<8x1xf32, #tpu.memory_space<vmem>>, %arg11: memref<16x72xbf16, #tpu.memory_space<vmem>>, %arg12: memref<16x1xf32, #tpu.memory_space<vmem>>, %arg13: memref<16x1xf32, #tpu.memory_space<vmem>>, %arg14: memref<32x144xbf16, #tpu.memory_space<vmem>>, %arg15: memref<32x1xf32, #tpu.memory_space<vmem>>, %arg16: memref<32x1xf32, #tpu.memory_space<vmem>>, %arg17: memref<8x32xbf16, #tpu.memory_space<vmem>>, %arg18: memref<8x1xf32, #tpu.memory_space<vmem>>, %arg19: memref<8x1xf32, #tpu.memory_space<vmem>>, %arg20: memref<16x72xbf16, #tpu.memory_space<vmem>>, %arg21: memref<16x1xf32, #tpu.memory_space<vmem>>, %arg22: memref<16x1xf32, #tpu.memory_space<vmem>>, %arg23: memref<32x144xbf16, #tpu.memory_space<vmem>>, %arg24: memref<32x1xf32, #tpu.memory_space<vmem>>, %arg25: memref<32x1xf32, #tpu.memory_space<vmem>>, %arg26: memref<8x32xbf16, #tpu.memory_space<vmem>>, %arg27: memref<8x1xf32, #tpu.memory_space<vmem>>, %arg28: memref<8x1xf32, #tpu.memory_space<vmem>>, %arg29: memref<16x72xbf16, #tpu.memory_space<vmem>>, %arg30: memref<16x1xf32, #tpu.memory_space<vmem>>, %arg31: memref<16x1xf32, #tpu.memory_space<vmem>>, %arg32: memref<32x144xbf16, #tpu.memory_space<vmem>>, %arg33: memref<32x1xf32, #tpu.memory_space<vmem>>, %arg34: memref<32x1xf32, #tpu.memory_space<vmem>>, %arg35: memref<32x10xf32, #tpu.memory_space<vmem>>, %arg36: memref<1x1x10xf32, #tpu.memory_space<vmem>>) attributes {dimension_semantics = [#tpu.dimension_semantics<parallel>], iteration_bounds = array<i64: 2>, scalar_prefetch = 0 : i64, scratch_operands = 0 : i64, tpu.core_type = #tpu.core_type<tc>, window_params = [{transform_indices = @transform_0, window_bounds = array<i64: 1, 8, 640>}, {pipeline_mode = #tpu.pipeline_mode<synchronous>, transform_indices = @transform_1, window_bounds = array<i64: 9, 640>}, {pipeline_mode = #tpu.pipeline_mode<synchronous>, transform_indices = @transform_2, window_bounds = array<i64: 9, 256>}, {pipeline_mode = #tpu.pipeline_mode<synchronous>, transform_indices = @transform_3, window_bounds = array<i64: 9, 128>}, {pipeline_mode = #tpu.pipeline_mode<synchronous>, transform_indices = @transform_4, window_bounds = array<i64: 640, 256>}, {pipeline_mode = #tpu.pipeline_mode<synchronous>, transform_indices = @transform_5, window_bounds = array<i64: 256, 128>}, {pipeline_mode = #tpu.pipeline_mode<synchronous>, transform_indices = @transform_6, window_bounds = array<i64: 1, 128>}, {pipeline_mode = #tpu.pipeline_mode<synchronous>, transform_indices = @transform_7, window_bounds = array<i64: 8, 72>}, {pipeline_mode = #tpu.pipeline_mode<synchronous>, transform_indices = @transform_8, window_bounds = array<i64: 8, 1>}, {pipeline_mode = #tpu.pipeline_mode<synchronous>, transform_indices = @transform_9, window_bounds = array<i64: 8, 1>}, {pipeline_mode = #tpu.pipeline_mode<synchronous>, transform_indices = @transform_10, window_bounds = array<i64: 16, 72>}, {pipeline_mode = #tpu.pipeline_mode<synchronous>, transform_indices = @transform_11, window_bounds = array<i64: 16, 1>}, {pipeline_mode = #tpu.pipeline_mode<synchronous>, transform_indices = @transform_12, window_bounds = array<i64: 16, 1>}, {pipeline_mode = #tpu.pipeline_mode<synchronous>, transform_indices = @transform_13, window_bounds = array<i64: 32, 144>}, {pipeline_mode = #tpu.pipeline_mode<synchronous>, transform_indices = @transform_14, window_bounds = array<i64: 32, 1>}, {pipeline_mode = #tpu.pipeline_mode<synchronous>, transform_indices = @transform_15, window_bounds = array<i64: 32, 1>}, {pipeline_mode = #tpu.pipeline_mode<synchronous>, transform_indices = @transform_16, window_bounds = array<i64: 8, 32>}, {pipeline_mode = #tpu.pipeline_mode<synchronous>, transform_indices = @transform_17, window_bounds = array<i64: 8, 1>}, {pipeline_mode = #tpu.pipeline_mode<synchronous>, transform_indices = @transform_18, window_bounds = array<i64: 8, 1>}, {pipeline_mode = #tpu.pipeline_mode<synchronous>, transform_indices = @transform_19, window_bounds = array<i64: 16, 72>}, {pipeline_mode = #tpu.pipeline_mode<synchronous>, transform_indices = @transform_20, window_bounds = array<i64: 16, 1>}, {pipeline_mode = #tpu.pipeline_mode<synchronous>, transform_indices = @transform_21, window_bounds = array<i64: 16, 1>}, {pipeline_mode = #tpu.pipeline_mode<synchronous>, transform_indices = @transform_22, window_bounds = array<i64: 32, 144>}, {pipeline_mode = #tpu.pipeline_mode<synchronous>, transform_indices = @transform_23, window_bounds = array<i64: 32, 1>}, {pipeline_mode = #tpu.pipeline_mode<synchronous>, transform_indices = @transform_24, window_bounds = array<i64: 32, 1>}, {pipeline_mode = #tpu.pipeline_mode<synchronous>, transform_indices = @transform_25, window_bounds = array<i64: 8, 32>}, {pipeline_mode = #tpu.pipeline_mode<synchronous>, transform_indices = @transform_26, window_bounds = array<i64: 8, 1>}, {pipeline_mode = #tpu.pipeline_mode<synchronous>, transform_indices = @transform_27, window_bounds = array<i64: 8, 1>}, {pipeline_mode = #tpu.pipeline_mode<synchronous>, transform_indices = @transform_28, window_bounds = array<i64: 16, 72>}, {pipeline_mode = #tpu.pipeline_mode<synchronous>, transform_indices = @transform_29, window_bounds = array<i64: 16, 1>}, {pipeline_mode = #tpu.pipeline_mode<synchronous>, transform_indices = @transform_30, window_bounds = array<i64: 16, 1>}, {pipeline_mode = #tpu.pipeline_mode<synchronous>, transform_indices = @transform_31, window_bounds = array<i64: 32, 144>}, {pipeline_mode = #tpu.pipeline_mode<synchronous>, transform_indices = @transform_32, window_bounds = array<i64: 32, 1>}, {pipeline_mode = #tpu.pipeline_mode<synchronous>, transform_indices = @transform_33, window_bounds = array<i64: 32, 1>}, {pipeline_mode = #tpu.pipeline_mode<synchronous>, transform_indices = @transform_34, window_bounds = array<i64: 32, 10>}, {transform_indices = @transform_35, window_bounds = array<i64: 1, 1, 10>}]} {
    %c0 = arith.constant 0 : index
    %c0_0 = arith.constant 0 : index
    %c0_1 = arith.constant 0 : index
    %0 = vector.load %arg1[%c0, %c0_0, %c0_1] : memref<1x8x640xf32, #tpu.memory_space<vmem>>, vector<1x8x640xf32>
    %1 = vector.shape_cast %0 : vector<1x8x640xf32> to vector<8x640xf32>
    %c0_2 = arith.constant 0 : index
    %c0_3 = arith.constant 0 : index
    %2 = vector.load %arg2[%c0_2, %c0_3] : memref<9x640xf32, #tpu.memory_space<vmem>>, vector<9x640xf32>
    %c25_i32 = arith.constant 25 : i32
    %3 = tpu.dynamic_rotate %1 by %c25_i32 dim 1 : vector<8x640xf32>, i32 -> vector<8x640xf32>
    %4 = vector.extract_strided_slice %2 {offsets = [0, 0], sizes = [1, 640], strides = [1, 1]} : vector<9x640xf32> to vector<1x640xf32>
    %5 = vector.broadcast %4 : vector<1x640xf32> to vector<8x640xf32>
    %6 = arith.mulf %3, %5 : vector<8x640xf32>
    %c24_i32 = arith.constant 24 : i32
    %7 = tpu.dynamic_rotate %1 by %c24_i32 dim 1 : vector<8x640xf32>, i32 -> vector<8x640xf32>
    %8 = vector.extract_strided_slice %2 {offsets = [1, 0], sizes = [1, 640], strides = [1, 1]} : vector<9x640xf32> to vector<1x640xf32>
    %9 = vector.broadcast %8 : vector<1x640xf32> to vector<8x640xf32>
    %10 = arith.mulf %7, %9 : vector<8x640xf32>
    %c23_i32 = arith.constant 23 : i32
    %11 = tpu.dynamic_rotate %1 by %c23_i32 dim 1 : vector<8x640xf32>, i32 -> vector<8x640xf32>
    %12 = vector.extract_strided_slice %2 {offsets = [2, 0], sizes = [1, 640], strides = [1, 1]} : vector<9x640xf32> to vector<1x640xf32>
    %13 = vector.broadcast %12 : vector<1x640xf32> to vector<8x640xf32>
    %14 = arith.mulf %11, %13 : vector<8x640xf32>
    %c1_i32 = arith.constant 1 : i32
    %15 = tpu.dynamic_rotate %1 by %c1_i32 dim 1 : vector<8x640xf32>, i32 -> vector<8x640xf32>
    %16 = vector.extract_strided_slice %2 {offsets = [3, 0], sizes = [1, 640], strides = [1, 1]} : vector<9x640xf32> to vector<1x640xf32>
    %17 = vector.broadcast %16 : vector<1x640xf32> to vector<8x640xf32>
    %18 = arith.mulf %15, %17 : vector<8x640xf32>
    %19 = vector.extract_strided_slice %2 {offsets = [4, 0], sizes = [1, 640], strides = [1, 1]} : vector<9x640xf32> to vector<1x640xf32>
    %20 = vector.broadcast %19 : vector<1x640xf32> to vector<8x640xf32>
    %21 = arith.mulf %1, %20 : vector<8x640xf32>
    %c639_i32 = arith.constant 639 : i32
    %22 = tpu.dynamic_rotate %1 by %c639_i32 dim 1 : vector<8x640xf32>, i32 -> vector<8x640xf32>
    %23 = vector.extract_strided_slice %2 {offsets = [5, 0], sizes = [1, 640], strides = [1, 1]} : vector<9x640xf32> to vector<1x640xf32>
    %24 = vector.broadcast %23 : vector<1x640xf32> to vector<8x640xf32>
    %25 = arith.mulf %22, %24 : vector<8x640xf32>
    %c617_i32 = arith.constant 617 : i32
    %26 = tpu.dynamic_rotate %1 by %c617_i32 dim 1 : vector<8x640xf32>, i32 -> vector<8x640xf32>
    %27 = vector.extract_strided_slice %2 {offsets = [6, 0], sizes = [1, 640], strides = [1, 1]} : vector<9x640xf32> to vector<1x640xf32>
    %28 = vector.broadcast %27 : vector<1x640xf32> to vector<8x640xf32>
    %29 = arith.mulf %26, %28 : vector<8x640xf32>
    %c616_i32 = arith.constant 616 : i32
    %30 = tpu.dynamic_rotate %1 by %c616_i32 dim 1 : vector<8x640xf32>, i32 -> vector<8x640xf32>
    %31 = vector.extract_strided_slice %2 {offsets = [7, 0], sizes = [1, 640], strides = [1, 1]} : vector<9x640xf32> to vector<1x640xf32>
    %32 = vector.broadcast %31 : vector<1x640xf32> to vector<8x640xf32>
    %33 = arith.mulf %30, %32 : vector<8x640xf32>
    %c615_i32 = arith.constant 615 : i32
    %34 = tpu.dynamic_rotate %1 by %c615_i32 dim 1 : vector<8x640xf32>, i32 -> vector<8x640xf32>
    %35 = vector.extract_strided_slice %2 {offsets = [8, 0], sizes = [1, 640], strides = [1, 1]} : vector<9x640xf32> to vector<1x640xf32>
    %36 = vector.broadcast %35 : vector<1x640xf32> to vector<8x640xf32>
    %37 = arith.mulf %34, %36 : vector<8x640xf32>
    %38 = tpu.concatenate %6, %10, %14, %18, %21, %25, %29, %33, %37 in 0 : vector<8x640xf32>, vector<8x640xf32>, vector<8x640xf32>, vector<8x640xf32>, vector<8x640xf32>, vector<8x640xf32>, vector<8x640xf32>, vector<8x640xf32>, vector<8x640xf32> -> vector<72x640xf32>
    %39 = arith.truncf %38 : vector<72x640xf32> to vector<72x640xbf16>
    %c0_4 = arith.constant 0 : index
    %c0_5 = arith.constant 0 : index
    %40 = vector.load %arg8[%c0_4, %c0_5] : memref<8x72xbf16, #tpu.memory_space<vmem>>, vector<8x72xbf16>
    %cst = arith.constant dense<0.000000e+00> : vector<8x640xf32>
    %41 = tpu.matmul %40, %39, %cst {dimension_numbers = #tpu.dot_dimension_numbers<[1], [0], [0], [1], [0, 0, 1, 1], [], []>} : vector<8x72xbf16>, vector<72x640xbf16>, vector<8x640xf32> -> vector<8x640xf32>
    %cst_6 = arith.constant 0.000000e+00 : f32
    %42 = vector.broadcast %cst_6 : f32 to vector<8x640xf32>
    %43 = arith.maximumf %41, %42 : vector<8x640xf32>
    %c0_7 = arith.constant 0 : index
    %c0_8 = arith.constant 0 : index
    %44 = vector.load %arg9[%c0_7, %c0_8] : memref<8x1xf32, #tpu.memory_space<vmem>>, vector<8x1xf32>
    %45 = vector.broadcast %44 : vector<8x1xf32> to vector<8x640xf32>
    %46 = arith.mulf %43, %45 : vector<8x640xf32>
    %c0_9 = arith.constant 0 : index
    %c0_10 = arith.constant 0 : index
    %47 = vector.load %arg10[%c0_9, %c0_10] : memref<8x1xf32, #tpu.memory_space<vmem>>, vector<8x1xf32>
    %48 = vector.broadcast %47 : vector<8x1xf32> to vector<8x640xf32>
    %49 = arith.addf %46, %48 : vector<8x640xf32>
    %c0_11 = arith.constant 0 : index
    %c0_12 = arith.constant 0 : index
    %50 = vector.load %arg2[%c0_11, %c0_12] : memref<9x640xf32, #tpu.memory_space<vmem>>, vector<9x640xf32>
    %c25_i32_13 = arith.constant 25 : i32
    %51 = tpu.dynamic_rotate %49 by %c25_i32_13 dim 1 : vector<8x640xf32>, i32 -> vector<8x640xf32>
    %52 = vector.extract_strided_slice %50 {offsets = [0, 0], sizes = [1, 640], strides = [1, 1]} : vector<9x640xf32> to vector<1x640xf32>
    %53 = vector.broadcast %52 : vector<1x640xf32> to vector<8x640xf32>
    %54 = arith.mulf %51, %53 : vector<8x640xf32>
    %c24_i32_14 = arith.constant 24 : i32
    %55 = tpu.dynamic_rotate %49 by %c24_i32_14 dim 1 : vector<8x640xf32>, i32 -> vector<8x640xf32>
    %56 = vector.extract_strided_slice %50 {offsets = [1, 0], sizes = [1, 640], strides = [1, 1]} : vector<9x640xf32> to vector<1x640xf32>
    %57 = vector.broadcast %56 : vector<1x640xf32> to vector<8x640xf32>
    %58 = arith.mulf %55, %57 : vector<8x640xf32>
    %c23_i32_15 = arith.constant 23 : i32
    %59 = tpu.dynamic_rotate %49 by %c23_i32_15 dim 1 : vector<8x640xf32>, i32 -> vector<8x640xf32>
    %60 = vector.extract_strided_slice %50 {offsets = [2, 0], sizes = [1, 640], strides = [1, 1]} : vector<9x640xf32> to vector<1x640xf32>
    %61 = vector.broadcast %60 : vector<1x640xf32> to vector<8x640xf32>
    %62 = arith.mulf %59, %61 : vector<8x640xf32>
    %c1_i32_16 = arith.constant 1 : i32
    %63 = tpu.dynamic_rotate %49 by %c1_i32_16 dim 1 : vector<8x640xf32>, i32 -> vector<8x640xf32>
    %64 = vector.extract_strided_slice %50 {offsets = [3, 0], sizes = [1, 640], strides = [1, 1]} : vector<9x640xf32> to vector<1x640xf32>
    %65 = vector.broadcast %64 : vector<1x640xf32> to vector<8x640xf32>
    %66 = arith.mulf %63, %65 : vector<8x640xf32>
    %67 = vector.extract_strided_slice %50 {offsets = [4, 0], sizes = [1, 640], strides = [1, 1]} : vector<9x640xf32> to vector<1x640xf32>
    %68 = vector.broadcast %67 : vector<1x640xf32> to vector<8x640xf32>
    %69 = arith.mulf %49, %68 : vector<8x640xf32>
    %c639_i32_17 = arith.constant 639 : i32
    %70 = tpu.dynamic_rotate %49 by %c639_i32_17 dim 1 : vector<8x640xf32>, i32 -> vector<8x640xf32>
    %71 = vector.extract_strided_slice %50 {offsets = [5, 0], sizes = [1, 640], strides = [1, 1]} : vector<9x640xf32> to vector<1x640xf32>
    %72 = vector.broadcast %71 : vector<1x640xf32> to vector<8x640xf32>
    %73 = arith.mulf %70, %72 : vector<8x640xf32>
    %c617_i32_18 = arith.constant 617 : i32
    %74 = tpu.dynamic_rotate %49 by %c617_i32_18 dim 1 : vector<8x640xf32>, i32 -> vector<8x640xf32>
    %75 = vector.extract_strided_slice %50 {offsets = [6, 0], sizes = [1, 640], strides = [1, 1]} : vector<9x640xf32> to vector<1x640xf32>
    %76 = vector.broadcast %75 : vector<1x640xf32> to vector<8x640xf32>
    %77 = arith.mulf %74, %76 : vector<8x640xf32>
    %c616_i32_19 = arith.constant 616 : i32
    %78 = tpu.dynamic_rotate %49 by %c616_i32_19 dim 1 : vector<8x640xf32>, i32 -> vector<8x640xf32>
    %79 = vector.extract_strided_slice %50 {offsets = [7, 0], sizes = [1, 640], strides = [1, 1]} : vector<9x640xf32> to vector<1x640xf32>
    %80 = vector.broadcast %79 : vector<1x640xf32> to vector<8x640xf32>
    %81 = arith.mulf %78, %80 : vector<8x640xf32>
    %c615_i32_20 = arith.constant 615 : i32
    %82 = tpu.dynamic_rotate %49 by %c615_i32_20 dim 1 : vector<8x640xf32>, i32 -> vector<8x640xf32>
    %83 = vector.extract_strided_slice %50 {offsets = [8, 0], sizes = [1, 640], strides = [1, 1]} : vector<9x640xf32> to vector<1x640xf32>
    %84 = vector.broadcast %83 : vector<1x640xf32> to vector<8x640xf32>
    %85 = arith.mulf %82, %84 : vector<8x640xf32>
    %86 = tpu.concatenate %54, %58, %62, %66, %69, %73, %77, %81, %85 in 0 : vector<8x640xf32>, vector<8x640xf32>, vector<8x640xf32>, vector<8x640xf32>, vector<8x640xf32>, vector<8x640xf32>, vector<8x640xf32>, vector<8x640xf32>, vector<8x640xf32> -> vector<72x640xf32>
    %87 = arith.truncf %86 : vector<72x640xf32> to vector<72x640xbf16>
    %c0_21 = arith.constant 0 : index
    %c0_22 = arith.constant 0 : index
    %88 = vector.load %arg11[%c0_21, %c0_22] : memref<16x72xbf16, #tpu.memory_space<vmem>>, vector<16x72xbf16>
    %cst_23 = arith.constant dense<0.000000e+00> : vector<16x640xf32>
    %89 = tpu.matmul %88, %87, %cst_23 {dimension_numbers = #tpu.dot_dimension_numbers<[1], [0], [0], [1], [0, 0, 1, 1], [], []>} : vector<16x72xbf16>, vector<72x640xbf16>, vector<16x640xf32> -> vector<16x640xf32>
    %cst_24 = arith.constant 0.000000e+00 : f32
    %90 = vector.broadcast %cst_24 : f32 to vector<16x640xf32>
    %91 = arith.maximumf %89, %90 : vector<16x640xf32>
    %c0_25 = arith.constant 0 : index
    %c0_26 = arith.constant 0 : index
    %92 = vector.load %arg12[%c0_25, %c0_26] : memref<16x1xf32, #tpu.memory_space<vmem>>, vector<16x1xf32>
    %93 = vector.broadcast %92 : vector<16x1xf32> to vector<16x640xf32>
    %94 = arith.mulf %91, %93 : vector<16x640xf32>
    %c0_27 = arith.constant 0 : index
    %c0_28 = arith.constant 0 : index
    %95 = vector.load %arg13[%c0_27, %c0_28] : memref<16x1xf32, #tpu.memory_space<vmem>>, vector<16x1xf32>
    %96 = vector.broadcast %95 : vector<16x1xf32> to vector<16x640xf32>
    %97 = arith.addf %94, %96 : vector<16x640xf32>
    %c0_29 = arith.constant 0 : index
    %c0_30 = arith.constant 0 : index
    %98 = vector.load %arg2[%c0_29, %c0_30] : memref<9x640xf32, #tpu.memory_space<vmem>>, vector<9x640xf32>
    %c25_i32_31 = arith.constant 25 : i32
    %99 = tpu.dynamic_rotate %97 by %c25_i32_31 dim 1 : vector<16x640xf32>, i32 -> vector<16x640xf32>
    %100 = vector.extract_strided_slice %98 {offsets = [0, 0], sizes = [1, 640], strides = [1, 1]} : vector<9x640xf32> to vector<1x640xf32>
    %101 = vector.broadcast %100 : vector<1x640xf32> to vector<16x640xf32>
    %102 = arith.mulf %99, %101 : vector<16x640xf32>
    %c24_i32_32 = arith.constant 24 : i32
    %103 = tpu.dynamic_rotate %97 by %c24_i32_32 dim 1 : vector<16x640xf32>, i32 -> vector<16x640xf32>
    %104 = vector.extract_strided_slice %98 {offsets = [1, 0], sizes = [1, 640], strides = [1, 1]} : vector<9x640xf32> to vector<1x640xf32>
    %105 = vector.broadcast %104 : vector<1x640xf32> to vector<16x640xf32>
    %106 = arith.mulf %103, %105 : vector<16x640xf32>
    %c23_i32_33 = arith.constant 23 : i32
    %107 = tpu.dynamic_rotate %97 by %c23_i32_33 dim 1 : vector<16x640xf32>, i32 -> vector<16x640xf32>
    %108 = vector.extract_strided_slice %98 {offsets = [2, 0], sizes = [1, 640], strides = [1, 1]} : vector<9x640xf32> to vector<1x640xf32>
    %109 = vector.broadcast %108 : vector<1x640xf32> to vector<16x640xf32>
    %110 = arith.mulf %107, %109 : vector<16x640xf32>
    %c1_i32_34 = arith.constant 1 : i32
    %111 = tpu.dynamic_rotate %97 by %c1_i32_34 dim 1 : vector<16x640xf32>, i32 -> vector<16x640xf32>
    %112 = vector.extract_strided_slice %98 {offsets = [3, 0], sizes = [1, 640], strides = [1, 1]} : vector<9x640xf32> to vector<1x640xf32>
    %113 = vector.broadcast %112 : vector<1x640xf32> to vector<16x640xf32>
    %114 = arith.mulf %111, %113 : vector<16x640xf32>
    %115 = vector.extract_strided_slice %98 {offsets = [4, 0], sizes = [1, 640], strides = [1, 1]} : vector<9x640xf32> to vector<1x640xf32>
    %116 = vector.broadcast %115 : vector<1x640xf32> to vector<16x640xf32>
    %117 = arith.mulf %97, %116 : vector<16x640xf32>
    %c639_i32_35 = arith.constant 639 : i32
    %118 = tpu.dynamic_rotate %97 by %c639_i32_35 dim 1 : vector<16x640xf32>, i32 -> vector<16x640xf32>
    %119 = vector.extract_strided_slice %98 {offsets = [5, 0], sizes = [1, 640], strides = [1, 1]} : vector<9x640xf32> to vector<1x640xf32>
    %120 = vector.broadcast %119 : vector<1x640xf32> to vector<16x640xf32>
    %121 = arith.mulf %118, %120 : vector<16x640xf32>
    %c617_i32_36 = arith.constant 617 : i32
    %122 = tpu.dynamic_rotate %97 by %c617_i32_36 dim 1 : vector<16x640xf32>, i32 -> vector<16x640xf32>
    %123 = vector.extract_strided_slice %98 {offsets = [6, 0], sizes = [1, 640], strides = [1, 1]} : vector<9x640xf32> to vector<1x640xf32>
    %124 = vector.broadcast %123 : vector<1x640xf32> to vector<16x640xf32>
    %125 = arith.mulf %122, %124 : vector<16x640xf32>
    %c616_i32_37 = arith.constant 616 : i32
    %126 = tpu.dynamic_rotate %97 by %c616_i32_37 dim 1 : vector<16x640xf32>, i32 -> vector<16x640xf32>
    %127 = vector.extract_strided_slice %98 {offsets = [7, 0], sizes = [1, 640], strides = [1, 1]} : vector<9x640xf32> to vector<1x640xf32>
    %128 = vector.broadcast %127 : vector<1x640xf32> to vector<16x640xf32>
    %129 = arith.mulf %126, %128 : vector<16x640xf32>
    %c615_i32_38 = arith.constant 615 : i32
    %130 = tpu.dynamic_rotate %97 by %c615_i32_38 dim 1 : vector<16x640xf32>, i32 -> vector<16x640xf32>
    %131 = vector.extract_strided_slice %98 {offsets = [8, 0], sizes = [1, 640], strides = [1, 1]} : vector<9x640xf32> to vector<1x640xf32>
    %132 = vector.broadcast %131 : vector<1x640xf32> to vector<16x640xf32>
    %133 = arith.mulf %130, %132 : vector<16x640xf32>
    %134 = tpu.concatenate %102, %106, %110, %114, %117, %121, %125, %129, %133 in 0 : vector<16x640xf32>, vector<16x640xf32>, vector<16x640xf32>, vector<16x640xf32>, vector<16x640xf32>, vector<16x640xf32>, vector<16x640xf32>, vector<16x640xf32>, vector<16x640xf32> -> vector<144x640xf32>
    %135 = arith.truncf %134 : vector<144x640xf32> to vector<144x640xbf16>
    %c0_39 = arith.constant 0 : index
    %c0_40 = arith.constant 0 : index
    %136 = vector.load %arg14[%c0_39, %c0_40] : memref<32x144xbf16, #tpu.memory_space<vmem>>, vector<32x144xbf16>
    %cst_41 = arith.constant dense<0.000000e+00> : vector<32x640xf32>
    %137 = tpu.matmul %136, %135, %cst_41 {dimension_numbers = #tpu.dot_dimension_numbers<[1], [0], [0], [1], [0, 0, 1, 1], [], []>} : vector<32x144xbf16>, vector<144x640xbf16>, vector<32x640xf32> -> vector<32x640xf32>
    %cst_42 = arith.constant 0.000000e+00 : f32
    %138 = vector.broadcast %cst_42 : f32 to vector<32x640xf32>
    %139 = arith.maximumf %137, %138 : vector<32x640xf32>
    %c0_43 = arith.constant 0 : index
    %c0_44 = arith.constant 0 : index
    %140 = vector.load %arg15[%c0_43, %c0_44] : memref<32x1xf32, #tpu.memory_space<vmem>>, vector<32x1xf32>
    %141 = vector.broadcast %140 : vector<32x1xf32> to vector<32x640xf32>
    %142 = arith.mulf %139, %141 : vector<32x640xf32>
    %c0_45 = arith.constant 0 : index
    %c0_46 = arith.constant 0 : index
    %143 = vector.load %arg16[%c0_45, %c0_46] : memref<32x1xf32, #tpu.memory_space<vmem>>, vector<32x1xf32>
    %144 = vector.broadcast %143 : vector<32x1xf32> to vector<32x640xf32>
    %145 = arith.addf %142, %144 : vector<32x640xf32>
    %c639_i32_47 = arith.constant 639 : i32
    %146 = tpu.dynamic_rotate %145 by %c639_i32_47 dim 1 : vector<32x640xf32>, i32 -> vector<32x640xf32>
    %147 = arith.maximumf %145, %146 : vector<32x640xf32>
    %c616_i32_48 = arith.constant 616 : i32
    %148 = tpu.dynamic_rotate %147 by %c616_i32_48 dim 1 : vector<32x640xf32>, i32 -> vector<32x640xf32>
    %149 = arith.maximumf %147, %148 : vector<32x640xf32>
    %150 = arith.truncf %149 : vector<32x640xf32> to vector<32x640xbf16>
    %c0_49 = arith.constant 0 : index
    %c0_50 = arith.constant 0 : index
    %151 = vector.load %arg17[%c0_49, %c0_50] : memref<8x32xbf16, #tpu.memory_space<vmem>>, vector<8x32xbf16>
    %cst_51 = arith.constant dense<0.000000e+00> : vector<8x640xf32>
    %152 = tpu.matmul %151, %150, %cst_51 {dimension_numbers = #tpu.dot_dimension_numbers<[1], [0], [0], [1], [0, 0, 1, 1], [], []>} : vector<8x32xbf16>, vector<32x640xbf16>, vector<8x640xf32> -> vector<8x640xf32>
    %c0_52 = arith.constant 0 : index
    %c0_53 = arith.constant 0 : index
    %153 = vector.load %arg5[%c0_52, %c0_53] : memref<640x256xf32, #tpu.memory_space<vmem>>, vector<640x256xf32>
    %cst_54 = arith.constant dense<0.000000e+00> : vector<8x256xf32>
    %154 = tpu.matmul %152, %153, %cst_54 {dimension_numbers = #tpu.dot_dimension_numbers<[1], [0], [0], [1], [0, 0, 1, 1], [], []>} : vector<8x640xf32>, vector<640x256xf32>, vector<8x256xf32> -> vector<8x256xf32>
    %c0_55 = arith.constant 0 : index
    %c0_56 = arith.constant 0 : index
    %155 = vector.load %arg18[%c0_55, %c0_56] : memref<8x1xf32, #tpu.memory_space<vmem>>, vector<8x1xf32>
    %156 = vector.broadcast %155 : vector<8x1xf32> to vector<8x256xf32>
    %157 = arith.mulf %154, %156 : vector<8x256xf32>
    %c0_57 = arith.constant 0 : index
    %c0_58 = arith.constant 0 : index
    %158 = vector.load %arg19[%c0_57, %c0_58] : memref<8x1xf32, #tpu.memory_space<vmem>>, vector<8x1xf32>
    %159 = vector.broadcast %158 : vector<8x1xf32> to vector<8x256xf32>
    %160 = arith.addf %157, %159 : vector<8x256xf32>
    %c0_59 = arith.constant 0 : index
    %c0_60 = arith.constant 0 : index
    %161 = vector.load %arg3[%c0_59, %c0_60] : memref<9x256xf32, #tpu.memory_space<vmem>>, vector<9x256xf32>
    %c13_i32 = arith.constant 13 : i32
    %162 = tpu.dynamic_rotate %160 by %c13_i32 dim 1 : vector<8x256xf32>, i32 -> vector<8x256xf32>
    %163 = vector.extract_strided_slice %161 {offsets = [0, 0], sizes = [1, 256], strides = [1, 1]} : vector<9x256xf32> to vector<1x256xf32>
    %164 = vector.broadcast %163 : vector<1x256xf32> to vector<8x256xf32>
    %165 = arith.mulf %162, %164 : vector<8x256xf32>
    %c12_i32 = arith.constant 12 : i32
    %166 = tpu.dynamic_rotate %160 by %c12_i32 dim 1 : vector<8x256xf32>, i32 -> vector<8x256xf32>
    %167 = vector.extract_strided_slice %161 {offsets = [1, 0], sizes = [1, 256], strides = [1, 1]} : vector<9x256xf32> to vector<1x256xf32>
    %168 = vector.broadcast %167 : vector<1x256xf32> to vector<8x256xf32>
    %169 = arith.mulf %166, %168 : vector<8x256xf32>
    %c11_i32 = arith.constant 11 : i32
    %170 = tpu.dynamic_rotate %160 by %c11_i32 dim 1 : vector<8x256xf32>, i32 -> vector<8x256xf32>
    %171 = vector.extract_strided_slice %161 {offsets = [2, 0], sizes = [1, 256], strides = [1, 1]} : vector<9x256xf32> to vector<1x256xf32>
    %172 = vector.broadcast %171 : vector<1x256xf32> to vector<8x256xf32>
    %173 = arith.mulf %170, %172 : vector<8x256xf32>
    %c1_i32_61 = arith.constant 1 : i32
    %174 = tpu.dynamic_rotate %160 by %c1_i32_61 dim 1 : vector<8x256xf32>, i32 -> vector<8x256xf32>
    %175 = vector.extract_strided_slice %161 {offsets = [3, 0], sizes = [1, 256], strides = [1, 1]} : vector<9x256xf32> to vector<1x256xf32>
    %176 = vector.broadcast %175 : vector<1x256xf32> to vector<8x256xf32>
    %177 = arith.mulf %174, %176 : vector<8x256xf32>
    %178 = vector.extract_strided_slice %161 {offsets = [4, 0], sizes = [1, 256], strides = [1, 1]} : vector<9x256xf32> to vector<1x256xf32>
    %179 = vector.broadcast %178 : vector<1x256xf32> to vector<8x256xf32>
    %180 = arith.mulf %160, %179 : vector<8x256xf32>
    %c255_i32 = arith.constant 255 : i32
    %181 = tpu.dynamic_rotate %160 by %c255_i32 dim 1 : vector<8x256xf32>, i32 -> vector<8x256xf32>
    %182 = vector.extract_strided_slice %161 {offsets = [5, 0], sizes = [1, 256], strides = [1, 1]} : vector<9x256xf32> to vector<1x256xf32>
    %183 = vector.broadcast %182 : vector<1x256xf32> to vector<8x256xf32>
    %184 = arith.mulf %181, %183 : vector<8x256xf32>
    %c245_i32 = arith.constant 245 : i32
    %185 = tpu.dynamic_rotate %160 by %c245_i32 dim 1 : vector<8x256xf32>, i32 -> vector<8x256xf32>
    %186 = vector.extract_strided_slice %161 {offsets = [6, 0], sizes = [1, 256], strides = [1, 1]} : vector<9x256xf32> to vector<1x256xf32>
    %187 = vector.broadcast %186 : vector<1x256xf32> to vector<8x256xf32>
    %188 = arith.mulf %185, %187 : vector<8x256xf32>
    %c244_i32 = arith.constant 244 : i32
    %189 = tpu.dynamic_rotate %160 by %c244_i32 dim 1 : vector<8x256xf32>, i32 -> vector<8x256xf32>
    %190 = vector.extract_strided_slice %161 {offsets = [7, 0], sizes = [1, 256], strides = [1, 1]} : vector<9x256xf32> to vector<1x256xf32>
    %191 = vector.broadcast %190 : vector<1x256xf32> to vector<8x256xf32>
    %192 = arith.mulf %189, %191 : vector<8x256xf32>
    %c243_i32 = arith.constant 243 : i32
    %193 = tpu.dynamic_rotate %160 by %c243_i32 dim 1 : vector<8x256xf32>, i32 -> vector<8x256xf32>
    %194 = vector.extract_strided_slice %161 {offsets = [8, 0], sizes = [1, 256], strides = [1, 1]} : vector<9x256xf32> to vector<1x256xf32>
    %195 = vector.broadcast %194 : vector<1x256xf32> to vector<8x256xf32>
    %196 = arith.mulf %193, %195 : vector<8x256xf32>
    %197 = tpu.concatenate %165, %169, %173, %177, %180, %184, %188, %192, %196 in 0 : vector<8x256xf32>, vector<8x256xf32>, vector<8x256xf32>, vector<8x256xf32>, vector<8x256xf32>, vector<8x256xf32>, vector<8x256xf32>, vector<8x256xf32>, vector<8x256xf32> -> vector<72x256xf32>
    %198 = arith.truncf %197 : vector<72x256xf32> to vector<72x256xbf16>
    %c0_62 = arith.constant 0 : index
    %c0_63 = arith.constant 0 : index
    %199 = vector.load %arg20[%c0_62, %c0_63] : memref<16x72xbf16, #tpu.memory_space<vmem>>, vector<16x72xbf16>
    %cst_64 = arith.constant dense<0.000000e+00> : vector<16x256xf32>
    %200 = tpu.matmul %199, %198, %cst_64 {dimension_numbers = #tpu.dot_dimension_numbers<[1], [0], [0], [1], [0, 0, 1, 1], [], []>} : vector<16x72xbf16>, vector<72x256xbf16>, vector<16x256xf32> -> vector<16x256xf32>
    %cst_65 = arith.constant 0.000000e+00 : f32
    %201 = vector.broadcast %cst_65 : f32 to vector<16x256xf32>
    %202 = arith.maximumf %200, %201 : vector<16x256xf32>
    %c0_66 = arith.constant 0 : index
    %c0_67 = arith.constant 0 : index
    %203 = vector.load %arg21[%c0_66, %c0_67] : memref<16x1xf32, #tpu.memory_space<vmem>>, vector<16x1xf32>
    %204 = vector.broadcast %203 : vector<16x1xf32> to vector<16x256xf32>
    %205 = arith.mulf %202, %204 : vector<16x256xf32>
    %c0_68 = arith.constant 0 : index
    %c0_69 = arith.constant 0 : index
    %206 = vector.load %arg22[%c0_68, %c0_69] : memref<16x1xf32, #tpu.memory_space<vmem>>, vector<16x1xf32>
    %207 = vector.broadcast %206 : vector<16x1xf32> to vector<16x256xf32>
    %208 = arith.addf %205, %207 : vector<16x256xf32>
    %c0_70 = arith.constant 0 : index
    %c0_71 = arith.constant 0 : index
    %209 = vector.load %arg3[%c0_70, %c0_71] : memref<9x256xf32, #tpu.memory_space<vmem>>, vector<9x256xf32>
    %c13_i32_72 = arith.constant 13 : i32
    %210 = tpu.dynamic_rotate %208 by %c13_i32_72 dim 1 : vector<16x256xf32>, i32 -> vector<16x256xf32>
    %211 = vector.extract_strided_slice %209 {offsets = [0, 0], sizes = [1, 256], strides = [1, 1]} : vector<9x256xf32> to vector<1x256xf32>
    %212 = vector.broadcast %211 : vector<1x256xf32> to vector<16x256xf32>
    %213 = arith.mulf %210, %212 : vector<16x256xf32>
    %c12_i32_73 = arith.constant 12 : i32
    %214 = tpu.dynamic_rotate %208 by %c12_i32_73 dim 1 : vector<16x256xf32>, i32 -> vector<16x256xf32>
    %215 = vector.extract_strided_slice %209 {offsets = [1, 0], sizes = [1, 256], strides = [1, 1]} : vector<9x256xf32> to vector<1x256xf32>
    %216 = vector.broadcast %215 : vector<1x256xf32> to vector<16x256xf32>
    %217 = arith.mulf %214, %216 : vector<16x256xf32>
    %c11_i32_74 = arith.constant 11 : i32
    %218 = tpu.dynamic_rotate %208 by %c11_i32_74 dim 1 : vector<16x256xf32>, i32 -> vector<16x256xf32>
    %219 = vector.extract_strided_slice %209 {offsets = [2, 0], sizes = [1, 256], strides = [1, 1]} : vector<9x256xf32> to vector<1x256xf32>
    %220 = vector.broadcast %219 : vector<1x256xf32> to vector<16x256xf32>
    %221 = arith.mulf %218, %220 : vector<16x256xf32>
    %c1_i32_75 = arith.constant 1 : i32
    %222 = tpu.dynamic_rotate %208 by %c1_i32_75 dim 1 : vector<16x256xf32>, i32 -> vector<16x256xf32>
    %223 = vector.extract_strided_slice %209 {offsets = [3, 0], sizes = [1, 256], strides = [1, 1]} : vector<9x256xf32> to vector<1x256xf32>
    %224 = vector.broadcast %223 : vector<1x256xf32> to vector<16x256xf32>
    %225 = arith.mulf %222, %224 : vector<16x256xf32>
    %226 = vector.extract_strided_slice %209 {offsets = [4, 0], sizes = [1, 256], strides = [1, 1]} : vector<9x256xf32> to vector<1x256xf32>
    %227 = vector.broadcast %226 : vector<1x256xf32> to vector<16x256xf32>
    %228 = arith.mulf %208, %227 : vector<16x256xf32>
    %c255_i32_76 = arith.constant 255 : i32
    %229 = tpu.dynamic_rotate %208 by %c255_i32_76 dim 1 : vector<16x256xf32>, i32 -> vector<16x256xf32>
    %230 = vector.extract_strided_slice %209 {offsets = [5, 0], sizes = [1, 256], strides = [1, 1]} : vector<9x256xf32> to vector<1x256xf32>
    %231 = vector.broadcast %230 : vector<1x256xf32> to vector<16x256xf32>
    %232 = arith.mulf %229, %231 : vector<16x256xf32>
    %c245_i32_77 = arith.constant 245 : i32
    %233 = tpu.dynamic_rotate %208 by %c245_i32_77 dim 1 : vector<16x256xf32>, i32 -> vector<16x256xf32>
    %234 = vector.extract_strided_slice %209 {offsets = [6, 0], sizes = [1, 256], strides = [1, 1]} : vector<9x256xf32> to vector<1x256xf32>
    %235 = vector.broadcast %234 : vector<1x256xf32> to vector<16x256xf32>
    %236 = arith.mulf %233, %235 : vector<16x256xf32>
    %c244_i32_78 = arith.constant 244 : i32
    %237 = tpu.dynamic_rotate %208 by %c244_i32_78 dim 1 : vector<16x256xf32>, i32 -> vector<16x256xf32>
    %238 = vector.extract_strided_slice %209 {offsets = [7, 0], sizes = [1, 256], strides = [1, 1]} : vector<9x256xf32> to vector<1x256xf32>
    %239 = vector.broadcast %238 : vector<1x256xf32> to vector<16x256xf32>
    %240 = arith.mulf %237, %239 : vector<16x256xf32>
    %c243_i32_79 = arith.constant 243 : i32
    %241 = tpu.dynamic_rotate %208 by %c243_i32_79 dim 1 : vector<16x256xf32>, i32 -> vector<16x256xf32>
    %242 = vector.extract_strided_slice %209 {offsets = [8, 0], sizes = [1, 256], strides = [1, 1]} : vector<9x256xf32> to vector<1x256xf32>
    %243 = vector.broadcast %242 : vector<1x256xf32> to vector<16x256xf32>
    %244 = arith.mulf %241, %243 : vector<16x256xf32>
    %245 = tpu.concatenate %213, %217, %221, %225, %228, %232, %236, %240, %244 in 0 : vector<16x256xf32>, vector<16x256xf32>, vector<16x256xf32>, vector<16x256xf32>, vector<16x256xf32>, vector<16x256xf32>, vector<16x256xf32>, vector<16x256xf32>, vector<16x256xf32> -> vector<144x256xf32>
    %246 = arith.truncf %245 : vector<144x256xf32> to vector<144x256xbf16>
    %c0_80 = arith.constant 0 : index
    %c0_81 = arith.constant 0 : index
    %247 = vector.load %arg23[%c0_80, %c0_81] : memref<32x144xbf16, #tpu.memory_space<vmem>>, vector<32x144xbf16>
    %cst_82 = arith.constant dense<0.000000e+00> : vector<32x256xf32>
    %248 = tpu.matmul %247, %246, %cst_82 {dimension_numbers = #tpu.dot_dimension_numbers<[1], [0], [0], [1], [0, 0, 1, 1], [], []>} : vector<32x144xbf16>, vector<144x256xbf16>, vector<32x256xf32> -> vector<32x256xf32>
    %cst_83 = arith.constant 0.000000e+00 : f32
    %249 = vector.broadcast %cst_83 : f32 to vector<32x256xf32>
    %250 = arith.maximumf %248, %249 : vector<32x256xf32>
    %c0_84 = arith.constant 0 : index
    %c0_85 = arith.constant 0 : index
    %251 = vector.load %arg24[%c0_84, %c0_85] : memref<32x1xf32, #tpu.memory_space<vmem>>, vector<32x1xf32>
    %252 = vector.broadcast %251 : vector<32x1xf32> to vector<32x256xf32>
    %253 = arith.mulf %250, %252 : vector<32x256xf32>
    %c0_86 = arith.constant 0 : index
    %c0_87 = arith.constant 0 : index
    %254 = vector.load %arg25[%c0_86, %c0_87] : memref<32x1xf32, #tpu.memory_space<vmem>>, vector<32x1xf32>
    %255 = vector.broadcast %254 : vector<32x1xf32> to vector<32x256xf32>
    %256 = arith.addf %253, %255 : vector<32x256xf32>
    %c255_i32_88 = arith.constant 255 : i32
    %257 = tpu.dynamic_rotate %256 by %c255_i32_88 dim 1 : vector<32x256xf32>, i32 -> vector<32x256xf32>
    %258 = arith.maximumf %256, %257 : vector<32x256xf32>
    %c244_i32_89 = arith.constant 244 : i32
    %259 = tpu.dynamic_rotate %258 by %c244_i32_89 dim 1 : vector<32x256xf32>, i32 -> vector<32x256xf32>
    %260 = arith.maximumf %258, %259 : vector<32x256xf32>
    %261 = arith.truncf %260 : vector<32x256xf32> to vector<32x256xbf16>
    %c0_90 = arith.constant 0 : index
    %c0_91 = arith.constant 0 : index
    %262 = vector.load %arg26[%c0_90, %c0_91] : memref<8x32xbf16, #tpu.memory_space<vmem>>, vector<8x32xbf16>
    %cst_92 = arith.constant dense<0.000000e+00> : vector<8x256xf32>
    %263 = tpu.matmul %262, %261, %cst_92 {dimension_numbers = #tpu.dot_dimension_numbers<[1], [0], [0], [1], [0, 0, 1, 1], [], []>} : vector<8x32xbf16>, vector<32x256xbf16>, vector<8x256xf32> -> vector<8x256xf32>
    %c0_93 = arith.constant 0 : index
    %c0_94 = arith.constant 0 : index
    %264 = vector.load %arg6[%c0_93, %c0_94] : memref<256x128xf32, #tpu.memory_space<vmem>>, vector<256x128xf32>
    %cst_95 = arith.constant dense<0.000000e+00> : vector<8x128xf32>
    %265 = tpu.matmul %263, %264, %cst_95 {dimension_numbers = #tpu.dot_dimension_numbers<[1], [0], [0], [1], [0, 0, 1, 1], [], []>} : vector<8x256xf32>, vector<256x128xf32>, vector<8x128xf32> -> vector<8x128xf32>
    %c0_96 = arith.constant 0 : index
    %c0_97 = arith.constant 0 : index
    %266 = vector.load %arg27[%c0_96, %c0_97] : memref<8x1xf32, #tpu.memory_space<vmem>>, vector<8x1xf32>
    %267 = vector.broadcast %266 : vector<8x1xf32> to vector<8x128xf32>
    %268 = arith.mulf %265, %267 : vector<8x128xf32>
    %c0_98 = arith.constant 0 : index
    %c0_99 = arith.constant 0 : index
    %269 = vector.load %arg28[%c0_98, %c0_99] : memref<8x1xf32, #tpu.memory_space<vmem>>, vector<8x1xf32>
    %270 = vector.broadcast %269 : vector<8x1xf32> to vector<8x128xf32>
    %271 = arith.addf %268, %270 : vector<8x128xf32>
    %c0_100 = arith.constant 0 : index
    %c0_101 = arith.constant 0 : index
    %272 = vector.load %arg4[%c0_100, %c0_101] : memref<9x128xf32, #tpu.memory_space<vmem>>, vector<9x128xf32>
    %c7_i32 = arith.constant 7 : i32
    %273 = tpu.dynamic_rotate %271 by %c7_i32 dim 1 : vector<8x128xf32>, i32 -> vector<8x128xf32>
    %274 = vector.extract_strided_slice %272 {offsets = [0, 0], sizes = [1, 128], strides = [1, 1]} : vector<9x128xf32> to vector<1x128xf32>
    %275 = vector.broadcast %274 : vector<1x128xf32> to vector<8x128xf32>
    %276 = arith.mulf %273, %275 : vector<8x128xf32>
    %c6_i32 = arith.constant 6 : i32
    %277 = tpu.dynamic_rotate %271 by %c6_i32 dim 1 : vector<8x128xf32>, i32 -> vector<8x128xf32>
    %278 = vector.extract_strided_slice %272 {offsets = [1, 0], sizes = [1, 128], strides = [1, 1]} : vector<9x128xf32> to vector<1x128xf32>
    %279 = vector.broadcast %278 : vector<1x128xf32> to vector<8x128xf32>
    %280 = arith.mulf %277, %279 : vector<8x128xf32>
    %c5_i32 = arith.constant 5 : i32
    %281 = tpu.dynamic_rotate %271 by %c5_i32 dim 1 : vector<8x128xf32>, i32 -> vector<8x128xf32>
    %282 = vector.extract_strided_slice %272 {offsets = [2, 0], sizes = [1, 128], strides = [1, 1]} : vector<9x128xf32> to vector<1x128xf32>
    %283 = vector.broadcast %282 : vector<1x128xf32> to vector<8x128xf32>
    %284 = arith.mulf %281, %283 : vector<8x128xf32>
    %c1_i32_102 = arith.constant 1 : i32
    %285 = tpu.dynamic_rotate %271 by %c1_i32_102 dim 1 : vector<8x128xf32>, i32 -> vector<8x128xf32>
    %286 = vector.extract_strided_slice %272 {offsets = [3, 0], sizes = [1, 128], strides = [1, 1]} : vector<9x128xf32> to vector<1x128xf32>
    %287 = vector.broadcast %286 : vector<1x128xf32> to vector<8x128xf32>
    %288 = arith.mulf %285, %287 : vector<8x128xf32>
    %289 = vector.extract_strided_slice %272 {offsets = [4, 0], sizes = [1, 128], strides = [1, 1]} : vector<9x128xf32> to vector<1x128xf32>
    %290 = vector.broadcast %289 : vector<1x128xf32> to vector<8x128xf32>
    %291 = arith.mulf %271, %290 : vector<8x128xf32>
    %c127_i32 = arith.constant 127 : i32
    %292 = tpu.dynamic_rotate %271 by %c127_i32 dim 1 : vector<8x128xf32>, i32 -> vector<8x128xf32>
    %293 = vector.extract_strided_slice %272 {offsets = [5, 0], sizes = [1, 128], strides = [1, 1]} : vector<9x128xf32> to vector<1x128xf32>
    %294 = vector.broadcast %293 : vector<1x128xf32> to vector<8x128xf32>
    %295 = arith.mulf %292, %294 : vector<8x128xf32>
    %c123_i32 = arith.constant 123 : i32
    %296 = tpu.dynamic_rotate %271 by %c123_i32 dim 1 : vector<8x128xf32>, i32 -> vector<8x128xf32>
    %297 = vector.extract_strided_slice %272 {offsets = [6, 0], sizes = [1, 128], strides = [1, 1]} : vector<9x128xf32> to vector<1x128xf32>
    %298 = vector.broadcast %297 : vector<1x128xf32> to vector<8x128xf32>
    %299 = arith.mulf %296, %298 : vector<8x128xf32>
    %c122_i32 = arith.constant 122 : i32
    %300 = tpu.dynamic_rotate %271 by %c122_i32 dim 1 : vector<8x128xf32>, i32 -> vector<8x128xf32>
    %301 = vector.extract_strided_slice %272 {offsets = [7, 0], sizes = [1, 128], strides = [1, 1]} : vector<9x128xf32> to vector<1x128xf32>
    %302 = vector.broadcast %301 : vector<1x128xf32> to vector<8x128xf32>
    %303 = arith.mulf %300, %302 : vector<8x128xf32>
    %c121_i32 = arith.constant 121 : i32
    %304 = tpu.dynamic_rotate %271 by %c121_i32 dim 1 : vector<8x128xf32>, i32 -> vector<8x128xf32>
    %305 = vector.extract_strided_slice %272 {offsets = [8, 0], sizes = [1, 128], strides = [1, 1]} : vector<9x128xf32> to vector<1x128xf32>
    %306 = vector.broadcast %305 : vector<1x128xf32> to vector<8x128xf32>
    %307 = arith.mulf %304, %306 : vector<8x128xf32>
    %308 = tpu.concatenate %276, %280, %284, %288, %291, %295, %299, %303, %307 in 0 : vector<8x128xf32>, vector<8x128xf32>, vector<8x128xf32>, vector<8x128xf32>, vector<8x128xf32>, vector<8x128xf32>, vector<8x128xf32>, vector<8x128xf32>, vector<8x128xf32> -> vector<72x128xf32>
    %309 = arith.truncf %308 : vector<72x128xf32> to vector<72x128xbf16>
    %c0_103 = arith.constant 0 : index
    %c0_104 = arith.constant 0 : index
    %310 = vector.load %arg29[%c0_103, %c0_104] : memref<16x72xbf16, #tpu.memory_space<vmem>>, vector<16x72xbf16>
    %cst_105 = arith.constant dense<0.000000e+00> : vector<16x128xf32>
    %311 = tpu.matmul %310, %309, %cst_105 {dimension_numbers = #tpu.dot_dimension_numbers<[1], [0], [0], [1], [0, 0, 1, 1], [], []>} : vector<16x72xbf16>, vector<72x128xbf16>, vector<16x128xf32> -> vector<16x128xf32>
    %cst_106 = arith.constant 0.000000e+00 : f32
    %312 = vector.broadcast %cst_106 : f32 to vector<16x128xf32>
    %313 = arith.maximumf %311, %312 : vector<16x128xf32>
    %c0_107 = arith.constant 0 : index
    %c0_108 = arith.constant 0 : index
    %314 = vector.load %arg30[%c0_107, %c0_108] : memref<16x1xf32, #tpu.memory_space<vmem>>, vector<16x1xf32>
    %315 = vector.broadcast %314 : vector<16x1xf32> to vector<16x128xf32>
    %316 = arith.mulf %313, %315 : vector<16x128xf32>
    %c0_109 = arith.constant 0 : index
    %c0_110 = arith.constant 0 : index
    %317 = vector.load %arg31[%c0_109, %c0_110] : memref<16x1xf32, #tpu.memory_space<vmem>>, vector<16x1xf32>
    %318 = vector.broadcast %317 : vector<16x1xf32> to vector<16x128xf32>
    %319 = arith.addf %316, %318 : vector<16x128xf32>
    %c0_111 = arith.constant 0 : index
    %c0_112 = arith.constant 0 : index
    %320 = vector.load %arg4[%c0_111, %c0_112] : memref<9x128xf32, #tpu.memory_space<vmem>>, vector<9x128xf32>
    %c7_i32_113 = arith.constant 7 : i32
    %321 = tpu.dynamic_rotate %319 by %c7_i32_113 dim 1 : vector<16x128xf32>, i32 -> vector<16x128xf32>
    %322 = vector.extract_strided_slice %320 {offsets = [0, 0], sizes = [1, 128], strides = [1, 1]} : vector<9x128xf32> to vector<1x128xf32>
    %323 = vector.broadcast %322 : vector<1x128xf32> to vector<16x128xf32>
    %324 = arith.mulf %321, %323 : vector<16x128xf32>
    %c6_i32_114 = arith.constant 6 : i32
    %325 = tpu.dynamic_rotate %319 by %c6_i32_114 dim 1 : vector<16x128xf32>, i32 -> vector<16x128xf32>
    %326 = vector.extract_strided_slice %320 {offsets = [1, 0], sizes = [1, 128], strides = [1, 1]} : vector<9x128xf32> to vector<1x128xf32>
    %327 = vector.broadcast %326 : vector<1x128xf32> to vector<16x128xf32>
    %328 = arith.mulf %325, %327 : vector<16x128xf32>
    %c5_i32_115 = arith.constant 5 : i32
    %329 = tpu.dynamic_rotate %319 by %c5_i32_115 dim 1 : vector<16x128xf32>, i32 -> vector<16x128xf32>
    %330 = vector.extract_strided_slice %320 {offsets = [2, 0], sizes = [1, 128], strides = [1, 1]} : vector<9x128xf32> to vector<1x128xf32>
    %331 = vector.broadcast %330 : vector<1x128xf32> to vector<16x128xf32>
    %332 = arith.mulf %329, %331 : vector<16x128xf32>
    %c1_i32_116 = arith.constant 1 : i32
    %333 = tpu.dynamic_rotate %319 by %c1_i32_116 dim 1 : vector<16x128xf32>, i32 -> vector<16x128xf32>
    %334 = vector.extract_strided_slice %320 {offsets = [3, 0], sizes = [1, 128], strides = [1, 1]} : vector<9x128xf32> to vector<1x128xf32>
    %335 = vector.broadcast %334 : vector<1x128xf32> to vector<16x128xf32>
    %336 = arith.mulf %333, %335 : vector<16x128xf32>
    %337 = vector.extract_strided_slice %320 {offsets = [4, 0], sizes = [1, 128], strides = [1, 1]} : vector<9x128xf32> to vector<1x128xf32>
    %338 = vector.broadcast %337 : vector<1x128xf32> to vector<16x128xf32>
    %339 = arith.mulf %319, %338 : vector<16x128xf32>
    %c127_i32_117 = arith.constant 127 : i32
    %340 = tpu.dynamic_rotate %319 by %c127_i32_117 dim 1 : vector<16x128xf32>, i32 -> vector<16x128xf32>
    %341 = vector.extract_strided_slice %320 {offsets = [5, 0], sizes = [1, 128], strides = [1, 1]} : vector<9x128xf32> to vector<1x128xf32>
    %342 = vector.broadcast %341 : vector<1x128xf32> to vector<16x128xf32>
    %343 = arith.mulf %340, %342 : vector<16x128xf32>
    %c123_i32_118 = arith.constant 123 : i32
    %344 = tpu.dynamic_rotate %319 by %c123_i32_118 dim 1 : vector<16x128xf32>, i32 -> vector<16x128xf32>
    %345 = vector.extract_strided_slice %320 {offsets = [6, 0], sizes = [1, 128], strides = [1, 1]} : vector<9x128xf32> to vector<1x128xf32>
    %346 = vector.broadcast %345 : vector<1x128xf32> to vector<16x128xf32>
    %347 = arith.mulf %344, %346 : vector<16x128xf32>
    %c122_i32_119 = arith.constant 122 : i32
    %348 = tpu.dynamic_rotate %319 by %c122_i32_119 dim 1 : vector<16x128xf32>, i32 -> vector<16x128xf32>
    %349 = vector.extract_strided_slice %320 {offsets = [7, 0], sizes = [1, 128], strides = [1, 1]} : vector<9x128xf32> to vector<1x128xf32>
    %350 = vector.broadcast %349 : vector<1x128xf32> to vector<16x128xf32>
    %351 = arith.mulf %348, %350 : vector<16x128xf32>
    %c121_i32_120 = arith.constant 121 : i32
    %352 = tpu.dynamic_rotate %319 by %c121_i32_120 dim 1 : vector<16x128xf32>, i32 -> vector<16x128xf32>
    %353 = vector.extract_strided_slice %320 {offsets = [8, 0], sizes = [1, 128], strides = [1, 1]} : vector<9x128xf32> to vector<1x128xf32>
    %354 = vector.broadcast %353 : vector<1x128xf32> to vector<16x128xf32>
    %355 = arith.mulf %352, %354 : vector<16x128xf32>
    %356 = tpu.concatenate %324, %328, %332, %336, %339, %343, %347, %351, %355 in 0 : vector<16x128xf32>, vector<16x128xf32>, vector<16x128xf32>, vector<16x128xf32>, vector<16x128xf32>, vector<16x128xf32>, vector<16x128xf32>, vector<16x128xf32>, vector<16x128xf32> -> vector<144x128xf32>
    %357 = arith.truncf %356 : vector<144x128xf32> to vector<144x128xbf16>
    %c0_121 = arith.constant 0 : index
    %c0_122 = arith.constant 0 : index
    %358 = vector.load %arg32[%c0_121, %c0_122] : memref<32x144xbf16, #tpu.memory_space<vmem>>, vector<32x144xbf16>
    %cst_123 = arith.constant dense<0.000000e+00> : vector<32x128xf32>
    %359 = tpu.matmul %358, %357, %cst_123 {dimension_numbers = #tpu.dot_dimension_numbers<[1], [0], [0], [1], [0, 0, 1, 1], [], []>} : vector<32x144xbf16>, vector<144x128xbf16>, vector<32x128xf32> -> vector<32x128xf32>
    %cst_124 = arith.constant 0.000000e+00 : f32
    %360 = vector.broadcast %cst_124 : f32 to vector<32x128xf32>
    %361 = arith.maximumf %359, %360 : vector<32x128xf32>
    %c0_125 = arith.constant 0 : index
    %c0_126 = arith.constant 0 : index
    %362 = vector.load %arg33[%c0_125, %c0_126] : memref<32x1xf32, #tpu.memory_space<vmem>>, vector<32x1xf32>
    %363 = vector.broadcast %362 : vector<32x1xf32> to vector<32x128xf32>
    %364 = arith.mulf %361, %363 : vector<32x128xf32>
    %c0_127 = arith.constant 0 : index
    %c0_128 = arith.constant 0 : index
    %365 = vector.load %arg34[%c0_127, %c0_128] : memref<32x1xf32, #tpu.memory_space<vmem>>, vector<32x1xf32>
    %366 = vector.broadcast %365 : vector<32x1xf32> to vector<32x128xf32>
    %367 = arith.addf %364, %366 : vector<32x128xf32>
    %c127_i32_129 = arith.constant 127 : i32
    %368 = tpu.dynamic_rotate %367 by %c127_i32_129 dim 1 : vector<32x128xf32>, i32 -> vector<32x128xf32>
    %369 = arith.maximumf %367, %368 : vector<32x128xf32>
    %c122_i32_130 = arith.constant 122 : i32
    %370 = tpu.dynamic_rotate %369 by %c122_i32_130 dim 1 : vector<32x128xf32>, i32 -> vector<32x128xf32>
    %371 = arith.maximumf %369, %370 : vector<32x128xf32>
    %c0_131 = arith.constant 0 : index
    %c0_132 = arith.constant 0 : index
    %372 = vector.load %arg7[%c0_131, %c0_132] : memref<1x128xf32, #tpu.memory_space<vmem>>, vector<1x128xf32>
    %cst_133 = arith.constant dense<0.000000e+00> : vector<1x32xf32>
    %373 = tpu.matmul %372, %371, %cst_133 {dimension_numbers = #tpu.dot_dimension_numbers<[1], [1], [0], [0], [0, 0, 1, 0], [], []>} : vector<1x128xf32>, vector<32x128xf32>, vector<1x32xf32> -> vector<1x32xf32>
    %c0_134 = arith.constant 0 : index
    %c0_135 = arith.constant 0 : index
    %374 = vector.load %arg35[%c0_134, %c0_135] : memref<32x10xf32, #tpu.memory_space<vmem>>, vector<32x10xf32>
    %cst_136 = arith.constant dense<0.000000e+00> : vector<1x10xf32>
    %375 = tpu.matmul %373, %374, %cst_136 {dimension_numbers = #tpu.dot_dimension_numbers<[1], [0], [0], [1], [0, 0, 1, 1], [], []>} : vector<1x32xf32>, vector<32x10xf32>, vector<1x10xf32> -> vector<1x10xf32>
    %cst_137 = arith.constant dense<0xFF800000> : vector<1xf32>
    %376 = vector.multi_reduction <maximumf>, %375, %cst_137 [1] : vector<1x10xf32> to vector<1xf32>
    %377 = vector.shape_cast %376 : vector<1xf32> to vector<1x1xf32>
    %378 = vector.broadcast %377 : vector<1x1xf32> to vector<1x10xf32>
    %379 = arith.subf %375, %378 : vector<1x10xf32>
    %380 = math.exp %379 : vector<1x10xf32>
    %cst_138 = arith.constant dense<0.000000e+00> : vector<1xf32>
    %381 = vector.multi_reduction <add>, %380, %cst_138 [1] : vector<1x10xf32> to vector<1xf32>
    %382 = vector.shape_cast %381 : vector<1xf32> to vector<1x1xf32>
    %383 = math.log %382 : vector<1x1xf32>
    %384 = vector.broadcast %383 : vector<1x1xf32> to vector<1x10xf32>
    %385 = arith.subf %379, %384 : vector<1x10xf32>
    %c0_139 = arith.constant 0 : index
    %c0_140 = arith.constant 0 : index
    %c0_141 = arith.constant 0 : index
    %386 = vector.load %arg36[%c0_139, %c0_140, %c0_141] : memref<1x1x10xf32, #tpu.memory_space<vmem>>, vector<1x1x10xf32>
    %387 = vector.shape_cast %386 : vector<1x1x10xf32> to vector<1x10xf32>
    %388 = vector.shape_cast %385 : vector<1x10xf32> to vector<1x1x10xf32>
    tpu.vector_store %arg36[%c0_139, %c0_140, %c0_141], %388 {strides = array<i32>} : memref<1x1x10xf32, #tpu.memory_space<vmem>>, vector<1x1x10xf32>,
    return
  }
  func.func @transform_0(%arg0: i32) -> (i32, i32, i32) {
    %c0_i32 = arith.constant 0 : i32
    %c0_i32_0 = arith.constant 0 : i32
    %c0_i32_1 = arith.constant 0 : i32
    return %arg0, %c0_i32, %c0_i32_0 : i32, i32, i32
  }
  func.func @transform_1(%arg0: i32) -> (i32, i32) {
    %c0_i32 = arith.constant 0 : i32
    %c0_i32_0 = arith.constant 0 : i32
    %c0_i32_1 = arith.constant 0 : i32
    return %c0_i32, %c0_i32_0 : i32, i32
  }
  func.func @transform_2(%arg0: i32) -> (i32, i32) {
    %c0_i32 = arith.constant 0 : i32
    %c0_i32_0 = arith.constant 0 : i32
    %c0_i32_1 = arith.constant 0 : i32
    return %c0_i32, %c0_i32_0 : i32, i32
  }
  func.func @transform_3(%arg0: i32) -> (i32, i32) {
    %c0_i32 = arith.constant 0 : i32
    %c0_i32_0 = arith.constant 0 : i32
    %c0_i32_1 = arith.constant 0 : i32
    return %c0_i32, %c0_i32_0 : i32, i32
  }
  func.func @transform_4(%arg0: i32) -> (i32, i32) {
    %c0_i32 = arith.constant 0 : i32
    %c0_i32_0 = arith.constant 0 : i32
    %c0_i32_1 = arith.constant 0 : i32
    return %c0_i32, %c0_i32_0 : i32, i32
  }
  func.func @transform_5(%arg0: i32) -> (i32, i32) {
    %c0_i32 = arith.constant 0 : i32
    %c0_i32_0 = arith.constant 0 : i32
    %c0_i32_1 = arith.constant 0 : i32
    return %c0_i32, %c0_i32_0 : i32, i32
  }
  func.func @transform_6(%arg0: i32) -> (i32, i32) {
    %c0_i32 = arith.constant 0 : i32
    %c0_i32_0 = arith.constant 0 : i32
    %c0_i32_1 = arith.constant 0 : i32
    return %c0_i32, %c0_i32_0 : i32, i32
  }
  func.func @transform_7(%arg0: i32) -> (i32, i32) {
    %c0_i32 = arith.constant 0 : i32
    %c0_i32_0 = arith.constant 0 : i32
    %c0_i32_1 = arith.constant 0 : i32
    return %c0_i32, %c0_i32_0 : i32, i32
  }
  func.func @transform_8(%arg0: i32) -> (i32, i32) {
    %c0_i32 = arith.constant 0 : i32
    %c0_i32_0 = arith.constant 0 : i32
    %c0_i32_1 = arith.constant 0 : i32
    return %c0_i32, %c0_i32_0 : i32, i32
  }
  func.func @transform_9(%arg0: i32) -> (i32, i32) {
    %c0_i32 = arith.constant 0 : i32
    %c0_i32_0 = arith.constant 0 : i32
    %c0_i32_1 = arith.constant 0 : i32
    return %c0_i32, %c0_i32_0 : i32, i32
  }
  func.func @transform_10(%arg0: i32) -> (i32, i32) {
    %c0_i32 = arith.constant 0 : i32
    %c0_i32_0 = arith.constant 0 : i32
    %c0_i32_1 = arith.constant 0 : i32
    return %c0_i32, %c0_i32_0 : i32, i32
  }
  func.func @transform_11(%arg0: i32) -> (i32, i32) {
    %c0_i32 = arith.constant 0 : i32
    %c0_i32_0 = arith.constant 0 : i32
    %c0_i32_1 = arith.constant 0 : i32
    return %c0_i32, %c0_i32_0 : i32, i32
  }
  func.func @transform_12(%arg0: i32) -> (i32, i32) {
    %c0_i32 = arith.constant 0 : i32
    %c0_i32_0 = arith.constant 0 : i32
    %c0_i32_1 = arith.constant 0 : i32
    return %c0_i32, %c0_i32_0 : i32, i32
  }
  func.func @transform_13(%arg0: i32) -> (i32, i32) {
    %c0_i32 = arith.constant 0 : i32
    %c0_i32_0 = arith.constant 0 : i32
    %c0_i32_1 = arith.constant 0 : i32
    return %c0_i32, %c0_i32_0 : i32, i32
  }
  func.func @transform_14(%arg0: i32) -> (i32, i32) {
    %c0_i32 = arith.constant 0 : i32
    %c0_i32_0 = arith.constant 0 : i32
    %c0_i32_1 = arith.constant 0 : i32
    return %c0_i32, %c0_i32_0 : i32, i32
  }
  func.func @transform_15(%arg0: i32) -> (i32, i32) {
    %c0_i32 = arith.constant 0 : i32
    %c0_i32_0 = arith.constant 0 : i32
    %c0_i32_1 = arith.constant 0 : i32
    return %c0_i32, %c0_i32_0 : i32, i32
  }
  func.func @transform_16(%arg0: i32) -> (i32, i32) {
    %c0_i32 = arith.constant 0 : i32
    %c0_i32_0 = arith.constant 0 : i32
    %c0_i32_1 = arith.constant 0 : i32
    return %c0_i32, %c0_i32_0 : i32, i32
  }
  func.func @transform_17(%arg0: i32) -> (i32, i32) {
    %c0_i32 = arith.constant 0 : i32
    %c0_i32_0 = arith.constant 0 : i32
    %c0_i32_1 = arith.constant 0 : i32
    return %c0_i32, %c0_i32_0 : i32, i32
  }
  func.func @transform_18(%arg0: i32) -> (i32, i32) {
    %c0_i32 = arith.constant 0 : i32
    %c0_i32_0 = arith.constant 0 : i32
    %c0_i32_1 = arith.constant 0 : i32
    return %c0_i32, %c0_i32_0 : i32, i32
  }
  func.func @transform_19(%arg0: i32) -> (i32, i32) {
    %c0_i32 = arith.constant 0 : i32
    %c0_i32_0 = arith.constant 0 : i32
    %c0_i32_1 = arith.constant 0 : i32
    return %c0_i32, %c0_i32_0 : i32, i32
  }
  func.func @transform_20(%arg0: i32) -> (i32, i32) {
    %c0_i32 = arith.constant 0 : i32
    %c0_i32_0 = arith.constant 0 : i32
    %c0_i32_1 = arith.constant 0 : i32
    return %c0_i32, %c0_i32_0 : i32, i32
  }
  func.func @transform_21(%arg0: i32) -> (i32, i32) {
    %c0_i32 = arith.constant 0 : i32
    %c0_i32_0 = arith.constant 0 : i32
    %c0_i32_1 = arith.constant 0 : i32
    return %c0_i32, %c0_i32_0 : i32, i32
  }
  func.func @transform_22(%arg0: i32) -> (i32, i32) {
    %c0_i32 = arith.constant 0 : i32
    %c0_i32_0 = arith.constant 0 : i32
    %c0_i32_1 = arith.constant 0 : i32
    return %c0_i32, %c0_i32_0 : i32, i32
  }
  func.func @transform_23(%arg0: i32) -> (i32, i32) {
    %c0_i32 = arith.constant 0 : i32
    %c0_i32_0 = arith.constant 0 : i32
    %c0_i32_1 = arith.constant 0 : i32
    return %c0_i32, %c0_i32_0 : i32, i32
  }
  func.func @transform_24(%arg0: i32) -> (i32, i32) {
    %c0_i32 = arith.constant 0 : i32
    %c0_i32_0 = arith.constant 0 : i32
    %c0_i32_1 = arith.constant 0 : i32
    return %c0_i32, %c0_i32_0 : i32, i32
  }
  func.func @transform_25(%arg0: i32) -> (i32, i32) {
    %c0_i32 = arith.constant 0 : i32
    %c0_i32_0 = arith.constant 0 : i32
    %c0_i32_1 = arith.constant 0 : i32
    return %c0_i32, %c0_i32_0 : i32, i32
  }
  func.func @transform_26(%arg0: i32) -> (i32, i32) {
    %c0_i32 = arith.constant 0 : i32
    %c0_i32_0 = arith.constant 0 : i32
    %c0_i32_1 = arith.constant 0 : i32
    return %c0_i32, %c0_i32_0 : i32, i32
  }
  func.func @transform_27(%arg0: i32) -> (i32, i32) {
    %c0_i32 = arith.constant 0 : i32
    %c0_i32_0 = arith.constant 0 : i32
    %c0_i32_1 = arith.constant 0 : i32
    return %c0_i32, %c0_i32_0 : i32, i32
  }
  func.func @transform_28(%arg0: i32) -> (i32, i32) {
    %c0_i32 = arith.constant 0 : i32
    %c0_i32_0 = arith.constant 0 : i32
    %c0_i32_1 = arith.constant 0 : i32
    return %c0_i32, %c0_i32_0 : i32, i32
  }
  func.func @transform_29(%arg0: i32) -> (i32, i32) {
    %c0_i32 = arith.constant 0 : i32
    %c0_i32_0 = arith.constant 0 : i32
    %c0_i32_1 = arith.constant 0 : i32
    return %c0_i32, %c0_i32_0 : i32, i32
  }
  func.func @transform_30(%arg0: i32) -> (i32, i32) {
    %c0_i32 = arith.constant 0 : i32
    %c0_i32_0 = arith.constant 0 : i32
    %c0_i32_1 = arith.constant 0 : i32
    return %c0_i32, %c0_i32_0 : i32, i32
  }
  func.func @transform_31(%arg0: i32) -> (i32, i32) {
    %c0_i32 = arith.constant 0 : i32
    %c0_i32_0 = arith.constant 0 : i32
    %c0_i32_1 = arith.constant 0 : i32
    return %c0_i32, %c0_i32_0 : i32, i32
  }
  func.func @transform_32(%arg0: i32) -> (i32, i32) {
    %c0_i32 = arith.constant 0 : i32
    %c0_i32_0 = arith.constant 0 : i32
    %c0_i32_1 = arith.constant 0 : i32
    return %c0_i32, %c0_i32_0 : i32, i32
  }
  func.func @transform_33(%arg0: i32) -> (i32, i32) {
    %c0_i32 = arith.constant 0 : i32
    %c0_i32_0 = arith.constant 0 : i32
    %c0_i32_1 = arith.constant 0 : i32
    return %c0_i32, %c0_i32_0 : i32, i32
  }
  func.func @transform_34(%arg0: i32) -> (i32, i32) {
    %c0_i32 = arith.constant 0 : i32
    %c0_i32_0 = arith.constant 0 : i32
    %c0_i32_1 = arith.constant 0 : i32
    return %c0_i32, %c0_i32_0 : i32, i32
  }
  func.func @transform_35(%arg0: i32) -> (i32, i32, i32) {
    %c0_i32 = arith.constant 0 : i32
    %c0_i32_0 = arith.constant 0 : i32
    %c0_i32_1 = arith.constant 0 : i32
    return %arg0, %c0_i32, %c0_i32_0 : i32, i32, i32
  }
}

</mosaic_0001>

<llo_original>
// kernel: nets6_forward.1
$region0: #{nets6_forward.1}
  #allocation0 [shape = 'u32[]', space=smem, size = 0x4, offset = 0x4, fixed_abs, tag = 'smem constant byte address 0x4 - core index']
  #allocation1 [shape = 'u32[72,128]{1,0:T(1,128)}', space=vmem, size = 0x9000, scoped, tag = 'internal scratch']
  %s0 = inlined_call_operand.smem [shape: u32[36], index: -1, kind: input, shape index: {}]
  %s1 = sld [smem:[%s0]]
  %s2 = scalar_lea.smem %s0, 1
  %s3 = sld [smem:[%s2]]
  %s4 = scalar_lea.smem %s0, 2
  %s5 = sld [smem:[%s4]]
  %s6 = scalar_lea.smem %s0, 3
  %s7 = sld [smem:[%s6]]
  %s8 = scalar_lea.smem %s0, 4
  %s9 = sld [smem:[%s8]]
  %s10 = scalar_lea.smem %s0, 5
  %s11 = sld [smem:[%s10]]
  %s12 = scalar_lea.smem %s0, 6
  %s13 = sld [smem:[%s12]]
  %s14 = scalar_lea.smem %s0, 7
  %s15 = sld [smem:[%s14]]
  %s16 = scalar_lea.smem %s0, 8
  %s17 = sld [smem:[%s16]]
  %s18 = scalar_lea.smem %s0, 9
  %s19 = sld [smem:[%s18]]
  %s20 = scalar_lea.smem %s0, 10
  %s21 = sld [smem:[%s20]]
  %s22 = scalar_lea.smem %s0, 11
  %s23 = sld [smem:[%s22]]
  %s24 = scalar_lea.smem %s0, 12
  %s25 = sld [smem:[%s24]]
  %s26 = scalar_lea.smem %s0, 13
  %s27 = sld [smem:[%s26]]
  %s28 = scalar_lea.smem %s0, 14
  %s29 = sld [smem:[%s28]]
  %s30 = scalar_lea.smem %s0, 15
  %s31 = sld [smem:[%s30]]
  %s32 = scalar_lea.smem %s0, 16
  %s33 = sld [smem:[%s32]]
  %s34 = scalar_lea.smem %s0, 17
  %s35 = sld [smem:[%s34]]
  %s36 = scalar_lea.smem %s0, 18
  %s37 = sld [smem:[%s36]]
  %s38 = scalar_lea.smem %s0, 19
  %s39 = sld [smem:[%s38]]
  %s40 = scalar_lea.smem %s0, 20
  %s41 = sld [smem:[%s40]]
  %s42 = scalar_lea.smem %s0, 21
  %s43 = sld [smem:[%s42]]
  %s44 = scalar_lea.smem %s0, 22
  %s45 = sld [smem:[%s44]]
  %s46 = scalar_lea.smem %s0, 23
  %s47 = sld [smem:[%s46]]
  %s48 = scalar_lea.smem %s0, 24
  %s49 = sld [smem:[%s48]]
  %s50 = scalar_lea.smem %s0, 25
  %s51 = sld [smem:[%s50]]
  %s52 = scalar_lea.smem %s0, 26
  %s53 = sld [smem:[%s52]]
  %s54 = scalar_lea.smem %s0, 27
  %s55 = sld [smem:[%s54]]
  %s56 = scalar_lea.smem %s0, 28
  %s57 = sld [smem:[%s56]]
  %s58 = scalar_lea.smem %s0, 29
  %s59 = sld [smem:[%s58]]
  %s60 = scalar_lea.smem %s0, 30
  %s61 = sld [smem:[%s60]]
  %s62 = scalar_lea.smem %s0, 31
  %s63 = sld [smem:[%s62]]
  %s64 = scalar_lea.smem %s0, 32
  %s65 = sld [smem:[%s64]]
  %s66 = scalar_lea.smem %s0, 33
  %s67 = sld [smem:[%s66]]
  %s68 = scalar_lea.smem %s0, 34
  %s69 = sld [smem:[%s68]]
  %s70 = scalar_lea.smem %s0, 35
  %s71 = sld [smem:[%s70]]
  %s72 = sld [smem:[#allocation0]]
  $region181: #{nets6_forward.1} parent=0
    _
  %s74 = ssub.s32 1, %s72
  %s75 = scalar_select 0, %s74, %s72
  $region1: #{nets6_forward.1} parent=0
    #allocation2 [shape = 'u8[655360]{0}', space=vmem, size = 0xa0000, scoped, tag = 'input window, operand 4, single buffered']
    #allocation3 [shape = 's32[2]{0}', space=sflag, size = 0x8, scoped, tag = 'scoped memory for nets6_forward.1']
    #allocation4 [shape = 's32[2]{0}', space=sflag, size = 0x8, scoped, tag = 'scoped memory for nets6_forward.1']
    #allocation5 [shape = 'u8[131072]{0}', space=vmem, size = 0x20000, scoped, tag = 'input window, operand 5, single buffered']
    #allocation6 [shape = 's32[1]{0}', space=sflag, size = 0x4, scoped, tag = 'scoped memory for nets6_forward.1']
    #allocation7 [shape = 'u8[1024]{0}', space=vmem, size = 0x400, scoped, tag = 'output window, operand 0']
    %76 = vsyncpa [#allocation3], 0
    %77 = vsyncpa [#allocation6], 0
    %78 = vsyncpa [#allocation4], 0
    %s79 = scalar_lea.sflag [#allocation4], 1
    %80 = vsyncpa %s79, 0
    loop: start=0, step=1, limit=4
    $region2: #{nets6_forward.1} parent=1 // loop_pre_header
      _
    $region3: #{nets6_forward.1} parent=1 // loop_header
      %s82 = sphi 0, %s86
      %p83 = scmp.ge.s32.totalorder %s82, 4
      %s92 = sphi 0, %s94
      %s95 = sphi 0, %s92
      %s96 = sphi 0, %s95
      %s112 = sphi 0, %s96
      %s116 = sphi 0, %s116
      %s118 = sphi 0, %s116
      %s119 = sphi 0, %s118
      %s133 = sphi 0, %s119
      %s137 = sphi 0, %s137
      %s139 = sphi 0, %s137
      %s140 = sphi 0, %s139
      %s154 = sphi 0, %s140
      %s158 = sphi 0, %s158
      %s160 = sphi 0, %s158
      %s161 = sphi 0, %s160
      %s175 = sphi 0, %s161
      %s179 = sphi 0, %s179
      %s181 = sphi 0, %s179
      %s182 = sphi 0, %s181
      %s196 = sphi 0, %s182
      %s200 = sphi 0, %s200
      %s202 = sphi 0, %s200
      %s203 = sphi 0, %s202
      %s217 = sphi 0, %s203
      %s221 = sphi 0, %s221
      %s223 = sphi 0, %s221
      %s224 = sphi 0, %s223
      %s238 = sphi 0, %s224
      %s242 = sphi 0, %s242
      %s244 = sphi 0, %s242
      %s245 = sphi 0, %s244
      %s259 = sphi 0, %s245
      %s263 = sphi 0, %s263
      %s265 = sphi 0, %s263
      %s266 = sphi 0, %s265
      %s280 = sphi 0, %s266
      %s284 = sphi 0, %s284
      %s286 = sphi 0, %s284
      %s287 = sphi 0, %s286
      %s301 = sphi 0, %s287
      %s305 = sphi 0, %s305
      %s307 = sphi 0, %s305
      %s308 = sphi 0, %s307
      %s322 = sphi 0, %s308
      %s326 = sphi 0, %s326
      %s328 = sphi 0, %s326
      %s329 = sphi 0, %s328
      %s343 = sphi 0, %s329
      %s347 = sphi 0, %s347
      %s349 = sphi 0, %s347
      %s350 = sphi 0, %s349
      %s364 = sphi 0, %s350
      %s368 = sphi 0, %s368
      %s370 = sphi 0, %s368
      %s371 = sphi 0, %s370
      %s385 = sphi 0, %s371
      %s389 = sphi 0, %s389
      %s391 = sphi 0, %s389
      %s392 = sphi 0, %s391
      %s406 = sphi 0, %s392
      %s410 = sphi 0, %s410
      %s412 = sphi 0, %s410
      %s413 = sphi 0, %s412
      %s427 = sphi 0, %s413
      %s431 = sphi 0, %s431
      %s433 = sphi 0, %s431
      %s434 = sphi 0, %s433
      %s448 = sphi 0, %s434
      %s452 = sphi 0, %s452
      %s454 = sphi 0, %s452
      %s455 = sphi 0, %s454
      %s469 = sphi 0, %s455
      %s473 = sphi 0, %s473
      %s475 = sphi 0, %s473
      %s476 = sphi 0, %s475
      %s490 = sphi 0, %s476
      %s494 = sphi 0, %s494
      %s496 = sphi 0, %s494
      %s497 = sphi 0, %s496
      %s511 = sphi 0, %s497
      %s515 = sphi 0, %s515
      %s517 = sphi 0, %s515
      %s518 = sphi 0, %s517
      %s532 = sphi 0, %s518
      %s536 = sphi 0, %s536
      %s538 = sphi 0, %s536
      %s539 = sphi 0, %s538
      %s553 = sphi 0, %s539
      %s557 = sphi 0, %s557
      %s559 = sphi 0, %s557
      %s560 = sphi 0, %s559
      %s574 = sphi 0, %s560
      %s578 = sphi 0, %s578
      %s580 = sphi 0, %s578
      %s581 = sphi 0, %s580
      %s595 = sphi 0, %s581
      %s599 = sphi 0, %s599
      %s601 = sphi 0, %s599
      %s602 = sphi 0, %s601
      %s616 = sphi 0, %s602
      %s620 = sphi 0, %s620
      %s622 = sphi 0, %s620
      %s623 = sphi 0, %s622
      %s637 = sphi 0, %s623
      %s641 = sphi 0, %s641
      %s643 = sphi 0, %s641
      %s644 = sphi 0, %s643
      %s658 = sphi 0, %s644
      %s662 = sphi 0, %s662
      %s664 = sphi 0, %s662
      %s665 = sphi 0, %s664
      %s679 = sphi 0, %s665
      %s683 = sphi 0, %s683
      %s685 = sphi 0, %s683
      %s686 = sphi 0, %s685
      %s700 = sphi 0, %s686
      %s704 = sphi 0, %s704
      %s706 = sphi 0, %s704
      %s707 = sphi 0, %s706
      %s721 = sphi 0, %s707
      %s725 = sphi 0, %s725
      %s727 = sphi 0, %s725
      %s728 = sphi 0, %s727
      %s742 = sphi 0, %s728
      %s746 = sphi 0, %s746
      %s748 = sphi 0, %s746
      %s749 = sphi 0, %s748
      %s763 = sphi 0, %s749
      %s767 = sphi 0, %s767
      %s769 = sphi 0, %s767
      %s770 = sphi 0, %s769
      %s784 = sphi 0, %s770
      %s788 = sphi 0, %s788
      %s790 = sphi 0, %s788
      %s791 = sphi 0, %s790
      %s805 = sphi 0, %s791
      %s809 = sphi 0, %s809
      %s811 = sphi 0, %s809
      %s812 = sphi 0, %s811
      %s826 = sphi 0, %s812
      %s832 = sphi 0, %s834
      %s835 = sphi 0, %s832
      %s836 = sphi 0, %s835
      %s852 = sphi 0, %s836
    $region4: #{nets6_forward.1} parent=1 // loop_header_branch
      %85 = sbr.rel (%p83) target = $region8
    $region5: #{nets6_forward.1} parent=1 // loop_body
      %s87 = ssub.s32 %s82, 1
      %s88 = ssub.s32 %s82, 2
      %s89 = sadd.s32 %s82, 1
      %s90 = ssub.s32 %s82, %s89
      %p91 = scmp.eq.s32.totalorder %s90, 0
      %s93 = sadd.s32 %s92, 1
      %s94 = scalar_select %p91, %s92, %s93
      %p97 = pneg %p91
      %p98 = scmp.eq.s32.totalorder %s82, 1
      %p99 = por %p97, %p98
      %p100 = scmp.ne.s32.totalorder %s92, %s95
      %p101 = scmp.eq.s32.totalorder %s82, 0
      %p102 = por %p100, %p101
      %p103 = scmp.ne.s32.totalorder %s92, %s95
      %p104 = scmp.eq.s32.totalorder %s87, 1
      %p105 = por %p103, %p104
      %p106 = scmp.ne.s32.totalorder %s95, %s96
      %p107 = scmp.eq.s32.totalorder %s87, 0
      %p108 = por %p106, %p107
      %p109 = scmp.ne.s32.totalorder %s95, %s96
      %p110 = scmp.eq.s32.totalorder %s88, 1
      %p111 = por %p109, %p110
      %p113 = scmp.ne.s32.totalorder %s96, %s112
      %p114 = scmp.eq.s32.totalorder %s88, 0
      %p115 = por %p113, %p114
      %s117 = sadd.s32 %s116, 1
      %p120 = scmp.eq.s32.totalorder %s82, 1
      %p121 = scmp.ne.s32.totalorder %s116, %s118
      %p122 = scmp.eq.s32.totalorder %s82, 0
      %p123 = por %p121, %p122
      %p124 = scmp.ne.s32.totalorder %s116, %s118
      %p125 = scmp.eq.s32.totalorder %s87, 1
      %p126 = por %p124, %p125
      %p127 = scmp.ne.s32.totalorder %s118, %s119
      %p128 = scmp.eq.s32.totalorder %s87, 0
      %p129 = por %p127, %p128
      %p130 = scmp.ne.s32.totalorder %s118, %s119
      %p131 = scmp.eq.s32.totalorder %s88, 1
      %p132 = por %p130, %p131
      %p134 = scmp.ne.s32.totalorder %s119, %s133
      %p135 = scmp.eq.s32.totalorder %s88, 0
      %p136 = por %p134, %p135
      %s138 = sadd.s32 %s137, 1
      %p141 = scmp.eq.s32.totalorder %s82, 1
      %p142 = scmp.ne.s32.totalorder %s137, %s139
      %p143 = scmp.eq.s32.totalorder %s82, 0
      %p144 = por %p142, %p143
      %p145 = scmp.ne.s32.totalorder %s137, %s139
      %p146 = scmp.eq.s32.totalorder %s87, 1
      %p147 = por %p145, %p146
      %p148 = scmp.ne.s32.totalorder %s139, %s140
      %p149 = scmp.eq.s32.totalorder %s87, 0
      %p150 = por %p148, %p149
      %p151 = scmp.ne.s32.totalorder %s139, %s140
      %p152 = scmp.eq.s32.totalorder %s88, 1
      %p153 = por %p151, %p152
      %p155 = scmp.ne.s32.totalorder %s140, %s154
      %p156 = scmp.eq.s32.totalorder %s88, 0
      %p157 = por %p155, %p156
      %s159 = sadd.s32 %s158, 1
      %p162 = scmp.eq.s32.totalorder %s82, 1
      %p163 = scmp.ne.s32.totalorder %s158, %s160
      %p164 = scmp.eq.s32.totalorder %s82, 0
      %p165 = por %p163, %p164
      %p166 = scmp.ne.s32.totalorder %s158, %s160
      %p167 = scmp.eq.s32.totalorder %s87, 1
      %p168 = por %p166, %p167
      %p169 = scmp.ne.s32.totalorder %s160, %s161
      %p170 = scmp.eq.s32.totalorder %s87, 0
      %p171 = por %p169, %p170
      %p172 = scmp.ne.s32.totalorder %s160, %s161
      %p173 = scmp.eq.s32.totalorder %s88, 1
      %p174 = por %p172, %p173
      %p176 = scmp.ne.s32.totalorder %s161, %s175
      %p177 = scmp.eq.s32.totalorder %s88, 0
      %p178 = por %p176, %p177
      %s180 = sadd.s32 %s179, 1
      %p183 = scmp.eq.s32.totalorder %s82, 1
      %p184 = scmp.ne.s32.totalorder %s179, %s181
      %p185 = scmp.eq.s32.totalorder %s82, 0
      %p186 = por %p184, %p185
      %p187 = scmp.ne.s32.totalorder %s179, %s181
      %p188 = scmp.eq.s32.totalorder %s87, 1
      %p189 = por %p187, %p188
      %p190 = scmp.ne.s32.totalorder %s181, %s182
      %p191 = scmp.eq.s32.totalorder %s87, 0
      %p192 = por %p190, %p191
      %p193 = scmp.ne.s32.totalorder %s181, %s182
      %p194 = scmp.eq.s32.totalorder %s88, 1
      %p195 = por %p193, %p194
      %p197 = scmp.ne.s32.totalorder %s182, %s196
      %p198 = scmp.eq.s32.totalorder %s88, 0
      %p199 = por %p197, %p198
      %s201 = sadd.s32 %s200, 1
      %p204 = scmp.eq.s32.totalorder %s82, 1
      %p205 = scmp.ne.s32.totalorder %s200, %s202
      %p206 = scmp.eq.s32.totalorder %s82, 0
      %p207 = por %p205, %p206
      %p208 = scmp.ne.s32.totalorder %s200, %s202
      %p209 = scmp.eq.s32.totalorder %s87, 1
      %p210 = por %p208, %p209
      %p211 = scmp.ne.s32.totalorder %s202, %s203
      %p212 = scmp.eq.s32.totalorder %s87, 0
      %p213 = por %p211, %p212
      %p214 = scmp.ne.s32.totalorder %s202, %s203
      %p215 = scmp.eq.s32.totalorder %s88, 1
      %p216 = por %p214, %p215
      %p218 = scmp.ne.s32.totalorder %s203, %s217
      %p219 = scmp.eq.s32.totalorder %s88, 0
      %p220 = por %p218, %p219
      %s222 = sadd.s32 %s221, 1
      %p225 = scmp.eq.s32.totalorder %s82, 1
      %p226 = scmp.ne.s32.totalorder %s221, %s223
      %p227 = scmp.eq.s32.totalorder %s82, 0
      %p228 = por %p226, %p227
      %p229 = scmp.ne.s32.totalorder %s221, %s223
      %p230 = scmp.eq.s32.totalorder %s87, 1
      %p231 = por %p229, %p230
      %p232 = scmp.ne.s32.totalorder %s223, %s224
      %p233 = scmp.eq.s32.totalorder %s87, 0
      %p234 = por %p232, %p233
      %p235 = scmp.ne.s32.totalorder %s223, %s224
      %p236 = scmp.eq.s32.totalorder %s88, 1
      %p237 = por %p235, %p236
      %p239 = scmp.ne.s32.totalorder %s224, %s238
      %p240 = scmp.eq.s32.totalorder %s88, 0
      %p241 = por %p239, %p240
      %s243 = sadd.s32 %s242, 1
      %p246 = scmp.eq.s32.totalorder %s82, 1
      %p247 = scmp.ne.s32.totalorder %s242, %s244
      %p248 = scmp.eq.s32.totalorder %s82, 0
      %p249 = por %p247, %p248
      %p250 = scmp.ne.s32.totalorder %s242, %s244
      %p251 = scmp.eq.s32.totalorder %s87, 1
      %p252 = por %p250, %p251
      %p253 = scmp.ne.s32.totalorder %s244, %s245
      %p254 = scmp.eq.s32.totalorder %s87, 0
      %p255 = por %p253, %p254
      %p256 = scmp.ne.s32.totalorder %s244, %s245
      %p257 = scmp.eq.s32.totalorder %s88, 1
      %p258 = por %p256, %p257
      %p260 = scmp.ne.s32.totalorder %s245, %s259
      %p261 = scmp.eq.s32.totalorder %s88, 0
      %p262 = por %p260, %p261
      %s264 = sadd.s32 %s263, 1
      %p267 = scmp.eq.s32.totalorder %s82, 1
      %p268 = scmp.ne.s32.totalorder %s263, %s265
      %p269 = scmp.eq.s32.totalorder %s82, 0
      %p270 = por %p268, %p269
      %p271 = scmp.ne.s32.totalorder %s263, %s265
      %p272 = scmp.eq.s32.totalorder %s87, 1
      %p273 = por %p271, %p272
      %p274 = scmp.ne.s32.totalorder %s265, %s266
      %p275 = scmp.eq.s32.totalorder %s87, 0
      %p276 = por %p274, %p275
      %p277 = scmp.ne.s32.totalorder %s265, %s266
      %p278 = scmp.eq.s32.totalorder %s88, 1
      %p279 = por %p277, %p278
      %p281 = scmp.ne.s32.totalorder %s266, %s280
      %p282 = scmp.eq.s32.totalorder %s88, 0
      %p283 = por %p281, %p282
      %s285 = sadd.s32 %s284, 1
      %p288 = scmp.eq.s32.totalorder %s82, 1
      %p289 = scmp.ne.s32.totalorder %s284, %s286
      %p290 = scmp.eq.s32.totalorder %s82, 0
      %p291 = por %p289, %p290
      %p292 = scmp.ne.s32.totalorder %s284, %s286
      %p293 = scmp.eq.s32.totalorder %s87, 1
      %p294 = por %p292, %p293
      %p295 = scmp.ne.s32.totalorder %s286, %s287
      %p296 = scmp.eq.s32.totalorder %s87, 0
      %p297 = por %p295, %p296
      %p298 = scmp.ne.s32.totalorder %s286, %s287
      %p299 = scmp.eq.s32.totalorder %s88, 1
      %p300 = por %p298, %p299
      %p302 = scmp.ne.s32.totalorder %s287, %s301
      %p303 = scmp.eq.s32.totalorder %s88, 0
      %p304 = por %p302, %p303
      %s306 = sadd.s32 %s305, 1
      %p309 = scmp.eq.s32.totalorder %s82, 1
      %p310 = scmp.ne.s32.totalorder %s305, %s307
      %p311 = scmp.eq.s32.totalorder %s82, 0
      %p312 = por %p310, %p311
      %p313 = scmp.ne.s32.totalorder %s305, %s307
      %p314 = scmp.eq.s32.totalorder %s87, 1
      %p315 = por %p313, %p314
      %p316 = scmp.ne.s32.totalorder %s307, %s308
      %p317 = scmp.eq.s32.totalorder %s87, 0
      %p318 = por %p316, %p317
      %p319 = scmp.ne.s32.totalorder %s307, %s308
      %p320 = scmp.eq.s32.totalorder %s88, 1
      %p321 = por %p319, %p320
      %p323 = scmp.ne.s32.totalorder %s308, %s322
      %p324 = scmp.eq.s32.totalorder %s88, 0
      %p325 = por %p323, %p324
      %s327 = sadd.s32 %s326, 1
      %p330 = scmp.eq.s32.totalorder %s82, 1
      %p331 = scmp.ne.s32.totalorder %s326, %s328
      %p332 = scmp.eq.s32.totalorder %s82, 0
      %p333 = por %p331, %p332
      %p334 = scmp.ne.s32.totalorder %s326, %s328
      %p335 = scmp.eq.s32.totalorder %s87, 1
      %p336 = por %p334, %p335
      %p337 = scmp.ne.s32.totalorder %s328, %s329
      %p338 = scmp.eq.s32.totalorder %s87, 0
      %p339 = por %p337, %p338
      %p340 = scmp.ne.s32.totalorder %s328, %s329
      %p341 = scmp.eq.s32.totalorder %s88, 1
      %p342 = por %p340, %p341
      %p344 = scmp.ne.s32.totalorder %s329, %s343
      %p345 = scmp.eq.s32.totalorder %s88, 0
      %p346 = por %p344, %p345
      %s348 = sadd.s32 %s347, 1
      %p351 = scmp.eq.s32.totalorder %s82, 1
      %p352 = scmp.ne.s32.totalorder %s347, %s349
      %p353 = scmp.eq.s32.totalorder %s82, 0
      %p354 = por %p352, %p353
      %p355 = scmp.ne.s32.totalorder %s347, %s349
      %p356 = scmp.eq.s32.totalorder %s87, 1
      %p357 = por %p355, %p356
      %p358 = scmp.ne.s32.totalorder %s349, %s350
      %p359 = scmp.eq.s32.totalorder %s87, 0
      %p360 = por %p358, %p359
      %p361 = scmp.ne.s32.totalorder %s349, %s350
      %p362 = scmp.eq.s32.totalorder %s88, 1
      %p363 = por %p361, %p362
      %p365 = scmp.ne.s32.totalorder %s350, %s364
      %p366 = scmp.eq.s32.totalorder %s88, 0
      %p367 = por %p365, %p366
      %s369 = sadd.s32 %s368, 1
      %p372 = scmp.eq.s32.totalorder %s82, 1
      %p373 = scmp.ne.s32.totalorder %s368, %s370
      %p374 = scmp.eq.s32.totalorder %s82, 0
      %p375 = por %p373, %p374
      %p376 = scmp.ne.s32.totalorder %s368, %s370
      %p377 = scmp.eq.s32.totalorder %s87, 1
      %p378 = por %p376, %p377
      %p379 = scmp.ne.s32.totalorder %s370, %s371
      %p380 = scmp.eq.s32.totalorder %s87, 0
      %p381 = por %p379, %p380
      %p382 = scmp.ne.s32.totalorder %s370, %s371
      %p383 = scmp.eq.s32.totalorder %s88, 1
      %p384 = por %p382, %p383
      %p386 = scmp.ne.s32.totalorder %s371, %s385
      %p387 = scmp.eq.s32.totalorder %s88, 0
      %p388 = por %p386, %p387
      %s390 = sadd.s32 %s389, 1
      %p393 = scmp.eq.s32.totalorder %s82, 1
      %p394 = scmp.ne.s32.totalorder %s389, %s391
      %p395 = scmp.eq.s32.totalorder %s82, 0
      %p396 = por %p394, %p395
      %p397 = scmp.ne.s32.totalorder %s389, %s391
      %p398 = scmp.eq.s32.totalorder %s87, 1
      %p399 = por %p397, %p398
      %p400 = scmp.ne.s32.totalorder %s391, %s392
      %p401 = scmp.eq.s32.totalorder %s87, 0
      %p402 = por %p400, %p401
      %p403 = scmp.ne.s32.totalorder %s391, %s392
      %p404 = scmp.eq.s32.totalorder %s88, 1
      %p405 = por %p403, %p404
      %p407 = scmp.ne.s32.totalorder %s392, %s406
      %p408 = scmp.eq.s32.totalorder %s88, 0
      %p409 = por %p407, %p408
      %s411 = sadd.s32 %s410, 1
      %p414 = scmp.eq.s32.totalorder %s82, 1
      %p415 = scmp.ne.s32.totalorder %s410, %s412
      %p416 = scmp.eq.s32.totalorder %s82, 0
      %p417 = por %p415, %p416
      %p418 = scmp.ne.s32.totalorder %s410, %s412
      %p419 = scmp.eq.s32.totalorder %s87, 1
      %p420 = por %p418, %p419
      %p421 = scmp.ne.s32.totalorder %s412, %s413
      %p422 = scmp.eq.s32.totalorder %s87, 0
      %p423 = por %p421, %p422
      %p424 = scmp.ne.s32.totalorder %s412, %s413
      %p425 = scmp.eq.s32.totalorder %s88, 1
      %p426 = por %p424, %p425
      %p428 = scmp.ne.s32.totalorder %s413, %s427
      %p429 = scmp.eq.s32.totalorder %s88, 0
      %p430 = por %p428, %p429
      %s432 = sadd.s32 %s431, 1
      %p435 = scmp.eq.s32.totalorder %s82, 1
      %p436 = scmp.ne.s32.totalorder %s431, %s433
      %p437 = scmp.eq.s32.totalorder %s82, 0
      %p438 = por %p436, %p437
      %p439 = scmp.ne.s32.totalorder %s431, %s433
      %p440 = scmp.eq.s32.totalorder %s87, 1
      %p441 = por %p439, %p440
      %p442 = scmp.ne.s32.totalorder %s433, %s434
      %p443 = scmp.eq.s32.totalorder %s87, 0
      %p444 = por %p442, %p443
      %p445 = scmp.ne.s32.totalorder %s433, %s434
      %p446 = scmp.eq.s32.totalorder %s88, 1
      %p447 = por %p445, %p446
      %p449 = scmp.ne.s32.totalorder %s434, %s448
      %p450 = scmp.eq.s32.totalorder %s88, 0
      %p451 = por %p449, %p450
      %s453 = sadd.s32 %s452, 1
      %p456 = scmp.eq.s32.totalorder %s82, 1
      %p457 = scmp.ne.s32.totalorder %s452, %s454
      %p458 = scmp.eq.s32.totalorder %s82, 0
      %p459 = por %p457, %p458
      %p460 = scmp.ne.s32.totalorder %s452, %s454
      %p461 = scmp.eq.s32.totalorder %s87, 1
      %p462 = por %p460, %p461
      %p463 = scmp.ne.s32.totalorder %s454, %s455
      %p464 = scmp.eq.s32.totalorder %s87, 0
      %p465 = por %p463, %p464
      %p466 = scmp.ne.s32.totalorder %s454, %s455
      %p467 = scmp.eq.s32.totalorder %s88, 1
      %p468 = por %p466, %p467
      %p470 = scmp.ne.s32.totalorder %s455, %s469
      %p471 = scmp.eq.s32.totalorder %s88, 0
      %p472 = por %p470, %p471
      %s474 = sadd.s32 %s473, 1
      %p477 = scmp.eq.s32.totalorder %s82, 1
      %p478 = scmp.ne.s32.totalorder %s473, %s475
      %p479 = scmp.eq.s32.totalorder %s82, 0
      %p480 = por %p478, %p479
      %p481 = scmp.ne.s32.totalorder %s473, %s475
      %p482 = scmp.eq.s32.totalorder %s87, 1
      %p483 = por %p481, %p482
      %p484 = scmp.ne.s32.totalorder %s475, %s476
      %p485 = scmp.eq.s32.totalorder %s87, 0
      %p486 = por %p484, %p485
      %p487 = scmp.ne.s32.totalorder %s475, %s476
      %p488 = scmp.eq.s32.totalorder %s88, 1
      %p489 = por %p487, %p488
      %p491 = scmp.ne.s32.totalorder %s476, %s490
      %p492 = scmp.eq.s32.totalorder %s88, 0
      %p493 = por %p491, %p492
      %s495 = sadd.s32 %s494, 1
      %p498 = scmp.eq.s32.totalorder %s82, 1
      %p499 = scmp.ne.s32.totalorder %s494, %s496
      %p500 = scmp.eq.s32.totalorder %s82, 0
      %p501 = por %p499, %p500
      %p502 = scmp.ne.s32.totalorder %s494, %s496
      %p503 = scmp.eq.s32.totalorder %s87, 1
      %p504 = por %p502, %p503
      %p505 = scmp.ne.s32.totalorder %s496, %s497
      %p506 = scmp.eq.s32.totalorder %s87, 0
      %p507 = por %p505, %p506
      %p508 = scmp.ne.s32.totalorder %s496, %s497
      %p509 = scmp.eq.s32.totalorder %s88, 1
      %p510 = por %p508, %p509
      %p512 = scmp.ne.s32.totalorder %s497, %s511
      %p513 = scmp.eq.s32.totalorder %s88, 0
      %p514 = por %p512, %p513
      %s516 = sadd.s32 %s515, 1
      %p519 = scmp.eq.s32.totalorder %s82, 1
      %p520 = scmp.ne.s32.totalorder %s515, %s517
      %p521 = scmp.eq.s32.totalorder %s82, 0
      %p522 = por %p520, %p521
      %p523 = scmp.ne.s32.totalorder %s515, %s517
      %p524 = scmp.eq.s32.totalorder %s87, 1
      %p525 = por %p523, %p524
      %p526 = scmp.ne.s32.totalorder %s517, %s518
      %p527 = scmp.eq.s32.totalorder %s87, 0
      %p528 = por %p526, %p527
      %p529 = scmp.ne.s32.totalorder %s517, %s518
      %p530 = scmp.eq.s32.totalorder %s88, 1
      %p531 = por %p529, %p530
      %p533 = scmp.ne.s32.totalorder %s518, %s532
      %p534 = scmp.eq.s32.totalorder %s88, 0
      %p535 = por %p533, %p534
      %s537 = sadd.s32 %s536, 1
      %p540 = scmp.eq.s32.totalorder %s82, 1
      %p541 = scmp.ne.s32.totalorder %s536, %s538
      %p542 = scmp.eq.s32.totalorder %s82, 0
      %p543 = por %p541, %p542
      %p544 = scmp.ne.s32.totalorder %s536, %s538
      %p545 = scmp.eq.s32.totalorder %s87, 1
      %p546 = por %p544, %p545
      %p547 = scmp.ne.s32.totalorder %s538, %s539
      %p548 = scmp.eq.s32.totalorder %s87, 0
      %p549 = por %p547, %p548
      %p550 = scmp.ne.s32.totalorder %s538, %s539
      %p551 = scmp.eq.s32.totalorder %s88, 1
      %p552 = por %p550, %p551
      %p554 = scmp.ne.s32.totalorder %s539, %s553
      %p555 = scmp.eq.s32.totalorder %s88, 0
      %p556 = por %p554, %p555
      %s558 = sadd.s32 %s557, 1
      %p561 = scmp.eq.s32.totalorder %s82, 1
      %p562 = scmp.ne.s32.totalorder %s557, %s559
      %p563 = scmp.eq.s32.totalorder %s82, 0
      %p564 = por %p562, %p563
      %p565 = scmp.ne.s32.totalorder %s557, %s559
      %p566 = scmp.eq.s32.totalorder %s87, 1
      %p567 = por %p565, %p566
      %p568 = scmp.ne.s32.totalorder %s559, %s560
      %p569 = scmp.eq.s32.totalorder %s87, 0
      %p570 = por %p568, %p569
      %p571 = scmp.ne.s32.totalorder %s559, %s560
      %p572 = scmp.eq.s32.totalorder %s88, 1
      %p573 = por %p571, %p572
      %p575 = scmp.ne.s32.totalorder %s560, %s574
      %p576 = scmp.eq.s32.totalorder %s88, 0
      %p577 = por %p575, %p576
      %s579 = sadd.s32 %s578, 1
      %p582 = scmp.eq.s32.totalorder %s82, 1
      %p583 = scmp.ne.s32.totalorder %s578, %s580
      %p584 = scmp.eq.s32.totalorder %s82, 0
      %p585 = por %p583, %p584
      %p586 = scmp.ne.s32.totalorder %s578, %s580
      %p587 = scmp.eq.s32.totalorder %s87, 1
      %p588 = por %p586, %p587
      %p589 = scmp.ne.s32.totalorder %s580, %s581
      %p590 = scmp.eq.s32.totalorder %s87, 0
      %p591 = por %p589, %p590
      %p592 = scmp.ne.s32.totalorder %s580, %s581
      %p593 = scmp.eq.s32.totalorder %s88, 1
      %p594 = por %p592, %p593
      %p596 = scmp.ne.s32.totalorder %s581, %s595
      %p597 = scmp.eq.s32.totalorder %s88, 0
      %p598 = por %p596, %p597
      %s600 = sadd.s32 %s599, 1
      %p603 = scmp.eq.s32.totalorder %s82, 1
      %p604 = scmp.ne.s32.totalorder %s599, %s601
      %p605 = scmp.eq.s32.totalorder %s82, 0
      %p606 = por %p604, %p605
      %p607 = scmp.ne.s32.totalorder %s599, %s601
      %p608 = scmp.eq.s32.totalorder %s87, 1
      %p609 = por %p607, %p608
      %p610 = scmp.ne.s32.totalorder %s601, %s602
      %p611 = scmp.eq.s32.totalorder %s87, 0
      %p612 = por %p610, %p611
      %p613 = scmp.ne.s32.totalorder %s601, %s602
      %p614 = scmp.eq.s32.totalorder %s88, 1
      %p615 = por %p613, %p614
      %p617 = scmp.ne.s32.totalorder %s602, %s616
      %p618 = scmp.eq.s32.totalorder %s88, 0
      %p619 = por %p617, %p618
      %s621 = sadd.s32 %s620, 1
      %p624 = scmp.eq.s32.totalorder %s82, 1
      %p625 = scmp.ne.s32.totalorder %s620, %s622
      %p626 = scmp.eq.s32.totalorder %s82, 0
      %p627 = por %p625, %p626
      %p628 = scmp.ne.s32.totalorder %s620, %s622
      %p629 = scmp.eq.s32.totalorder %s87, 1
      %p630 = por %p628, %p629
      %p631 = scmp.ne.s32.totalorder %s622, %s623
      %p632 = scmp.eq.s32.totalorder %s87, 0
      %p633 = por %p631, %p632
      %p634 = scmp.ne.s32.totalorder %s622, %s623
      %p635 = scmp.eq.s32.totalorder %s88, 1
      %p636 = por %p634, %p635
      %p638 = scmp.ne.s32.totalorder %s623, %s637
      %p639 = scmp.eq.s32.totalorder %s88, 0
      %p640 = por %p638, %p639
      %s642 = sadd.s32 %s641, 1
      %p645 = scmp.eq.s32.totalorder %s82, 1
      %p646 = scmp.ne.s32.totalorder %s641, %s643
      %p647 = scmp.eq.s32.totalorder %s82, 0
      %p648 = por %p646, %p647
      %p649 = scmp.ne.s32.totalorder %s641, %s643
      %p650 = scmp.eq.s32.totalorder %s87, 1
      %p651 = por %p649, %p650
      %p652 = scmp.ne.s32.totalorder %s643, %s644
      %p653 = scmp.eq.s32.totalorder %s87, 0
      %p654 = por %p652, %p653
      %p655 = scmp.ne.s32.totalorder %s643, %s644
      %p656 = scmp.eq.s32.totalorder %s88, 1
      %p657 = por %p655, %p656
      %p659 = scmp.ne.s32.totalorder %s644, %s658
      %p660 = scmp.eq.s32.totalorder %s88, 0
      %p661 = por %p659, %p660
      %s663 = sadd.s32 %s662, 1
      %p666 = scmp.eq.s32.totalorder %s82, 1
      %p667 = scmp.ne.s32.totalorder %s662, %s664
      %p668 = scmp.eq.s32.totalorder %s82, 0
      %p669 = por %p667, %p668
      %p670 = scmp.ne.s32.totalorder %s662, %s664
      %p671 = scmp.eq.s32.totalorder %s87, 1
      %p672 = por %p670, %p671
      %p673 = scmp.ne.s32.totalorder %s664, %s665
      %p674 = scmp.eq.s32.totalorder %s87, 0
      %p675 = por %p673, %p674
      %p676 = scmp.ne.s32.totalorder %s664, %s665
      %p677 = scmp.eq.s32.totalorder %s88, 1
      %p678 = por %p676, %p677
      %p680 = scmp.ne.s32.totalorder %s665, %s679
      %p681 = scmp.eq.s32.totalorder %s88, 0
      %p682 = por %p680, %p681
      %s684 = sadd.s32 %s683, 1
      %p687 = scmp.eq.s32.totalorder %s82, 1
      %p688 = scmp.ne.s32.totalorder %s683, %s685
      %p689 = scmp.eq.s32.totalorder %s82, 0
      %p690 = por %p688, %p689
      %p691 = scmp.ne.s32.totalorder %s683, %s685
      %p692 = scmp.eq.s32.totalorder %s87, 1
      %p693 = por %p691, %p692
      %p694 = scmp.ne.s32.totalorder %s685, %s686
      %p695 = scmp.eq.s32.totalorder %s87, 0
      %p696 = por %p694, %p695
      %p697 = scmp.ne.s32.totalorder %s685, %s686
      %p698 = scmp.eq.s32.totalorder %s88, 1
      %p699 = por %p697, %p698
      %p701 = scmp.ne.s32.totalorder %s686, %s700
      %p702 = scmp.eq.s32.totalorder %s88, 0
      %p703 = por %p701, %p702
      %s705 = sadd.s32 %s704, 1
      %p708 = scmp.eq.s32.totalorder %s82, 1
      %p709 = scmp.ne.s32.totalorder %s704, %s706
      %p710 = scmp.eq.s32.totalorder %s82, 0
      %p711 = por %p709, %p710
      %p712 = scmp.ne.s32.totalorder %s704, %s706
      %p713 = scmp.eq.s32.totalorder %s87, 1
      %p714 = por %p712, %p713
      %p715 = scmp.ne.s32.totalorder %s706, %s707
      %p716 = scmp.eq.s32.totalorder %s87, 0
      %p717 = por %p715, %p716
      %p718 = scmp.ne.s32.totalorder %s706, %s707
      %p719 = scmp.eq.s32.totalorder %s88, 1
      %p720 = por %p718, %p719
      %p722 = scmp.ne.s32.totalorder %s707, %s721
      %p723 = scmp.eq.s32.totalorder %s88, 0
      %p724 = por %p722, %p723
      %s726 = sadd.s32 %s725, 1
      %p729 = scmp.eq.s32.totalorder %s82, 1
      %p730 = scmp.ne.s32.totalorder %s725, %s727
      %p731 = scmp.eq.s32.totalorder %s82, 0
      %p732 = por %p730, %p731
      %p733 = scmp.ne.s32.totalorder %s725, %s727
      %p734 = scmp.eq.s32.totalorder %s87, 1
      %p735 = por %p733, %p734
      %p736 = scmp.ne.s32.totalorder %s727, %s728
      %p737 = scmp.eq.s32.totalorder %s87, 0
      %p738 = por %p736, %p737
      %p739 = scmp.ne.s32.totalorder %s727, %s728
      %p740 = scmp.eq.s32.totalorder %s88, 1
      %p741 = por %p739, %p740
      %p743 = scmp.ne.s32.totalorder %s728, %s742
      %p744 = scmp.eq.s32.totalorder %s88, 0
      %p745 = por %p743, %p744
      %s747 = sadd.s32 %s746, 1
      %p750 = scmp.eq.s32.totalorder %s82, 1
      %p751 = scmp.ne.s32.totalorder %s746, %s748
      %p752 = scmp.eq.s32.totalorder %s82, 0
      %p753 = por %p751, %p752
      %p754 = scmp.ne.s32.totalorder %s746, %s748
      %p755 = scmp.eq.s32.totalorder %s87, 1
      %p756 = por %p754, %p755
      %p757 = scmp.ne.s32.totalorder %s748, %s749
      %p758 = scmp.eq.s32.totalorder %s87, 0
      %p759 = por %p757, %p758
      %p760 = scmp.ne.s32.totalorder %s748, %s749
      %p761 = scmp.eq.s32.totalorder %s88, 1
      %p762 = por %p760, %p761
      %p764 = scmp.ne.s32.totalorder %s749, %s763
      %p765 = scmp.eq.s32.totalorder %s88, 0
      %p766 = por %p764, %p765
      %s768 = sadd.s32 %s767, 1
      %p771 = scmp.eq.s32.totalorder %s82, 1
      %p772 = scmp.ne.s32.totalorder %s767, %s769
      %p773 = scmp.eq.s32.totalorder %s82, 0
      %p774 = por %p772, %p773
      %p775 = scmp.ne.s32.totalorder %s767, %s769
      %p776 = scmp.eq.s32.totalorder %s87, 1
      %p777 = por %p775, %p776
      %p778 = scmp.ne.s32.totalorder %s769, %s770
      %p779 = scmp.eq.s32.totalorder %s87, 0
      %p780 = por %p778, %p779
      %p781 = scmp.ne.s32.totalorder %s769, %s770
      %p782 = scmp.eq.s32.totalorder %s88, 1
      %p783 = por %p781, %p782
      %p785 = scmp.ne.s32.totalorder %s770, %s784
      %p786 = scmp.eq.s32.totalorder %s88, 0
      %p787 = por %p785, %p786
      %s789 = sadd.s32 %s788, 1
      %p792 = scmp.eq.s32.totalorder %s82, 1
      %p793 = scmp.ne.s32.totalorder %s788, %s790
      %p794 = scmp.eq.s32.totalorder %s82, 0
      %p795 = por %p793, %p794
      %p796 = scmp.ne.s32.totalorder %s788, %s790
      %p797 = scmp.eq.s32.totalorder %s87, 1
      %p798 = por %p796, %p797
      %p799 = scmp.ne.s32.totalorder %s790, %s791
      %p800 = scmp.eq.s32.totalorder %s87, 0
      %p801 = por %p799, %p800
      %p802 = scmp.ne.s32.totalorder %s790, %s791
      %p803 = scmp.eq.s32.totalorder %s88, 1
      %p804 = por %p802, %p803
      %p806 = scmp.ne.s32.totalorder %s791, %s805
      %p807 = scmp.eq.s32.totalorder %s88, 0
      %p808 = por %p806, %p807
      %s810 = sadd.s32 %s809, 1
      %p813 = scmp.eq.s32.totalorder %s82, 1
      %p814 = scmp.ne.s32.totalorder %s809, %s811
      %p815 = scmp.eq.s32.totalorder %s82, 0
      %p816 = por %p814, %p815
      %p817 = scmp.ne.s32.totalorder %s809, %s811
      %p818 = scmp.eq.s32.totalorder %s87, 1
      %p819 = por %p817, %p818
      %p820 = scmp.ne.s32.totalorder %s811, %s812
      %p821 = scmp.eq.s32.totalorder %s87, 0
      %p822 = por %p820, %p821
      %p823 = scmp.ne.s32.totalorder %s811, %s812
      %p824 = scmp.eq.s32.totalorder %s88, 1
      %p825 = por %p823, %p824
      %p827 = scmp.ne.s32.totalorder %s812, %s826
      %p828 = scmp.eq.s32.totalorder %s88, 0
      %p829 = por %p827, %p828
      %s830 = ssub.s32 %s82, %s89
      %p831 = scmp.eq.s32.totalorder %s830, 0
      %s833 = sadd.s32 %s832, 1
      %s834 = scalar_select %p831, %s832, %s833
      %p837 = pneg %p831
      %p838 = scmp.eq.s32.totalorder %s82, 1
      %p839 = por %p837, %p838
      %p840 = scmp.ne.s32.totalorder %s832, %s835
      %p841 = scmp.eq.s32.totalorder %s82, 0
      %p842 = por %p840, %p841
      %p843 = scmp.ne.s32.totalorder %s832, %s835
      %p844 = scmp.eq.s32.totalorder %s87, 1
      %p845 = por %p843, %p844
      %p846 = scmp.ne.s32.totalorder %s835, %s836
      %p847 = scmp.eq.s32.totalorder %s87, 0
      %p848 = por %p846, %p847
      %p849 = scmp.ne.s32.totalorder %s835, %s836
      %p850 = scmp.eq.s32.totalorder %s88, 1
      %p851 = por %p849, %p850
      %p853 = scmp.ne.s32.totalorder %s836, %s852
      %p854 = scmp.eq.s32.totalorder %s88, 0
      %p855 = por %p853, %p854
      %p856 = scmp.le.s32.totalorder 1, %s82
      %p857 = scmp.lt.s32.totalorder %s82, 3
      %p858 = pnand %p856, %p857
      %p859 = pneg %p858
      // Predicated region
      $region9: #{nets6_forward.1} parent=5 // pred_check
        _
      $region10: #{nets6_forward.1} parent=5 // pred_check_branch
        %861 = sbr.rel (%p858) target = $region12
      $region11: #{nets6_forward.1} parent=5 // pred_region
        %s862 = ssub.s32 %s82, 1
        // Predicated region
        $region13: #{nets6_forward.1} parent=11 // pred_check
          %p863 = pneg %p129
        $region14: #{nets6_forward.1} parent=11 // pred_check_branch
          %865 = sbr.rel (%p863) target = $region16
        $region15: #{nets6_forward.1} parent=11 // pred_region
          _
        $region16: #{nets6_forward.1} parent=11 // pred_fallthru
          _
        // Predicated region
        $region17: #{nets6_forward.1} parent=11 // pred_check
          %p866 = pneg %p150
        $region18: #{nets6_forward.1} parent=11 // pred_check_branch
          %868 = sbr.rel (%p866) target = $region20
        $region19: #{nets6_forward.1} parent=11 // pred_region
          _
        $region20: #{nets6_forward.1} parent=11 // pred_fallthru
          _
        // Predicated region
        $region21: #{nets6_forward.1} parent=11 // pred_check
          %p869 = pneg %p171
        $region22: #{nets6_forward.1} parent=11 // pred_check_branch
          %871 = sbr.rel (%p869) target = $region24
        $region23: #{nets6_forward.1} parent=11 // pred_region
          _
        $region24: #{nets6_forward.1} parent=11 // pred_fallthru
          _
        // Predicated region
        $region25: #{nets6_forward.1} parent=11 // pred_check
          %p872 = pneg %p192
        $region26: #{nets6_forward.1} parent=11 // pred_check_branch
          %874 = sbr.rel (%p872) target = $region28
        $region27: #{nets6_forward.1} parent=11 // pred_region
          %876 = vsyncadd [#allocation3], 0
          %s877 = sshll.u32 %s9, 4
          %s878 = int_to_ptr.hbm [resolvable:$true] %s877
          %s879 = sshll.u32 [#allocation2], 4
          %s880 = int_to_ptr.vmem [resolvable:$true] %s879
          %885 = dma.hbm_to_vmem [thread:$0]  %s878, 20480, %s880, [#allocation3], 256, 256, 16
        $region28: #{nets6_forward.1} parent=11 // pred_fallthru
          _
        // Predicated region
        $region29: #{nets6_forward.1} parent=11 // pred_check
          %p886 = pneg %p213
        $region30: #{nets6_forward.1} parent=11 // pred_check_branch
          %888 = sbr.rel (%p886) target = $region32
        $region31: #{nets6_forward.1} parent=11 // pred_region
          %890 = vsyncadd [#allocation6], 0
          %s891 = sshll.u32 %s11, 4
          %s892 = int_to_ptr.hbm [resolvable:$true] %s891
          %s893 = sshll.u32 [#allocation5], 4
          %s894 = int_to_ptr.vmem [resolvable:$true] %s893
          %899 = dma.hbm_to_vmem [thread:$0]  %s892, 4096, %s894, [#allocation6], 128, 128, 8
        $region32: #{nets6_forward.1} parent=11 // pred_fallthru
          _
        // Predicated region
        $region33: #{nets6_forward.1} parent=11 // pred_check
          %p900 = pneg %p234
        $region34: #{nets6_forward.1} parent=11 // pred_check_branch
          %902 = sbr.rel (%p900) target = $region36
        $region35: #{nets6_forward.1} parent=11 // pred_region
          _
        $region36: #{nets6_forward.1} parent=11 // pred_fallthru
          _
        // Predicated region
        $region37: #{nets6_forward.1} parent=11 // pred_check
          %p903 = pneg %p255
        $region38: #{nets6_forward.1} parent=11 // pred_check_branch
          %905 = sbr.rel (%p903) target = $region40
        $region39: #{nets6_forward.1} parent=11 // pred_region
          _
        $region40: #{nets6_forward.1} parent=11 // pred_fallthru
          _
        // Predicated region
        $region41: #{nets6_forward.1} parent=11 // pred_check
          %p906 = pneg %p276
        $region42: #{nets6_forward.1} parent=11 // pred_check_branch
          %908 = sbr.rel (%p906) target = $region44
        $region43: #{nets6_forward.1} parent=11 // pred_region
          _
        $region44: #{nets6_forward.1} parent=11 // pred_fallthru
          _
        // Predicated region
        $region45: #{nets6_forward.1} parent=11 // pred_check
          %p909 = pneg %p297
        $region46: #{nets6_forward.1} parent=11 // pred_check_branch
          %911 = sbr.rel (%p909) target = $region48
        $region47: #{nets6_forward.1} parent=11 // pred_region
          _
        $region48: #{nets6_forward.1} parent=11 // pred_fallthru
          _
        // Predicated region
        $region49: #{nets6_forward.1} parent=11 // pred_check
          %p912 = pneg %p318
        $region50: #{nets6_forward.1} parent=11 // pred_check_branch
          %914 = sbr.rel (%p912) target = $region52
        $region51: #{nets6_forward.1} parent=11 // pred_region
          _
        $region52: #{nets6_forward.1} parent=11 // pred_fallthru
          _
        // Predicated region
        $region53: #{nets6_forward.1} parent=11 // pred_check
          %p915 = pneg %p339
        $region54: #{nets6_forward.1} parent=11 // pred_check_branch
          %917 = sbr.rel (%p915) target = $region56
        $region55: #{nets6_forward.1} parent=11 // pred_region
          _
        $region56: #{nets6_forward.1} parent=11 // pred_fallthru
          _
        // Predicated region
        $region57: #{nets6_forward.1} parent=11 // pred_check
          %p918 = pneg %p360
        $region58: #{nets6_forward.1} parent=11 // pred_check_branch
          %920 = sbr.rel (%p918) target = $region60
        $region59: #{nets6_forward.1} parent=11 // pred_region
          _
        $region60: #{nets6_forward.1} parent=11 // pred_fallthru
          _
        // Predicated region
        $region61: #{nets6_forward.1} parent=11 // pred_check
          %p921 = pneg %p381
        $region62: #{nets6_forward.1} parent=11 // pred_check_branch
          %923 = sbr.rel (%p921) target = $region64
        $region63: #{nets6_forward.1} parent=11 // pred_region
          _
        $region64: #{nets6_forward.1} parent=11 // pred_fallthru
          _
        // Predicated region
        $region65: #{nets6_forward.1} parent=11 // pred_check
          %p924 = pneg %p402
        $region66: #{nets6_forward.1} parent=11 // pred_check_branch
          %926 = sbr.rel (%p924) target = $region68
        $region67: #{nets6_forward.1} parent=11 // pred_region
          _
        $region68: #{nets6_forward.1} parent=11 // pred_fallthru
          _
        // Predicated region
        $region69: #{nets6_forward.1} parent=11 // pred_check
          %p927 = pneg %p423
        $region70: #{nets6_forward.1} parent=11 // pred_check_branch
          %929 = sbr.rel (%p927) target = $region72
        $region71: #{nets6_forward.1} parent=11 // pred_region
          _
        $region72: #{nets6_forward.1} parent=11 // pred_fallthru
          _
        // Predicated region
        $region73: #{nets6_forward.1} parent=11 // pred_check
          %p930 = pneg %p444
        $region74: #{nets6_forward.1} parent=11 // pred_check_branch
          %932 = sbr.rel (%p930) target = $region76
        $region75: #{nets6_forward.1} parent=11 // pred_region
          _
        $region76: #{nets6_forward.1} parent=11 // pred_fallthru
          _
        // Predicated region
        $region77: #{nets6_forward.1} parent=11 // pred_check
          %p933 = pneg %p465
        $region78: #{nets6_forward.1} parent=11 // pred_check_branch
          %935 = sbr.rel (%p933) target = $region80
        $region79: #{nets6_forward.1} parent=11 // pred_region
          _
        $region80: #{nets6_forward.1} parent=11 // pred_fallthru
          _
        // Predicated region
        $region81: #{nets6_forward.1} parent=11 // pred_check
          %p936 = pneg %p486
        $region82: #{nets6_forward.1} parent=11 // pred_check_branch
          %938 = sbr.rel (%p936) target = $region84
        $region83: #{nets6_forward.1} parent=11 // pred_region
          _
        $region84: #{nets6_forward.1} parent=11 // pred_fallthru
          _
        // Predicated region
        $region85: #{nets6_forward.1} parent=11 // pred_check
          %p939 = pneg %p507
        $region86: #{nets6_forward.1} parent=11 // pred_check_branch
          %941 = sbr.rel (%p939) target = $region88
        $region87: #{nets6_forward.1} parent=11 // pred_region
          _
        $region88: #{nets6_forward.1} parent=11 // pred_fallthru
          _
        // Predicated region
        $region89: #{nets6_forward.1} parent=11 // pred_check
          %p942 = pneg %p528
        $region90: #{nets6_forward.1} parent=11 // pred_check_branch
          %944 = sbr.rel (%p942) target = $region92
        $region91: #{nets6_forward.1} parent=11 // pred_region
          _
        $region92: #{nets6_forward.1} parent=11 // pred_fallthru
          _
        // Predicated region
        $region93: #{nets6_forward.1} parent=11 // pred_check
          %p945 = pneg %p549
        $region94: #{nets6_forward.1} parent=11 // pred_check_branch
          %947 = sbr.rel (%p945) target = $region96
        $region95: #{nets6_forward.1} parent=11 // pred_region
          _
        $region96: #{nets6_forward.1} parent=11 // pred_fallthru
          _
        // Predicated region
        $region97: #{nets6_forward.1} parent=11 // pred_check
          %p948 = pneg %p570
        $region98: #{nets6_forward.1} parent=11 // pred_check_branch
          %950 = sbr.rel (%p948) target = $region100
        $region99: #{nets6_forward.1} parent=11 // pred_region
          _
        $region100: #{nets6_forward.1} parent=11 // pred_fallthru
          _
        // Predicated region
        $region101: #{nets6_forward.1} parent=11 // pred_check
          %p951 = pneg %p591
        $region102: #{nets6_forward.1} parent=11 // pred_check_branch
          %953 = sbr.rel (%p951) target = $region104
        $region103: #{nets6_forward.1} parent=11 // pred_region
          _
        $region104: #{nets6_forward.1} parent=11 // pred_fallthru
          _
        // Predicated region
        $region105: #{nets6_forward.1} parent=11 // pred_check
          %p954 = pneg %p612
        $region106: #{nets6_forward.1} parent=11 // pred_check_branch
          %956 = sbr.rel (%p954) target = $region108
        $region107: #{nets6_forward.1} parent=11 // pred_region
          _
        $region108: #{nets6_forward.1} parent=11 // pred_fallthru
          _
        // Predicated region
        $region109: #{nets6_forward.1} parent=11 // pred_check
          %p957 = pneg %p633
        $region110: #{nets6_forward.1} parent=11 // pred_check_branch
          %959 = sbr.rel (%p957) target = $region112
        $region111: #{nets6_forward.1} parent=11 // pred_region
          _
        $region112: #{nets6_forward.1} parent=11 // pred_fallthru
          _
        // Predicated region
        $region113: #{nets6_forward.1} parent=11 // pred_check
          %p960 = pneg %p654
        $region114: #{nets6_forward.1} parent=11 // pred_check_branch
          %962 = sbr.rel (%p960) target = $region116
        $region115: #{nets6_forward.1} parent=11 // pred_region
          _
        $region116: #{nets6_forward.1} parent=11 // pred_fallthru
          _
        // Predicated region
        $region117: #{nets6_forward.1} parent=11 // pred_check
          %p963 = pneg %p675
        $region118: #{nets6_forward.1} parent=11 // pred_check_branch
          %965 = sbr.rel (%p963) target = $region120
        $region119: #{nets6_forward.1} parent=11 // pred_region
          _
        $region120: #{nets6_forward.1} parent=11 // pred_fallthru
          _
        // Predicated region
        $region121: #{nets6_forward.1} parent=11 // pred_check
          %p966 = pneg %p696
        $region122: #{nets6_forward.1} parent=11 // pred_check_branch
          %968 = sbr.rel (%p966) target = $region124
        $region123: #{nets6_forward.1} parent=11 // pred_region
          _
        $region124: #{nets6_forward.1} parent=11 // pred_fallthru
          _
        // Predicated region
        $region125: #{nets6_forward.1} parent=11 // pred_check
          %p969 = pneg %p717
        $region126: #{nets6_forward.1} parent=11 // pred_check_branch
          %971 = sbr.rel (%p969) target = $region128
        $region127: #{nets6_forward.1} parent=11 // pred_region
          _
        $region128: #{nets6_forward.1} parent=11 // pred_fallthru
          _
        // Predicated region
        $region129: #{nets6_forward.1} parent=11 // pred_check
          %p972 = pneg %p738
        $region130: #{nets6_forward.1} parent=11 // pred_check_branch
          %974 = sbr.rel (%p972) target = $region132
        $region131: #{nets6_forward.1} parent=11 // pred_region
          _
        $region132: #{nets6_forward.1} parent=11 // pred_fallthru
          _
        // Predicated region
        $region133: #{nets6_forward.1} parent=11 // pred_check
          %p975 = pneg %p759
        $region134: #{nets6_forward.1} parent=11 // pred_check_branch
          %977 = sbr.rel (%p975) target = $region136
        $region135: #{nets6_forward.1} parent=11 // pred_region
          _
        $region136: #{nets6_forward.1} parent=11 // pred_fallthru
          _
        // Predicated region
        $region137: #{nets6_forward.1} parent=11 // pred_check
          %p978 = pneg %p780
        $region138: #{nets6_forward.1} parent=11 // pred_check_branch
          %980 = sbr.rel (%p978) target = $region140
        $region139: #{nets6_forward.1} parent=11 // pred_region
          _
        $region140: #{nets6_forward.1} parent=11 // pred_fallthru
          _
        // Predicated region
        $region141: #{nets6_forward.1} parent=11 // pred_check
          %p981 = pneg %p801
        $region142: #{nets6_forward.1} parent=11 // pred_check_branch
          %983 = sbr.rel (%p981) target = $region144
        $region143: #{nets6_forward.1} parent=11 // pred_region
          _
        $region144: #{nets6_forward.1} parent=11 // pred_fallthru
          _
        // Predicated region
        $region145: #{nets6_forward.1} parent=11 // pred_check
          %p984 = pneg %p822
        $region146: #{nets6_forward.1} parent=11 // pred_check_branch
          %986 = sbr.rel (%p984) target = $region148
        $region147: #{nets6_forward.1} parent=11 // pred_region
          _
        $region148: #{nets6_forward.1} parent=11 // pred_fallthru
          _
      $region12: #{nets6_forward.1} parent=5 // pred_fallthru
        _
      %p987 = scmp.lt.s32.totalorder %s82, 2
      // Predicated region
      $region149: #{nets6_forward.1} parent=5 // pred_check
        %p988 = pneg %p987
      $region150: #{nets6_forward.1} parent=5 // pred_check_branch
        %990 = sbr.rel (%p988) target = $region152
      $region151: #{nets6_forward.1} parent=5 // pred_region
        // Predicated region
        $region153: #{nets6_forward.1} parent=151 // pred_check
          %p991 = pneg %p102
        $region154: #{nets6_forward.1} parent=151 // pred_check_branch
          %993 = sbr.rel (%p991) target = $region156
        $region155: #{nets6_forward.1} parent=151 // pred_region
          %p994 = scmp.lt.s32.totalorder %s82, 1
          %s995 = scalar_select %p994, %s82, 1
          %s996 = smul.addr %s995, 5
          %s997 = smul.addr %s996, 8
          %s998 = scalar_lea.vmem %s1, %s997
        $region156: #{nets6_forward.1} parent=151 // pred_fallthru
          _
      $region152: #{nets6_forward.1} parent=5 // pred_fallthru
        _
      %p999 = scmp.le.s32.totalorder 1, %s82
      %p1000 = scmp.lt.s32.totalorder %s82, 3
      %p1001 = pnand %p999, %p1000
      %p1002 = pneg %p1001
      // Predicated region
      $region157: #{nets6_forward.1} parent=5 // pred_check
        _
      $region158: #{nets6_forward.1} parent=5 // pred_check_branch
        %1004 = sbr.rel (%p1001) target = $region160
      $region159: #{nets6_forward.1} parent=5 // pred_region
        %s1005 = ssub.s32 %s82, 1
        // Predicated region
        $region161: #{nets6_forward.1} parent=159 // pred_check
          %p1006 = pneg %p192
        $region162: #{nets6_forward.1} parent=159 // pred_check_branch
          %1008 = sbr.rel (%p1006) target = $region164
        $region163: #{nets6_forward.1} parent=159 // pred_region
          %1010 = dma.done [#allocation3], 20480
        $region164: #{nets6_forward.1} parent=159 // pred_fallthru
          _
        // Predicated region
        $region165: #{nets6_forward.1} parent=159 // pred_check
          %p1011 = pneg %p213
        $region166: #{nets6_forward.1} parent=159 // pred_check_branch
          %1013 = sbr.rel (%p1011) target = $region168
        $region167: #{nets6_forward.1} parent=159 // pred_region
          %1015 = dma.done [#allocation6], 4096
        $region168: #{nets6_forward.1} parent=159 // pred_fallthru
          _
        %p1016 = scmp.lt.s32.totalorder %s87, 1
        %s1017 = scalar_select %p1016, %s87, 1
        %s1018 = smul.addr %s1017, 5
        %s1019 = smul.addr %s1018, 8
        %s1020 = scalar_lea.vmem %s1, %s1019
        %p1021 = pneg %p108
        %p1022 = pneg %p105
        %p1023 = pneg %p129
        %p1024 = pneg %p126
        %p1025 = pneg %p150
        %p1026 = pneg %p147
        %p1027 = pneg %p171
        %p1028 = pneg %p168
        %p1029 = pneg %p192
        %p1030 = pneg %p189
        %p1031 = pneg %p213
        %p1032 = pneg %p210
        %p1033 = pneg %p234
        %p1034 = pneg %p231
        %p1035 = pneg %p255
        %p1036 = pneg %p252
        %p1037 = pneg %p276
        %p1038 = pneg %p273
        %p1039 = pneg %p297
        %p1040 = pneg %p294
        %p1041 = pneg %p318
        %p1042 = pneg %p315
        %p1043 = pneg %p339
        %p1044 = pneg %p336
        %p1045 = pneg %p360
        %p1046 = pneg %p357
        %p1047 = pneg %p381
        %p1048 = pneg %p378
        %p1049 = pneg %p402
        %p1050 = pneg %p399
        %p1051 = pneg %p423
        %p1052 = pneg %p420
        %p1053 = pneg %p444
        %p1054 = pneg %p441
        %p1055 = pneg %p465
        %p1056 = pneg %p462
        %p1057 = pneg %p486
        %p1058 = pneg %p483
        %p1059 = pneg %p507
        %p1060 = pneg %p504
        %p1061 = pneg %p528
        %p1062 = pneg %p525
        %p1063 = pneg %p549
        %p1064 = pneg %p546
        %p1065 = pneg %p570
        %p1066 = pneg %p567
        %p1067 = pneg %p591
        %p1068 = pneg %p588
        %p1069 = pneg %p612
        %p1070 = pneg %p609
        %p1071 = pneg %p633
        %p1072 = pneg %p630
        %p1073 = pneg %p654
        %p1074 = pneg %p651
        %p1075 = pneg %p675
        %p1076 = pneg %p672
        %p1077 = pneg %p696
        %p1078 = pneg %p693
        %p1079 = pneg %p717
        %p1080 = pneg %p714
        %p1081 = pneg %p738
        %p1082 = pneg %p735
        %p1083 = pneg %p759
        %p1084 = pneg %p756
        %p1085 = pneg %p780
        %p1086 = pneg %p777
        %p1087 = pneg %p801
        %p1088 = pneg %p798
        %p1089 = pneg %p822
        %p1090 = pneg %p819
        %p1091 = pneg %p848
        %p1092 = pneg %p845
        %s1093 = sand.u32 %s835, 1
        %s1094 = scalar_lea.sflag [#allocation4], %s1093
        %s1095 = sand.u32 %s835, 1
        %s1096 = scalar_lea.vmem [#allocation7], %s1095
        %p1097 = scmp.lt.s32.totalorder %s87, 1
        %s1098 = scalar_select %p1097, %s87, 1
        %s1099 = smul.addr %s1098, 5
        %s1100 = smul.addr %s1099, 8
        %s1101 = scalar_lea.vmem %s1, %s1100
        %v1103 = vld [vmem:[%s1101] sm:$0xff]
        %v1104 = vld [vmem:[%s1101 + $0x8] sm:$0xff]
        %v1105 = vld [vmem:[%s1101 + $0x10] sm:$0xff]
        %v1106 = vld [vmem:[%s1101 + $0x18] sm:$0xff]
        %v1107 = vld [vmem:[%s1101 + $0x20] sm:$0xff]
        %v1108 = vld [vmem:[%s3] sm:$0xff]
        %v1109 = vld [vmem:[%s3 + $0x8] sm:$0xff]
        %v1110 = vld [vmem:[%s3 + $0x10] sm:$0xff]
        %v1111 = vld [vmem:[%s3 + $0x18] sm:$0xff]
        %v1112 = vld [vmem:[%s3 + $0x20] sm:$0xff]
        %v1113 = vld [vmem:[%s3 + $0x28] sm:$0x1]
        %v1114 = vld [vmem:[%s3 + $0x30] sm:$0x1]
        %v1115 = vld [vmem:[%s3 + $0x38] sm:$0x1]
        %v1116 = vld [vmem:[%s3 + $0x40] sm:$0x1]
        %v1117 = vld [vmem:[%s3 + $0x48] sm:$0x1]
        %1118 = vrot.lane.b32.xlu0 %v1103, 25
        %v1119 = vpop.permute.xlu0 %1118
        %1120 = vrot.lane.b32.xlu0 %v1104, 25
        %v1121 = vpop.permute.xlu0 %1120
        %1122 = vrot.lane.b32.xlu0 %v1105, 25
        %v1123 = vpop.permute.xlu0 %1122
        %1124 = vrot.lane.b32.xlu0 %v1106, 25
        %v1125 = vpop.permute.xlu0 %1124
        %1126 = vrot.lane.b32.xlu0 %v1107, 25
        %v1127 = vpop.permute.xlu0 %1126
        %v1128 = vlaneseq
        %v1129 = vand.u32 %v1128, 127
        %vm1130 = vcmp.lt.s32.totalorder %v1129, 25
        %v1131 = vsel %vm1130, %v1125, %v1127
        %v1132 = vsel %vm1130, %v1123, %v1125
        %v1133 = vsel %vm1130, %v1121, %v1123
        %v1134 = vsel %vm1130, %v1119, %v1121
        %v1135 = vsel %vm1130, %v1127, %v1119
        %v1136 = vperm.slane %v1108, 0
        %v1137 = vperm.slane %v1109, 0
        %v1138 = vperm.slane %v1110, 0
        %v1139 = vperm.slane %v1111, 0
        %v1140 = vperm.slane %v1112, 0
        %v1141 = vmul.f32 %v1135, %v1136
        %v1142 = vmul.f32 %v1134, %v1137
        %v1143 = vmul.f32 %v1133, %v1138
        %v1144 = vmul.f32 %v1132, %v1139
        %v1145 = vmul.f32 %v1131, %v1140
        %1146 = vrot.lane.b32.xlu0 %v1103, 24
        %v1147 = vpop.permute.xlu0 %1146
        %1148 = vrot.lane.b32.xlu0 %v1104, 24
        %v1149 = vpop.permute.xlu0 %1148
        %1150 = vrot.lane.b32.xlu0 %v1105, 24
        %v1151 = vpop.permute.xlu0 %1150
        %1152 = vrot.lane.b32.xlu0 %v1106, 24
        %v1153 = vpop.permute.xlu0 %1152
        %1154 = vrot.lane.b32.xlu0 %v1107, 24
        %v1155 = vpop.permute.xlu0 %1154
        %vm1156 = vcmp.lt.s32.totalorder %v1129, 24
        %v1157 = vsel %vm1156, %v1153, %v1155
        %v1158 = vsel %vm1156, %v1151, %v1153
        %v1159 = vsel %vm1156, %v1149, %v1151
        %v1160 = vsel %vm1156, %v1147, %v1149
        %v1161 = vsel %vm1156, %v1155, %v1147
        %v1162 = vperm.slane %v1108, 1
        %v1163 = vperm.slane %v1109, 1
        %v1164 = vperm.slane %v1110, 1
        %v1165 = vperm.slane %v1111, 1
        %v1166 = vperm.slane %v1112, 1
        %v1167 = vmul.f32 %v1161, %v1162
        %v1168 = vmul.f32 %v1160, %v1163
        %v1169 = vmul.f32 %v1159, %v1164
        %v1170 = vmul.f32 %v1158, %v1165
        %v1171 = vmul.f32 %v1157, %v1166
        %1172 = vrot.lane.b32.xlu0 %v1103, 23
        %v1173 = vpop.permute.xlu0 %1172
        %1174 = vrot.lane.b32.xlu0 %v1104, 23
        %v1175 = vpop.permute.xlu0 %1174
        %1176 = vrot.lane.b32.xlu0 %v1105, 23
        %v1177 = vpop.permute.xlu0 %1176
        %1178 = vrot.lane.b32.xlu0 %v1106, 23
        %v1179 = vpop.permute.xlu0 %1178
        %1180 = vrot.lane.b32.xlu0 %v1107, 23
        %v1181 = vpop.permute.xlu0 %1180
        %vm1182 = vcmp.lt.s32.totalorder %v1129, 23
        %v1183 = vsel %vm1182, %v1179, %v1181
        %v1184 = vsel %vm1182, %v1177, %v1179
        %v1185 = vsel %vm1182, %v1175, %v1177
        %v1186 = vsel %vm1182, %v1173, %v1175
        %v1187 = vsel %vm1182, %v1181, %v1173
        %v1188 = vperm.slane %v1108, 2
        %v1189 = vperm.slane %v1109, 2
        %v1190 = vperm.slane %v1110, 2
        %v1191 = vperm.slane %v1111, 2
        %v1192 = vperm.slane %v1112, 2
        %v1193 = vmul.f32 %v1187, %v1188
        %v1194 = vmul.f32 %v1186, %v1189
        %v1195 = vmul.f32 %v1185, %v1190
        %v1196 = vmul.f32 %v1184, %v1191
        %v1197 = vmul.f32 %v1183, %v1192
        %1198 = vrot.lane.b32.xlu0 %v1103, 1
        %v1199 = vpop.permute.xlu0 %1198
        %1200 = vrot.lane.b32.xlu0 %v1104, 1
        %v1201 = vpop.permute.xlu0 %1200
        %1202 = vrot.lane.b32.xlu0 %v1105, 1
        %v1203 = vpop.permute.xlu0 %1202
        %1204 = vrot.lane.b32.xlu0 %v1106, 1
        %v1205 = vpop.permute.xlu0 %1204
        %1206 = vrot.lane.b32.xlu0 %v1107, 1
        %v1207 = vpop.permute.xlu0 %1206
        %vm1208 = vcmp.lt.s32.totalorder %v1129, 1
        %v1209 = vsel %vm1208, %v1205, %v1207
        %v1210 = vsel %vm1208, %v1203, %v1205
        %v1211 = vsel %vm1208, %v1201, %v1203
        %v1212 = vsel %vm1208, %v1199, %v1201
        %v1213 = vsel %vm1208, %v1207, %v1199
        %v1214 = vperm.slane %v1108, 3
        %v1215 = vperm.slane %v1109, 3
        %v1216 = vperm.slane %v1110, 3
        %v1217 = vperm.slane %v1111, 3
        %v1218 = vperm.slane %v1112, 3
        %v1219 = vmul.f32 %v1213, %v1214
        %v1220 = vmul.f32 %v1212, %v1215
        %v1221 = vmul.f32 %v1211, %v1216
        %v1222 = vmul.f32 %v1210, %v1217
        %v1223 = vmul.f32 %v1209, %v1218
        %v1224 = vperm.slane %v1108, 4
        %v1225 = vperm.slane %v1109, 4
        %v1226 = vperm.slane %v1110, 4
        %v1227 = vperm.slane %v1111, 4
        %v1228 = vperm.slane %v1112, 4
        %v1229 = vmul.f32 %v1103, %v1224
        %v1230 = vmul.f32 %v1104, %v1225
        %v1231 = vmul.f32 %v1105, %v1226
        %v1232 = vmul.f32 %v1106, %v1227
        %v1233 = vmul.f32 %v1107, %v1228
        %1234 = vrot.lane.b32.xlu0 %v1103, 127
        %v1235 = vpop.permute.xlu0 %1234
        %1236 = vrot.lane.b32.xlu0 %v1104, 127
        %v1237 = vpop.permute.xlu0 %1236
        %1238 = vrot.lane.b32.xlu0 %v1105, 127
        %v1239 = vpop.permute.xlu0 %1238
        %1240 = vrot.lane.b32.xlu0 %v1106, 127
        %v1241 = vpop.permute.xlu0 %1240
        %1242 = vrot.lane.b32.xlu0 %v1107, 127
        %v1243 = vpop.permute.xlu0 %1242
        %vm1244 = vcmp.lt.s32.totalorder %v1129, 127
        %v1245 = vsel %vm1244, %v1241, %v1243
        %v1246 = vsel %vm1244, %v1239, %v1241
        %v1247 = vsel %vm1244, %v1237, %v1239
        %v1248 = vsel %vm1244, %v1235, %v1237
        %v1249 = vsel %vm1244, %v1243, %v1235
        %v1250 = vperm.slane %v1108, 5
        %v1251 = vperm.slane %v1109, 5
        %v1252 = vperm.slane %v1110, 5
        %v1253 = vperm.slane %v1111, 5
        %v1254 = vperm.slane %v1112, 5
        %v1255 = vmul.f32 %v1248, %v1250
        %v1256 = vmul.f32 %v1247, %v1251
        %v1257 = vmul.f32 %v1246, %v1252
        %v1258 = vmul.f32 %v1245, %v1253
        %v1259 = vmul.f32 %v1249, %v1254
        %1260 = vrot.lane.b32.xlu0 %v1103, 105
        %v1261 = vpop.permute.xlu0 %1260
        %1262 = vrot.lane.b32.xlu0 %v1104, 105
        %v1263 = vpop.permute.xlu0 %1262
        %1264 = vrot.lane.b32.xlu0 %v1105, 105
        %v1265 = vpop.permute.xlu0 %1264
        %1266 = vrot.lane.b32.xlu0 %v1106, 105
        %v1267 = vpop.permute.xlu0 %1266
        %1268 = vrot.lane.b32.xlu0 %v1107, 105
        %v1269 = vpop.permute.xlu0 %1268
        %vm1270 = vcmp.lt.s32.totalorder %v1129, 105
        %v1271 = vsel %vm1270, %v1267, %v1269
        %v1272 = vsel %vm1270, %v1265, %v1267
        %v1273 = vsel %vm1270, %v1263, %v1265
        %v1274 = vsel %vm1270, %v1261, %v1263
        %v1275 = vsel %vm1270, %v1269, %v1261
        %v1276 = vperm.slane %v1108, 6
        %v1277 = vperm.slane %v1109, 6
        %v1278 = vperm.slane %v1110, 6
        %v1279 = vperm.slane %v1111, 6
        %v1280 = vperm.slane %v1112, 6
        %v1281 = vmul.f32 %v1274, %v1276
        %v1282 = vmul.f32 %v1273, %v1277
        %v1283 = vmul.f32 %v1272, %v1278
        %v1284 = vmul.f32 %v1271, %v1279
        %v1285 = vmul.f32 %v1275, %v1280
        %1286 = vrot.lane.b32.xlu0 %v1103, 104
        %v1287 = vpop.permute.xlu0 %1286
        %1288 = vrot.lane.b32.xlu0 %v1104, 104
        %v1289 = vpop.permute.xlu0 %1288
        %1290 = vrot.lane.b32.xlu0 %v1105, 104
        %v1291 = vpop.permute.xlu0 %1290
        %1292 = vrot.lane.b32.xlu0 %v1106, 104
        %v1293 = vpop.permute.xlu0 %1292
        %1294 = vrot.lane.b32.xlu0 %v1107, 104
        %v1295 = vpop.permute.xlu0 %1294
        %vm1296 = vcmp.lt.s32.totalorder %v1129, 104
        %v1297 = vsel %vm1296, %v1293, %v1295
        %v1298 = vsel %vm1296, %v1291, %v1293
        %v1299 = vsel %vm1296, %v1289, %v1291
        %v1300 = vsel %vm1296, %v1287, %v1289
        %v1301 = vsel %vm1296, %v1295, %v1287
        %v1302 = vperm.slane %v1108, 7
        %v1303 = vperm.slane %v1109, 7
        %v1304 = vperm.slane %v1110, 7
        %v1305 = vperm.slane %v1111, 7
        %v1306 = vperm.slane %v1112, 7
        %v1307 = vmul.f32 %v1300, %v1302
        %v1308 = vmul.f32 %v1299, %v1303
        %v1309 = vmul.f32 %v1298, %v1304
        %v1310 = vmul.f32 %v1297, %v1305
        %v1311 = vmul.f32 %v1301, %v1306
        %1312 = vrot.lane.b32.xlu0 %v1103, 103
        %v1313 = vpop.permute.xlu0 %1312
        %1314 = vrot.lane.b32.xlu0 %v1104, 103
        %v1315 = vpop.permute.xlu0 %1314
        %1316 = vrot.lane.b32.xlu0 %v1105, 103
        %v1317 = vpop.permute.xlu0 %1316
        %1318 = vrot.lane.b32.xlu0 %v1106, 103
        %v1319 = vpop.permute.xlu0 %1318
        %1320 = vrot.lane.b32.xlu0 %v1107, 103
        %v1321 = vpop.permute.xlu0 %1320
        %vm1322 = vcmp.lt.s32.totalorder %v1129, 103
        %v1323 = vsel %vm1322, %v1319, %v1321
        %v1324 = vsel %vm1322, %v1317, %v1319
        %v1325 = vsel %vm1322, %v1315, %v1317
        %v1326 = vsel %vm1322, %v1313, %v1315
        %v1327 = vsel %vm1322, %v1321, %v1313
        %v1328 = vperm.slane %v1113, 0
        %v1329 = vperm.slane %v1114, 0
        %v1330 = vperm.slane %v1115, 0
        %v1331 = vperm.slane %v1116, 0
        %v1332 = vperm.slane %v1117, 0
        %v1333 = vmul.f32 %v1326, %v1328
        %v1334 = vmul.f32 %v1325, %v1329
        %v1335 = vmul.f32 %v1324, %v1330
        %v1336 = vmul.f32 %v1323, %v1331
        %v1337 = vmul.f32 %v1327, %v1332
        %v1338 = vpack.c.bf16 %v1167, %v1141
        %v1339 = vpack.c.bf16 %v1168, %v1142
        %v1340 = vpack.c.bf16 %v1169, %v1143
        %v1341 = vpack.c.bf16 %v1170, %v1144
        %v1342 = vpack.c.bf16 %v1171, %v1145
        %v1343 = vpack.c.bf16 %v1219, %v1193
        %v1344 = vpack.c.bf16 %v1220, %v1194
        %v1345 = vpack.c.bf16 %v1221, %v1195
        %v1346 = vpack.c.bf16 %v1222, %v1196
        %v1347 = vpack.c.bf16 %v1223, %v1197
        %v1348 = vpack.c.bf16 %v1255, %v1229
        %v1349 = vpack.c.bf16 %v1256, %v1230
        %v1350 = vpack.c.bf16 %v1257, %v1231
        %v1351 = vpack.c.bf16 %v1258, %v1232
        %v1352 = vpack.c.bf16 %v1259, %v1233
        %v1353 = vpack.c.bf16 %v1307, %v1281
        %v1354 = vpack.c.bf16 %v1308, %v1282
        %v1355 = vpack.c.bf16 %v1309, %v1283
        %v1356 = vpack.c.bf16 %v1310, %v1284
        %v1357 = vpack.c.bf16 %v1311, %v1285
        %v1358 = vpack.c.bf16 %v1333, %v1333
        %v1359 = vpack.c.bf16 %v1334, %v1334
        %v1360 = vpack.c.bf16 %v1335, %v1335
        %v1361 = vpack.c.bf16 %v1336, %v1336
        %v1362 = vpack.c.bf16 %v1337, %v1337
        %v1363 = vld [vmem:[%s15] sm:$0xf]
        %vm1364 = vcmask 588800
        %v1366 = vsel %vm1364, %v1363, 0
        %vm1368 = vcmask 1043456
        %v1370 = vsel %vm1368, %v1358, 0
        %v1373 = vsel %vm1368, %v1359, 0
        %v1376 = vsel %vm1368, %v1360, 0
        %v1379 = vsel %vm1368, %v1361, 0
        %v1382 = vsel %vm1368, %v1362, 0
        %1384 = vmatpush.bf16.msra.mxu0 0
        %1385 = vmatpush.bf16.msra.mxu0 0
        %1386 = vmatpush.bf16.msra.mxu0 0
        %1387 = vmatpush.bf16.msra.mxu0 %v1370
        %1388 = vmatpush.bf16.msra.mxu0 %v1353
        %1389 = vmatpush.bf16.msra.mxu0 %v1348
        %1390 = vmatpush.bf16.msra.mxu0 %v1343
        %1391 = vmatpush.bf16.msra.mxu0 %v1338
        %1392 = vmatmul.bf16.gmra.mxu0 %v1366
        %v1393 = vpop.f32.mrf.mxu0
        %v1394 = vadd.f32 0.0, %v1393
        %v1395 = vpop.f32.mrf.mxu0
        %1396 = vdwg.mxu0
        %1397 = vmatpush.bf16.msra.mxu0 0
        %1398 = vmatpush.bf16.msra.mxu0 0
        %1399 = vmatpush.bf16.msra.mxu0 0
        %1400 = vmatpush.bf16.msra.mxu0 %v1373
        %1401 = vmatpush.bf16.msra.mxu0 %v1354
        %1402 = vmatpush.bf16.msra.mxu0 %v1349
        %1403 = vmatpush.bf16.msra.mxu0 %v1344
        %1404 = vmatpush.bf16.msra.mxu0 %v1339
        %1405 = vmatmul.bf16.gmra.mxu0 %v1366
        %v1406 = vpop.f32.mrf.mxu0
        %v1407 = vadd.f32 0.0, %v1406
        %v1408 = vpop.f32.mrf.mxu0
        %1409 = vdwg.mxu0
        %1410 = vmatpush.bf16.msra.mxu0 0
        %1411 = vmatpush.bf16.msra.mxu0 0
        %1412 = vmatpush.bf16.msra.mxu0 0
        %1413 = vmatpush.bf16.msra.mxu0 %v1376
        %1414 = vmatpush.bf16.msra.mxu0 %v1355
        %1415 = vmatpush.bf16.msra.mxu0 %v1350
        %1416 = vmatpush.bf16.msra.mxu0 %v1345
        %1417 = vmatpush.bf16.msra.mxu0 %v1340
        %1418 = vmatmul.bf16.gmra.mxu0 %v1366
        %v1419 = vpop.f32.mrf.mxu0
        %v1420 = vadd.f32 0.0, %v1419
        %v1421 = vpop.f32.mrf.mxu0
        %1422 = vdwg.mxu0
        %1423 = vmatpush.bf16.msra.mxu0 0
        %1424 = vmatpush.bf16.msra.mxu0 0
        %1425 = vmatpush.bf16.msra.mxu0 0
        %1426 = vmatpush.bf16.msra.mxu0 %v1379
        %1427 = vmatpush.bf16.msra.mxu0 %v1356
        %1428 = vmatpush.bf16.msra.mxu0 %v1351
        %1429 = vmatpush.bf16.msra.mxu0 %v1346
        %1430 = vmatpush.bf16.msra.mxu0 %v1341
        %1431 = vmatmul.bf16.gmra.mxu0 %v1366
        %v1432 = vpop.f32.mrf.mxu0
        %v1433 = vadd.f32 0.0, %v1432
        %v1434 = vpop.f32.mrf.mxu0
        %1435 = vdwg.mxu0
        %1436 = vmatpush.bf16.msra.mxu0 0
        %1437 = vmatpush.bf16.msra.mxu0 0
        %1438 = vmatpush.bf16.msra.mxu0 0
        %1439 = vmatpush.bf16.msra.mxu0 %v1382
        %1440 = vmatpush.bf16.msra.mxu0 %v1357
        %1441 = vmatpush.bf16.msra.mxu0 %v1352
        %1442 = vmatpush.bf16.msra.mxu0 %v1347
        %1443 = vmatpush.bf16.msra.mxu0 %v1342
        %1444 = vmatmul.bf16.gmra.mxu0 %v1366
        %v1445 = vpop.f32.mrf.mxu0
        %v1446 = vadd.f32 0.0, %v1445
        %v1447 = vpop.f32.mrf.mxu0
        %1448 = vdwg.mxu0
        %v1449 = vmax.f32 %v1394, 0.0
        %v1450 = vmax.f32 %v1407, 0.0
        %v1451 = vmax.f32 %v1420, 0.0
        %v1452 = vmax.f32 %v1433, 0.0
        %v1453 = vmax.f32 %v1446, 0.0
        %v1454 = vld [vmem:[%s17] sm:$0xff]
        %1456 = vset.pattern.permute.xlu0 0
        %1457 = vperm.xlu0 %1456, %v1454
        %v1458 = vpop.permute.xlu0 %1457
        %v1460 = vmul.f32 %v1449, %v1458
        %v1461 = vmul.f32 %v1450, %v1458
        %v1462 = vmul.f32 %v1451, %v1458
        %v1463 = vmul.f32 %v1452, %v1458
        %v1464 = vmul.f32 %v1453, %v1458
        %v1465 = vld [vmem:[%s19] sm:$0xff]
        %1467 = vset.pattern.permute.xlu0 0
        %1468 = vperm.xlu0 %1467, %v1465
        %v1469 = vpop.permute.xlu0 %1468
        %v1471 = vadd.f32 %v1460, %v1469
        %v1472 = vadd.f32 %v1461, %v1469
        %v1473 = vadd.f32 %v1462, %v1469
        %v1474 = vadd.f32 %v1463, %v1469
        %v1475 = vadd.f32 %v1464, %v1469
        %1476 = vrot.lane.b32.xlu0 %v1471, 25
        %v1477 = vpop.permute.xlu0 %1476
        %1478 = vrot.lane.b32.xlu0 %v1472, 25
        %v1479 = vpop.permute.xlu0 %1478
        %1480 = vrot.lane.b32.xlu0 %v1473, 25
        %v1481 = vpop.permute.xlu0 %1480
        %1482 = vrot.lane.b32.xlu0 %v1474, 25
        %v1483 = vpop.permute.xlu0 %1482
        %1484 = vrot.lane.b32.xlu0 %v1475, 25
        %v1485 = vpop.permute.xlu0 %1484
        %v1486 = vsel %vm1130, %v1483, %v1485
        %v1487 = vsel %vm1130, %v1481, %v1483
        %v1488 = vsel %vm1130, %v1479, %v1481
        %v1489 = vsel %vm1130, %v1477, %v1479
        %v1490 = vsel %vm1130, %v1485, %v1477
        %v1491 = vmul.f32 %v1490, %v1136
        %v1492 = vmul.f32 %v1489, %v1137
        %v1493 = vmul.f32 %v1488, %v1138
        %v1494 = vmul.f32 %v1487, %v1139
        %v1495 = vmul.f32 %v1486, %v1140
        %1496 = vrot.lane.b32.xlu0 %v1471, 24
        %v1497 = vpop.permute.xlu0 %1496
        %1498 = vrot.lane.b32.xlu0 %v1472, 24
        %v1499 = vpop.permute.xlu0 %1498
        %1500 = vrot.lane.b32.xlu0 %v1473, 24
        %v1501 = vpop.permute.xlu0 %1500
        %1502 = vrot.lane.b32.xlu0 %v1474, 24
        %v1503 = vpop.permute.xlu0 %1502
        %1504 = vrot.lane.b32.xlu0 %v1475, 24
        %v1505 = vpop.permute.xlu0 %1504
        %v1506 = vsel %vm1156, %v1503, %v1505
        %v1507 = vsel %vm1156, %v1501, %v1503
        %v1508 = vsel %vm1156, %v1499, %v1501
        %v1509 = vsel %vm1156, %v1497, %v1499
        %v1510 = vsel %vm1156, %v1505, %v1497
        %v1511 = vmul.f32 %v1510, %v1162
        %v1512 = vmul.f32 %v1509, %v1163
        %v1513 = vmul.f32 %v1508, %v1164
        %v1514 = vmul.f32 %v1507, %v1165
        %v1515 = vmul.f32 %v1506, %v1166
        %1516 = vrot.lane.b32.xlu0 %v1471, 23
        %v1517 = vpop.permute.xlu0 %1516
        %1518 = vrot.lane.b32.xlu0 %v1472, 23
        %v1519 = vpop.permute.xlu0 %1518
        %1520 = vrot.lane.b32.xlu0 %v1473, 23
        %v1521 = vpop.permute.xlu0 %1520
        %1522 = vrot.lane.b32.xlu0 %v1474, 23
        %v1523 = vpop.permute.xlu0 %1522
        %1524 = vrot.lane.b32.xlu0 %v1475, 23
        %v1525 = vpop.permute.xlu0 %1524
        %v1526 = vsel %vm1182, %v1523, %v1525
        %v1527 = vsel %vm1182, %v1521, %v1523
        %v1528 = vsel %vm1182, %v1519, %v1521
        %v1529 = vsel %vm1182, %v1517, %v1519
        %v1530 = vsel %vm1182, %v1525, %v1517
        %v1531 = vmul.f32 %v1530, %v1188
        %v1532 = vmul.f32 %v1529, %v1189
        %v1533 = vmul.f32 %v1528, %v1190
        %v1534 = vmul.f32 %v1527, %v1191
        %v1535 = vmul.f32 %v1526, %v1192
        %1536 = vrot.lane.b32.xlu0 %v1471, 1
        %v1537 = vpop.permute.xlu0 %1536
        %1538 = vrot.lane.b32.xlu0 %v1472, 1
        %v1539 = vpop.permute.xlu0 %1538
        %1540 = vrot.lane.b32.xlu0 %v1473, 1
        %v1541 = vpop.permute.xlu0 %1540
        %1542 = vrot.lane.b32.xlu0 %v1474, 1
        %v1543 = vpop.permute.xlu0 %1542
        %1544 = vrot.lane.b32.xlu0 %v1475, 1
        %v1545 = vpop.permute.xlu0 %1544
        %v1546 = vsel %vm1208, %v1543, %v1545
        %v1547 = vsel %vm1208, %v1541, %v1543
        %v1548 = vsel %vm1208, %v1539, %v1541
        %v1549 = vsel %vm1208, %v1537, %v1539
        %v1550 = vsel %vm1208, %v1545, %v1537
        %v1551 = vmul.f32 %v1550, %v1214
        %v1552 = vmul.f32 %v1549, %v1215
        %v1553 = vmul.f32 %v1548, %v1216
        %v1554 = vmul.f32 %v1547, %v1217
        %v1555 = vmul.f32 %v1546, %v1218
        %v1556 = vmul.f32 %v1471, %v1224
        %v1557 = vmul.f32 %v1472, %v1225
        %v1558 = vmul.f32 %v1473, %v1226
        %v1559 = vmul.f32 %v1474, %v1227
        %v1560 = vmul.f32 %v1475, %v1228
        %1561 = vrot.lane.b32.xlu0 %v1471, 127
        %v1562 = vpop.permute.xlu0 %1561
        %1563 = vrot.lane.b32.xlu0 %v1472, 127
        %v1564 = vpop.permute.xlu0 %1563
        %1565 = vrot.lane.b32.xlu0 %v1473, 127
        %v1566 = vpop.permute.xlu0 %1565
        %1567 = vrot.lane.b32.xlu0 %v1474, 127
        %v1568 = vpop.permute.xlu0 %1567
        %1569 = vrot.lane.b32.xlu0 %v1475, 127
        %v1570 = vpop.permute.xlu0 %1569
        %v1571 = vsel %vm1244, %v1568, %v1570
        %v1572 = vsel %vm1244, %v1566, %v1568
        %v1573 = vsel %vm1244, %v1564, %v1566
        %v1574 = vsel %vm1244, %v1562, %v1564
        %v1575 = vsel %vm1244, %v1570, %v1562
        %v1576 = vmul.f32 %v1574, %v1250
        %v1577 = vmul.f32 %v1573, %v1251
        %v1578 = vmul.f32 %v1572, %v1252
        %v1579 = vmul.f32 %v1571, %v1253
        %v1580 = vmul.f32 %v1575, %v1254
        %1581 = vrot.lane.b32.xlu0 %v1471, 105
        %v1582 = vpop.permute.xlu0 %1581
        %1583 = vrot.lane.b32.xlu0 %v1472, 105
        %v1584 = vpop.permute.xlu0 %1583
        %1585 = vrot.lane.b32.xlu0 %v1473, 105
        %v1586 = vpop.permute.xlu0 %1585
        %1587 = vrot.lane.b32.xlu0 %v1474, 105
        %v1588 = vpop.permute.xlu0 %1587
        %1589 = vrot.lane.b32.xlu0 %v1475, 105
        %v1590 = vpop.permute.xlu0 %1589
        %v1591 = vsel %vm1270, %v1588, %v1590
        %v1592 = vsel %vm1270, %v1586, %v1588
        %v1593 = vsel %vm1270, %v1584, %v1586
        %v1594 = vsel %vm1270, %v1582, %v1584
        %v1595 = vsel %vm1270, %v1590, %v1582
        %v1596 = vmul.f32 %v1594, %v1276
        %v1597 = vmul.f32 %v1593, %v1277
        %v1598 = vmul.f32 %v1592, %v1278
        %v1599 = vmul.f32 %v1591, %v1279
        %v1600 = vmul.f32 %v1595, %v1280
        %1601 = vrot.lane.b32.xlu0 %v1471, 104
        %v1602 = vpop.permute.xlu0 %1601
        %1603 = vrot.lane.b32.xlu0 %v1472, 104
        %v1604 = vpop.permute.xlu0 %1603
        %1605 = vrot.lane.b32.xlu0 %v1473, 104
        %v1606 = vpop.permute.xlu0 %1605
        %1607 = vrot.lane.b32.xlu0 %v1474, 104
        %v1608 = vpop.permute.xlu0 %1607
        %1609 = vrot.lane.b32.xlu0 %v1475, 104
        %v1610 = vpop.permute.xlu0 %1609
        %v1611 = vsel %vm1296, %v1608, %v1610
        %v1612 = vsel %vm1296, %v1606, %v1608
        %v1613 = vsel %vm1296, %v1604, %v1606
        %v1614 = vsel %vm1296, %v1602, %v1604
        %v1615 = vsel %vm1296, %v1610, %v1602
        %v1616 = vmul.f32 %v1614, %v1302
        %v1617 = vmul.f32 %v1613, %v1303
        %v1618 = vmul.f32 %v1612, %v1304
        %v1619 = vmul.f32 %v1611, %v1305
        %v1620 = vmul.f32 %v1615, %v1306
        %1621 = vrot.lane.b32.xlu0 %v1471, 103
        %v1622 = vpop.permute.xlu0 %1621
        %1623 = vrot.lane.b32.xlu0 %v1472, 103
        %v1624 = vpop.permute.xlu0 %1623
        %1625 = vrot.lane.b32.xlu0 %v1473, 103
        %v1626 = vpop.permute.xlu0 %1625
        %1627 = vrot.lane.b32.xlu0 %v1474, 103
        %v1628 = vpop.permute.xlu0 %1627
        %1629 = vrot.lane.b32.xlu0 %v1475, 103
        %v1630 = vpop.permute.xlu0 %1629
        %v1631 = vsel %vm1322, %v1628, %v1630
        %v1632 = vsel %vm1322, %v1626, %v1628
        %v1633 = vsel %vm1322, %v1624, %v1626
        %v1634 = vsel %vm1322, %v1622, %v1624
        %v1635 = vsel %vm1322, %v1630, %v1622
        %v1636 = vmul.f32 %v1634, %v1328
        %v1637 = vmul.f32 %v1633, %v1329
        %v1638 = vmul.f32 %v1632, %v1330
        %v1639 = vmul.f32 %v1631, %v1331
        %v1640 = vmul.f32 %v1635, %v1332
        %v1641 = vpack.c.bf16 %v1511, %v1491
        %v1642 = vpack.c.bf16 %v1512, %v1492
        %v1643 = vpack.c.bf16 %v1513, %v1493
        %v1644 = vpack.c.bf16 %v1514, %v1494
        %v1645 = vpack.c.bf16 %v1515, %v1495
        %v1646 = vpack.c.bf16 %v1551, %v1531
        %v1647 = vpack.c.bf16 %v1552, %v1532
        %v1648 = vpack.c.bf16 %v1553, %v1533
        %v1649 = vpack.c.bf16 %v1554, %v1534
        %v1650 = vpack.c.bf16 %v1555, %v1535
        %v1651 = vpack.c.bf16 %v1576, %v1556
        %v1652 = vpack.c.bf16 %v1577, %v1557
        %v1653 = vpack.c.bf16 %v1578, %v1558
        %v1654 = vpack.c.bf16 %v1579, %v1559
        %v1655 = vpack.c.bf16 %v1580, %v1560
        %v1656 = vpack.c.bf16 %v1616, %v1596
        %v1657 = vpack.c.bf16 %v1617, %v1597
        %v1658 = vpack.c.bf16 %v1618, %v1598
        %v1659 = vpack.c.bf16 %v1619, %v1599
        %v1660 = vpack.c.bf16 %v1620, %v1600
        %v1661 = vpack.c.bf16 %v1636, %v1636
        %v1662 = vpack.c.bf16 %v1637, %v1637
        %v1663 = vpack.c.bf16 %v1638, %v1638
        %v1664 = vpack.c.bf16 %v1639, %v1639
        %v1665 = vpack.c.bf16 %v1640, %v1640
        %v1666 = vld [vmem:[%s21] sm:$0xf]
        %v1667 = vld [vmem:[%s21 + $0x4] sm:$0xf]
        %v1670 = vunpack.c.l.b16 %v1666
        %v1671 = vunpack.c.l.b16 %v1667
        %v1672 = vpack.c.b16 %v1671, %v1670
        %v1674 = vsel %vm1364, %v1672, 0
        %v1677 = vsel %vm1368, %v1661, 0
        %v1680 = vsel %vm1368, %v1662, 0
        %v1683 = vsel %vm1368, %v1663, 0
        %v1686 = vsel %vm1368, %v1664, 0
        %v1689 = vsel %vm1368, %v1665, 0
        %1691 = vmatpush.bf16.msra.mxu0 0
        %1692 = vmatpush.bf16.msra.mxu0 0
        %1693 = vmatpush.bf16.msra.mxu0 0
        %1694 = vmatpush.bf16.msra.mxu0 %v1677
        %1695 = vmatpush.bf16.msra.mxu0 %v1656
        %1696 = vmatpush.bf16.msra.mxu0 %v1651
        %1697 = vmatpush.bf16.msra.mxu0 %v1646
        %1698 = vmatpush.bf16.msra.mxu0 %v1641
        %1699 = vmatmul.bf16.gmra.mxu0 %v1674
        %v1700 = vpop.f32.mrf.mxu0
        %v1701 = vadd.f32 0.0, %v1700
        %v1702 = vpop.f32.mrf.mxu0
        %v1703 = vadd.f32 0.0, %v1702
        %1704 = vdwg.mxu0
        %1705 = vmatpush.bf16.msra.mxu0 0
        %1706 = vmatpush.bf16.msra.mxu0 0
        %1707 = vmatpush.bf16.msra.mxu0 0
        %1708 = vmatpush.bf16.msra.mxu0 %v1680
        %1709 = vmatpush.bf16.msra.mxu0 %v1657
        %1710 = vmatpush.bf16.msra.mxu0 %v1652
        %1711 = vmatpush.bf16.msra.mxu0 %v1647
        %1712 = vmatpush.bf16.msra.mxu0 %v1642
        %1713 = vmatmul.bf16.gmra.mxu0 %v1674
        %v1714 = vpop.f32.mrf.mxu0
        %v1715 = vadd.f32 0.0, %v1714
        %v1716 = vpop.f32.mrf.mxu0
        %v1717 = vadd.f32 0.0, %v1716
        %1718 = vdwg.mxu0
        %1719 = vmatpush.bf16.msra.mxu0 0
        %1720 = vmatpush.bf16.msra.mxu0 0
        %1721 = vmatpush.bf16.msra.mxu0 0
        %1722 = vmatpush.bf16.msra.mxu0 %v1683
        %1723 = vmatpush.bf16.msra.mxu0 %v1658
        %1724 = vmatpush.bf16.msra.mxu0 %v1653
        %1725 = vmatpush.bf16.msra.mxu0 %v1648
        %1726 = vmatpush.bf16.msra.mxu0 %v1643
        %1727 = vmatmul.bf16.gmra.mxu0 %v1674
        %v1728 = vpop.f32.mrf.mxu0
        %v1729 = vadd.f32 0.0, %v1728
        %v1730 = vpop.f32.mrf.mxu0
        %v1731 = vadd.f32 0.0, %v1730
        %1732 = vdwg.mxu0
        %1733 = vmatpush.bf16.msra.mxu0 0
        %1734 = vmatpush.bf16.msra.mxu0 0
        %1735 = vmatpush.bf16.msra.mxu0 0
        %1736 = vmatpush.bf16.msra.mxu0 %v1686
        %1737 = vmatpush.bf16.msra.mxu0 %v1659
        %1738 = vmatpush.bf16.msra.mxu0 %v1654
        %1739 = vmatpush.bf16.msra.mxu0 %v1649
        %1740 = vmatpush.bf16.msra.mxu0 %v1644
        %1741 = vmatmul.bf16.gmra.mxu0 %v1674
        %v1742 = vpop.f32.mrf.mxu0
        %v1743 = vadd.f32 0.0, %v1742
        %v1744 = vpop.f32.mrf.mxu0
        %v1745 = vadd.f32 0.0, %v1744
        %1746 = vdwg.mxu0
        %1747 = vmatpush.bf16.msra.mxu0 0
        %1748 = vmatpush.bf16.msra.mxu0 0
        %1749 = vmatpush.bf16.msra.mxu0 0
        %1750 = vmatpush.bf16.msra.mxu0 %v1689
        %1751 = vmatpush.bf16.msra.mxu0 %v1660
        %1752 = vmatpush.bf16.msra.mxu0 %v1655
        %1753 = vmatpush.bf16.msra.mxu0 %v1650
        %1754 = vmatpush.bf16.msra.mxu0 %v1645
        %1755 = vmatmul.bf16.gmra.mxu0 %v1674
        %v1756 = vpop.f32.mrf.mxu0
        %v1757 = vadd.f32 0.0, %v1756
        %v1758 = vpop.f32.mrf.mxu0
        %v1759 = vadd.f32 0.0, %v1758
        %1760 = vdwg.mxu0
        %v1761 = vmax.f32 %v1701, 0.0
        %v1762 = vmax.f32 %v1715, 0.0
        %v1763 = vmax.f32 %v1729, 0.0
        %v1764 = vmax.f32 %v1743, 0.0
        %v1765 = vmax.f32 %v1757, 0.0
        %v1766 = vmax.f32 %v1703, 0.0
        %v1767 = vmax.f32 %v1717, 0.0
        %v1768 = vmax.f32 %v1731, 0.0
        %v1769 = vmax.f32 %v1745, 0.0
        %v1770 = vmax.f32 %v1759, 0.0
        %v1771 = vld [vmem:[%s23] sm:$0xff]
        %v1772 = vld [vmem:[%s23 + $0x8] sm:$0xff]
        %1774 = vset.pattern.permute.xlu0 0
        %1775 = vperm.xlu0 %1774, %v1771
        %v1776 = vpop.permute.xlu0 %1775
        %1779 = vset.pattern.permute.xlu0 0
        %1780 = vperm.xlu0 %1779, %v1772
        %v1781 = vpop.permute.xlu0 %1780
        %v1783 = vmul.f32 %v1761, %v1776
        %v1784 = vmul.f32 %v1762, %v1776
        %v1785 = vmul.f32 %v1763, %v1776
        %v1786 = vmul.f32 %v1764, %v1776
        %v1787 = vmul.f32 %v1765, %v1776
        %v1788 = vmul.f32 %v1766, %v1781
        %v1789 = vmul.f32 %v1767, %v1781
        %v1790 = vmul.f32 %v1768, %v1781
        %v1791 = vmul.f32 %v1769, %v1781
        %v1792 = vmul.f32 %v1770, %v1781
        %v1793 = vld [vmem:[%s25] sm:$0xff]
        %v1794 = vld [vmem:[%s25 + $0x8] sm:$0xff]
        %1796 = vset.pattern.permute.xlu0 0
        %1797 = vperm.xlu0 %1796, %v1793
        %v1798 = vpop.permute.xlu0 %1797
        %1801 = vset.pattern.permute.xlu0 0
        %1802 = vperm.xlu0 %1801, %v1794
        %v1803 = vpop.permute.xlu0 %1802
        %v1805 = vadd.f32 %v1783, %v1798
        %v1806 = vadd.f32 %v1784, %v1798
        %v1807 = vadd.f32 %v1785, %v1798
        %v1808 = vadd.f32 %v1786, %v1798
        %v1809 = vadd.f32 %v1787, %v1798
        %v1810 = vadd.f32 %v1788, %v1803
        %v1811 = vadd.f32 %v1789, %v1803
        %v1812 = vadd.f32 %v1790, %v1803
        %v1813 = vadd.f32 %v1791, %v1803
        %v1814 = vadd.f32 %v1792, %v1803
        %1815 = vrot.lane.b32.xlu0 %v1805, 25
        %v1816 = vpop.permute.xlu0 %1815
        %1817 = vrot.lane.b32.xlu0 %v1810, 25
        %v1818 = vpop.permute.xlu0 %1817
        %1819 = vrot.lane.b32.xlu0 %v1806, 25
        %v1820 = vpop.permute.xlu0 %1819
        %1821 = vrot.lane.b32.xlu0 %v1811, 25
        %v1822 = vpop.permute.xlu0 %1821
        %1823 = vrot.lane.b32.xlu0 %v1807, 25
        %v1824 = vpop.permute.xlu0 %1823
        %1825 = vrot.lane.b32.xlu0 %v1812, 25
        %v1826 = vpop.permute.xlu0 %1825
        %1827 = vrot.lane.b32.xlu0 %v1808, 25
        %v1828 = vpop.permute.xlu0 %1827
        %1829 = vrot.lane.b32.xlu0 %v1813, 25
        %v1830 = vpop.permute.xlu0 %1829
        %1831 = vrot.lane.b32.xlu0 %v1809, 25
        %v1832 = vpop.permute.xlu0 %1831
        %1833 = vrot.lane.b32.xlu0 %v1814, 25
        %v1834 = vpop.permute.xlu0 %1833
        %v1835 = vsel %vm1130, %v1828, %v1832
        %v1836 = vsel %vm1130, %v1830, %v1834
        %v1837 = vsel %vm1130, %v1824, %v1828
        %v1838 = vsel %vm1130, %v1826, %v1830
        %v1839 = vsel %vm1130, %v1820, %v1824
        %v1840 = vsel %vm1130, %v1822, %v1826
        %v1841 = vsel %vm1130, %v1816, %v1820
        %v1842 = vsel %vm1130, %v1818, %v1822
        %v1843 = vsel %vm1130, %v1832, %v1816
        %v1844 = vsel %vm1130, %v1834, %v1818
        %v1845 = vmul.f32 %v1843, %v1136
        %v1846 = vmul.f32 %v1841, %v1137
        %v1847 = vmul.f32 %v1839, %v1138
        %v1848 = vmul.f32 %v1837, %v1139
        %v1849 = vmul.f32 %v1835, %v1140
        %v1850 = vmul.f32 %v1844, %v1136
        %v1851 = vmul.f32 %v1842, %v1137
        %v1852 = vmul.f32 %v1840, %v1138
        %v1853 = vmul.f32 %v1838, %v1139
        %v1854 = vmul.f32 %v1836, %v1140
        %1855 = vrot.lane.b32.xlu0 %v1805, 24
        %v1856 = vpop.permute.xlu0 %1855
        %1857 = vrot.lane.b32.xlu0 %v1810, 24
        %v1858 = vpop.permute.xlu0 %1857
        %1859 = vrot.lane.b32.xlu0 %v1806, 24
        %v1860 = vpop.permute.xlu0 %1859
        %1861 = vrot.lane.b32.xlu0 %v1811, 24
        %v1862 = vpop.permute.xlu0 %1861
        %1863 = vrot.lane.b32.xlu0 %v1807, 24
        %v1864 = vpop.permute.xlu0 %1863
        %1865 = vrot.lane.b32.xlu0 %v1812, 24
        %v1866 = vpop.permute.xlu0 %1865
        %1867 = vrot.lane.b32.xlu0 %v1808, 24
        %v1868 = vpop.permute.xlu0 %1867
        %1869 = vrot.lane.b32.xlu0 %v1813, 24
        %v1870 = vpop.permute.xlu0 %1869
        %1871 = vrot.lane.b32.xlu0 %v1809, 24
        %v1872 = vpop.permute.xlu0 %1871
        %1873 = vrot.lane.b32.xlu0 %v1814, 24
        %v1874 = vpop.permute.xlu0 %1873
        %v1875 = vsel %vm1156, %v1868, %v1872
        %v1876 = vsel %vm1156, %v1870, %v1874
        %v1877 = vsel %vm1156, %v1864, %v1868
        %v1878 = vsel %vm1156, %v1866, %v1870
        %v1879 = vsel %vm1156, %v1860, %v1864
        %v1880 = vsel %vm1156, %v1862, %v1866
        %v1881 = vsel %vm1156, %v1856, %v1860
        %v1882 = vsel %vm1156, %v1858, %v1862
        %v1883 = vsel %vm1156, %v1872, %v1856
        %v1884 = vsel %vm1156, %v1874, %v1858
        %v1885 = vmul.f32 %v1883, %v1162
        %v1886 = vmul.f32 %v1881, %v1163
        %v1887 = vmul.f32 %v1879, %v1164
        %v1888 = vmul.f32 %v1877, %v1165
        %v1889 = vmul.f32 %v1875, %v1166
        %v1890 = vmul.f32 %v1884, %v1162
        %v1891 = vmul.f32 %v1882, %v1163
        %v1892 = vmul.f32 %v1880, %v1164
        %v1893 = vmul.f32 %v1878, %v1165
        %v1894 = vmul.f32 %v1876, %v1166
        %1895 = vrot.lane.b32.xlu0 %v1805, 23
        %v1896 = vpop.permute.xlu0 %1895
        %1897 = vrot.lane.b32.xlu0 %v1810, 23
        %v1898 = vpop.permute.xlu0 %1897
        %1899 = vrot.lane.b32.xlu0 %v1806, 23
        %v1900 = vpop.permute.xlu0 %1899
        %1901 = vrot.lane.b32.xlu0 %v1811, 23
        %v1902 = vpop.permute.xlu0 %1901
        %1903 = vrot.lane.b32.xlu0 %v1807, 23
        %v1904 = vpop.permute.xlu0 %1903
        %1905 = vrot.lane.b32.xlu0 %v1812, 23
        %v1906 = vpop.permute.xlu0 %1905
        %1907 = vrot.lane.b32.xlu0 %v1808, 23
        %v1908 = vpop.permute.xlu0 %1907
        %1909 = vrot.lane.b32.xlu0 %v1813, 23
        %v1910 = vpop.permute.xlu0 %1909
        %1911 = vrot.lane.b32.xlu0 %v1809, 23
        %v1912 = vpop.permute.xlu0 %1911
        %1913 = vrot.lane.b32.xlu0 %v1814, 23
        %v1914 = vpop.permute.xlu0 %1913
        %v1915 = vsel %vm1182, %v1908, %v1912
        %v1916 = vsel %vm1182, %v1910, %v1914
        %v1917 = vsel %vm1182, %v1904, %v1908
        %v1918 = vsel %vm1182, %v1906, %v1910
        %v1919 = vsel %vm1182, %v1900, %v1904
        %v1920 = vsel %vm1182, %v1902, %v1906
        %v1921 = vsel %vm1182, %v1896, %v1900
        %v1922 = vsel %vm1182, %v1898, %v1902
        %v1923 = vsel %vm1182, %v1912, %v1896
        %v1924 = vsel %vm1182, %v1914, %v1898
        %v1925 = vmul.f32 %v1923, %v1188
        %v1926 = vmul.f32 %v1921, %v1189
        %v1927 = vmul.f32 %v1919, %v1190
        %v1928 = vmul.f32 %v1917, %v1191
        %v1929 = vmul.f32 %v1915, %v1192
        %v1930 = vmul.f32 %v1924, %v1188
        %v1931 = vmul.f32 %v1922, %v1189
        %v1932 = vmul.f32 %v1920, %v1190
        %v1933 = vmul.f32 %v1918, %v1191
        %v1934 = vmul.f32 %v1916, %v1192
        %1935 = vrot.lane.b32.xlu0 %v1805, 1
        %v1936 = vpop.permute.xlu0 %1935
        %1937 = vrot.lane.b32.xlu0 %v1810, 1
        %v1938 = vpop.permute.xlu0 %1937
        %1939 = vrot.lane.b32.xlu0 %v1806, 1
        %v1940 = vpop.permute.xlu0 %1939
        %1941 = vrot.lane.b32.xlu0 %v1811, 1
        %v1942 = vpop.permute.xlu0 %1941
        %1943 = vrot.lane.b32.xlu0 %v1807, 1
        %v1944 = vpop.permute.xlu0 %1943
        %1945 = vrot.lane.b32.xlu0 %v1812, 1
        %v1946 = vpop.permute.xlu0 %1945
        %1947 = vrot.lane.b32.xlu0 %v1808, 1
        %v1948 = vpop.permute.xlu0 %1947
        %1949 = vrot.lane.b32.xlu0 %v1813, 1
        %v1950 = vpop.permute.xlu0 %1949
        %1951 = vrot.lane.b32.xlu0 %v1809, 1
        %v1952 = vpop.permute.xlu0 %1951
        %1953 = vrot.lane.b32.xlu0 %v1814, 1
        %v1954 = vpop.permute.xlu0 %1953
        %v1955 = vsel %vm1208, %v1948, %v1952
        %v1956 = vsel %vm1208, %v1950, %v1954
        %v1957 = vsel %vm1208, %v1944, %v1948
        %v1958 = vsel %vm1208, %v1946, %v1950
        %v1959 = vsel %vm1208, %v1940, %v1944
        %v1960 = vsel %vm1208, %v1942, %v1946
        %v1961 = vsel %vm1208, %v1936, %v1940
        %v1962 = vsel %vm1208, %v1938, %v1942
        %v1963 = vsel %vm1208, %v1952, %v1936
        %v1964 = vsel %vm1208, %v1954, %v1938
        %v1965 = vmul.f32 %v1963, %v1214
        %v1966 = vmul.f32 %v1961, %v1215
        %v1967 = vmul.f32 %v1959, %v1216
        %v1968 = vmul.f32 %v1957, %v1217
        %v1969 = vmul.f32 %v1955, %v1218
        %v1970 = vmul.f32 %v1964, %v1214
        %v1971 = vmul.f32 %v1962, %v1215
        %v1972 = vmul.f32 %v1960, %v1216
        %v1973 = vmul.f32 %v1958, %v1217
        %v1974 = vmul.f32 %v1956, %v1218
        %v1975 = vmul.f32 %v1805, %v1224
        %v1976 = vmul.f32 %v1806, %v1225
        %v1977 = vmul.f32 %v1807, %v1226
        %v1978 = vmul.f32 %v1808, %v1227
        %v1979 = vmul.f32 %v1809, %v1228
        %v1980 = vmul.f32 %v1810, %v1224
        %v1981 = vmul.f32 %v1811, %v1225
        %v1982 = vmul.f32 %v1812, %v1226
        %v1983 = vmul.f32 %v1813, %v1227
        %v1984 = vmul.f32 %v1814, %v1228
        %1985 = vrot.lane.b32.xlu0 %v1805, 127
        %v1986 = vpop.permute.xlu0 %1985
        %1987 = vrot.lane.b32.xlu0 %v1810, 127
        %v1988 = vpop.permute.xlu0 %1987
        %1989 = vrot.lane.b32.xlu0 %v1806, 127
        %v1990 = vpop.permute.xlu0 %1989
        %1991 = vrot.lane.b32.xlu0 %v1811, 127
        %v1992 = vpop.permute.xlu0 %1991
        %1993 = vrot.lane.b32.xlu0 %v1807, 127
        %v1994 = vpop.permute.xlu0 %1993
        %1995 = vrot.lane.b32.xlu0 %v1812, 127
        %v1996 = vpop.permute.xlu0 %1995
        %1997 = vrot.lane.b32.xlu0 %v1808, 127
        %v1998 = vpop.permute.xlu0 %1997
        %1999 = vrot.lane.b32.xlu0 %v1813, 127
        %v2000 = vpop.permute.xlu0 %1999
        %2001 = vrot.lane.b32.xlu0 %v1809, 127
        %v2002 = vpop.permute.xlu0 %2001
        %2003 = vrot.lane.b32.xlu0 %v1814, 127
        %v2004 = vpop.permute.xlu0 %2003
        %v2005 = vsel %vm1244, %v1998, %v2002
        %v2006 = vsel %vm1244, %v2000, %v2004
        %v2007 = vsel %vm1244, %v1994, %v1998
        %v2008 = vsel %vm1244, %v1996, %v2000
        %v2009 = vsel %vm1244, %v1990, %v1994
        %v2010 = vsel %vm1244, %v1992, %v1996
        %v2011 = vsel %vm1244, %v1986, %v1990
        %v2012 = vsel %vm1244, %v1988, %v1992
        %v2013 = vsel %vm1244, %v2002, %v1986
        %v2014 = vsel %vm1244, %v2004, %v1988
        %v2015 = vmul.f32 %v2011, %v1250
        %v2016 = vmul.f32 %v2009, %v1251
        %v2017 = vmul.f32 %v2007, %v1252
        %v2018 = vmul.f32 %v2005, %v1253
        %v2019 = vmul.f32 %v2013, %v1254
        %v2020 = vmul.f32 %v2012, %v1250
        %v2021 = vmul.f32 %v2010, %v1251
        %v2022 = vmul.f32 %v2008, %v1252
        %v2023 = vmul.f32 %v2006, %v1253
        %v2024 = vmul.f32 %v2014, %v1254
        %2025 = vrot.lane.b32.xlu0 %v1805, 105
        %v2026 = vpop.permute.xlu0 %2025
        %2027 = vrot.lane.b32.xlu0 %v1810, 105
        %v2028 = vpop.permute.xlu0 %2027
        %2029 = vrot.lane.b32.xlu0 %v1806, 105
        %v2030 = vpop.permute.xlu0 %2029
        %2031 = vrot.lane.b32.xlu0 %v1811, 105
        %v2032 = vpop.permute.xlu0 %2031
        %2033 = vrot.lane.b32.xlu0 %v1807, 105
        %v2034 = vpop.permute.xlu0 %2033
        %2035 = vrot.lane.b32.xlu0 %v1812, 105
        %v2036 = vpop.permute.xlu0 %2035
        %2037 = vrot.lane.b32.xlu0 %v1808, 105
        %v2038 = vpop.permute.xlu0 %2037
        %2039 = vrot.lane.b32.xlu0 %v1813, 105
        %v2040 = vpop.permute.xlu0 %2039
        %2041 = vrot.lane.b32.xlu0 %v1809, 105
        %v2042 = vpop.permute.xlu0 %2041
        %2043 = vrot.lane.b32.xlu0 %v1814, 105
        %v2044 = vpop.permute.xlu0 %2043
        %v2045 = vsel %vm1270, %v2038, %v2042
        %v2046 = vsel %vm1270, %v2040, %v2044
        %v2047 = vsel %vm1270, %v2034, %v2038
        %v2048 = vsel %vm1270, %v2036, %v2040
        %v2049 = vsel %vm1270, %v2030, %v2034
        %v2050 = vsel %vm1270, %v2032, %v2036
        %v2051 = vsel %vm1270, %v2026, %v2030
        %v2052 = vsel %vm1270, %v2028, %v2032
        %v2053 = vsel %vm1270, %v2042, %v2026
        %v2054 = vsel %vm1270, %v2044, %v2028
        %v2055 = vmul.f32 %v2051, %v1276
        %v2056 = vmul.f32 %v2049, %v1277
        %v2057 = vmul.f32 %v2047, %v1278
        %v2058 = vmul.f32 %v2045, %v1279
        %v2059 = vmul.f32 %v2053, %v1280
        %v2060 = vmul.f32 %v2052, %v1276
        %v2061 = vmul.f32 %v2050, %v1277
        %v2062 = vmul.f32 %v2048, %v1278
        %v2063 = vmul.f32 %v2046, %v1279
        %v2064 = vmul.f32 %v2054, %v1280
        %2065 = vrot.lane.b32.xlu0 %v1805, 104
        %v2066 = vpop.permute.xlu0 %2065
        %2067 = vrot.lane.b32.xlu0 %v1810, 104
        %v2068 = vpop.permute.xlu0 %2067
        %2069 = vrot.lane.b32.xlu0 %v1806, 104
        %v2070 = vpop.permute.xlu0 %2069
        %2071 = vrot.lane.b32.xlu0 %v1811, 104
        %v2072 = vpop.permute.xlu0 %2071
        %2073 = vrot.lane.b32.xlu0 %v1807, 104
        %v2074 = vpop.permute.xlu0 %2073
        %2075 = vrot.lane.b32.xlu0 %v1812, 104
        %v2076 = vpop.permute.xlu0 %2075
        %2077 = vrot.lane.b32.xlu0 %v1808, 104
        %v2078 = vpop.permute.xlu0 %2077
        %2079 = vrot.lane.b32.xlu0 %v1813, 104
        %v2080 = vpop.permute.xlu0 %2079
        %2081 = vrot.lane.b32.xlu0 %v1809, 104
        %v2082 = vpop.permute.xlu0 %2081
        %2083 = vrot.lane.b32.xlu0 %v1814, 104
        %v2084 = vpop.permute.xlu0 %2083
        %v2085 = vsel %vm1296, %v2078, %v2082
        %v2086 = vsel %vm1296, %v2080, %v2084
        %v2087 = vsel %vm1296, %v2074, %v2078
        %v2088 = vsel %vm1296, %v2076, %v2080
        %v2089 = vsel %vm1296, %v2070, %v2074
        %v2090 = vsel %vm1296, %v2072, %v2076
        %v2091 = vsel %vm1296, %v2066, %v2070
        %v2092 = vsel %vm1296, %v2068, %v2072
        %v2093 = vsel %vm1296, %v2082, %v2066
        %v2094 = vsel %vm1296, %v2084, %v2068
        %v2095 = vmul.f32 %v2091, %v1302
        %v2096 = vmul.f32 %v2089, %v1303
        %v2097 = vmul.f32 %v2087, %v1304
        %v2098 = vmul.f32 %v2085, %v1305
        %v2099 = vmul.f32 %v2093, %v1306
        %v2100 = vmul.f32 %v2092, %v1302
        %v2101 = vmul.f32 %v2090, %v1303
        %v2102 = vmul.f32 %v2088, %v1304
        %v2103 = vmul.f32 %v2086, %v1305
        %v2104 = vmul.f32 %v2094, %v1306
        %2105 = vrot.lane.b32.xlu0 %v1805, 103
        %v2106 = vpop.permute.xlu0 %2105
        %2107 = vrot.lane.b32.xlu0 %v1810, 103
        %v2108 = vpop.permute.xlu0 %2107
        %2109 = vrot.lane.b32.xlu0 %v1806, 103
        %v2110 = vpop.permute.xlu0 %2109
        %2111 = vrot.lane.b32.xlu0 %v1811, 103
        %v2112 = vpop.permute.xlu0 %2111
        %2113 = vrot.lane.b32.xlu0 %v1807, 103
        %v2114 = vpop.permute.xlu0 %2113
        %2115 = vrot.lane.b32.xlu0 %v1812, 103
        %v2116 = vpop.permute.xlu0 %2115
        %2117 = vrot.lane.b32.xlu0 %v1808, 103
        %v2118 = vpop.permute.xlu0 %2117
        %2119 = vrot.lane.b32.xlu0 %v1813, 103
        %v2120 = vpop.permute.xlu0 %2119
        %2121 = vrot.lane.b32.xlu0 %v1809, 103
        %v2122 = vpop.permute.xlu0 %2121
        %2123 = vrot.lane.b32.xlu0 %v1814, 103
        %v2124 = vpop.permute.xlu0 %2123
        %v2125 = vsel %vm1322, %v2118, %v2122
        %v2126 = vsel %vm1322, %v2120, %v2124
        %v2127 = vsel %vm1322, %v2114, %v2118
        %v2128 = vsel %vm1322, %v2116, %v2120
        %v2129 = vsel %vm1322, %v2110, %v2114
        %v2130 = vsel %vm1322, %v2112, %v2116
        %v2131 = vsel %vm1322, %v2106, %v2110
        %v2132 = vsel %vm1322, %v2108, %v2112
        %v2133 = vsel %vm1322, %v2122, %v2106
        %v2134 = vsel %vm1322, %v2124, %v2108
        %v2135 = vmul.f32 %v2131, %v1328
        %v2136 = vmul.f32 %v2129, %v1329
        %v2137 = vmul.f32 %v2127, %v1330
        %v2138 = vmul.f32 %v2125, %v1331
        %v2139 = vmul.f32 %v2133, %v1332
        %v2140 = vmul.f32 %v2132, %v1328
        %v2141 = vmul.f32 %v2130, %v1329
        %v2142 = vmul.f32 %v2128, %v1330
        %v2143 = vmul.f32 %v2126, %v1331
        %v2144 = vmul.f32 %v2134, %v1332
        %v2145 = vpack.c.bf16 %v1850, %v1845
        %v2146 = vpack.c.bf16 %v1851, %v1846
        %v2147 = vpack.c.bf16 %v1852, %v1847
        %v2148 = vpack.c.bf16 %v1853, %v1848
        %v2149 = vpack.c.bf16 %v1854, %v1849
        %v2150 = vpack.c.bf16 %v1890, %v1885
        %v2151 = vpack.c.bf16 %v1891, %v1886
        %v2152 = vpack.c.bf16 %v1892, %v1887
        %v2153 = vpack.c.bf16 %v1893, %v1888
        %v2154 = vpack.c.bf16 %v1894, %v1889
        %v2155 = vpack.c.bf16 %v1930, %v1925
        %v2156 = vpack.c.bf16 %v1931, %v1926
        %v2157 = vpack.c.bf16 %v1932, %v1927
        %v2158 = vpack.c.bf16 %v1933, %v1928
        %v2159 = vpack.c.bf16 %v1934, %v1929
        %v2160 = vpack.c.bf16 %v1970, %v1965
        %v2161 = vpack.c.bf16 %v1971, %v1966
        %v2162 = vpack.c.bf16 %v1972, %v1967
        %v2163 = vpack.c.bf16 %v1973, %v1968
        %v2164 = vpack.c.bf16 %v1974, %v1969
        %v2165 = vpack.c.bf16 %v1980, %v1975
        %v2166 = vpack.c.bf16 %v1981, %v1976
        %v2167 = vpack.c.bf16 %v1982, %v1977
        %v2168 = vpack.c.bf16 %v1983, %v1978
        %v2169 = vpack.c.bf16 %v1984, %v1979
        %v2170 = vpack.c.bf16 %v2020, %v2015
        %v2171 = vpack.c.bf16 %v2021, %v2016
        %v2172 = vpack.c.bf16 %v2022, %v2017
        %v2173 = vpack.c.bf16 %v2023, %v2018
        %v2174 = vpack.c.bf16 %v2024, %v2019
        %v2175 = vpack.c.bf16 %v2060, %v2055
        %v2176 = vpack.c.bf16 %v2061, %v2056
        %v2177 = vpack.c.bf16 %v2062, %v2057
        %v2178 = vpack.c.bf16 %v2063, %v2058
        %v2179 = vpack.c.bf16 %v2064, %v2059
        %v2180 = vpack.c.bf16 %v2100, %v2095
        %v2181 = vpack.c.bf16 %v2101, %v2096
        %v2182 = vpack.c.bf16 %v2102, %v2097
        %v2183 = vpack.c.bf16 %v2103, %v2098
        %v2184 = vpack.c.bf16 %v2104, %v2099
        %v2185 = vpack.c.bf16 %v2140, %v2135
        %v2186 = vpack.c.bf16 %v2141, %v2136
        %v2187 = vpack.c.bf16 %v2142, %v2137
        %v2188 = vpack.c.bf16 %v2143, %v2138
        %v2189 = vpack.c.bf16 %v2144, %v2139
        %v2190 = vld [vmem:[%s27] sm:$0xff]
        %v2191 = vld [vmem:[%s27 + $0x8] sm:$0xff]
        %v2192 = vld [vmem:[%s27 + $0x10] sm:$0xff]
        %v2193 = vld [vmem:[%s27 + $0x18] sm:$0xff]
        %v2198 = vunpack.c.l.b16 %v2190
        %v2199 = vunpack.c.h.b16 %v2190
        %v2200 = vunpack.c.l.b16 %v2191
        %v2201 = vunpack.c.h.b16 %v2191
        %v2202 = vunpack.c.l.b16 %v2192
        %v2203 = vunpack.c.h.b16 %v2192
        %v2204 = vunpack.c.l.b16 %v2193
        %v2205 = vunpack.c.h.b16 %v2193
        %v2206 = vpack.c.b16 %v2200, %v2198
        %v2207 = vpack.c.b16 %v2201, %v2199
        %v2208 = vpack.c.b16 %v2204, %v2202
        %v2209 = vpack.c.b16 %v2205, %v2203
        %vm2212 = vcmask 130048
        %v2214 = vsel %vm2212, %v2207, 0
        %v2217 = vsel %vm2212, %v2209, 0
        %2219 = vmatpush.bf16.msra.mxu0 %v2180
        %2220 = vmatpush.bf16.msra.mxu0 %v2175
        %2221 = vmatpush.bf16.msra.mxu0 %v2170
        %2222 = vmatpush.bf16.msra.mxu0 %v2165
        %2223 = vmatpush.bf16.msra.mxu0 %v2160
        %2224 = vmatpush.bf16.msra.mxu0 %v2155
        %2225 = vmatpush.bf16.msra.mxu0 %v2150
        %2226 = vmatpush.bf16.msra.mxu0 %v2145
        %2227 = vmatmul.bf16.gmra.mxu0 %v2206
        %v2228 = vpop.f32.mrf.mxu0
        %v2229 = vadd.f32 0.0, %v2228
        %v2230 = vpop.f32.mrf.mxu0
        %v2231 = vadd.f32 0.0, %v2230
        %2232 = vmatmul.bf16.gmra.mxu0 %v2208
        %v2233 = vpop.f32.mrf.mxu0
        %v2234 = vadd.f32 0.0, %v2233
        %v2235 = vpop.f32.mrf.mxu0
        %v2236 = vadd.f32 0.0, %v2235
        %2237 = vdwg.mxu0
        %2238 = vmatpush.bf16.msra.mxu0 0
        %2239 = vmatpush.bf16.msra.mxu0 0
        %2240 = vmatpush.bf16.msra.mxu0 0
        %2241 = vmatpush.bf16.msra.mxu0 0
        %2242 = vmatpush.bf16.msra.mxu0 0
        %2243 = vmatpush.bf16.msra.mxu0 0
        %2244 = vmatpush.bf16.msra.mxu0 0
        %2245 = vmatpush.bf16.msra.mxu0 %v2185
        %2246 = vmatmul.bf16.gmra.mxu0 %v2214
        %v2247 = vpop.f32.mrf.mxu0
        %v2248 = vadd.f32 %v2229, %v2247
        %v2249 = vpop.f32.mrf.mxu0
        %v2250 = vadd.f32 %v2231, %v2249
        %2251 = vmatmul.bf16.gmra.mxu0 %v2217
        %v2252 = vpop.f32.mrf.mxu0
        %v2253 = vadd.f32 %v2234, %v2252
        %v2254 = vpop.f32.mrf.mxu0
        %v2255 = vadd.f32 %v2236, %v2254
        %2256 = vdwg.mxu0
        %2257 = vmatpush.bf16.msra.mxu0 %v2181
        %2258 = vmatpush.bf16.msra.mxu0 %v2176
        %2259 = vmatpush.bf16.msra.mxu0 %v2171
        %2260 = vmatpush.bf16.msra.mxu0 %v2166
        %2261 = vmatpush.bf16.msra.mxu0 %v2161
        %2262 = vmatpush.bf16.msra.mxu0 %v2156
        %2263 = vmatpush.bf16.msra.mxu0 %v2151
        %2264 = vmatpush.bf16.msra.mxu0 %v2146
        %2265 = vmatmul.bf16.gmra.mxu0 %v2206
        %v2266 = vpop.f32.mrf.mxu0
        %v2267 = vadd.f32 0.0, %v2266
        %v2268 = vpop.f32.mrf.mxu0
        %v2269 = vadd.f32 0.0, %v2268
        %2270 = vmatmul.bf16.gmra.mxu0 %v2208
        %v2271 = vpop.f32.mrf.mxu0
        %v2272 = vadd.f32 0.0, %v2271
        %v2273 = vpop.f32.mrf.mxu0
        %v2274 = vadd.f32 0.0, %v2273
        %2275 = vdwg.mxu0
        %2276 = vmatpush.bf16.msra.mxu0 0
        %2277 = vmatpush.bf16.msra.mxu0 0
        %2278 = vmatpush.bf16.msra.mxu0 0
        %2279 = vmatpush.bf16.msra.mxu0 0
        %2280 = vmatpush.bf16.msra.mxu0 0
        %2281 = vmatpush.bf16.msra.mxu0 0
        %2282 = vmatpush.bf16.msra.mxu0 0
        %2283 = vmatpush.bf16.msra.mxu0 %v2186
        %2284 = vmatmul.bf16.gmra.mxu0 %v2214
        %v2285 = vpop.f32.mrf.mxu0
        %v2286 = vadd.f32 %v2267, %v2285
        %v2287 = vpop.f32.mrf.mxu0
        %v2288 = vadd.f32 %v2269, %v2287
        %2289 = vmatmul.bf16.gmra.mxu0 %v2217
        %v2290 = vpop.f32.mrf.mxu0
        %v2291 = vadd.f32 %v2272, %v2290
        %v2292 = vpop.f32.mrf.mxu0
        %v2293 = vadd.f32 %v2274, %v2292
        %2294 = vdwg.mxu0
        %2295 = vmatpush.bf16.msra.mxu0 %v2182
        %2296 = vmatpush.bf16.msra.mxu0 %v2177
        %2297 = vmatpush.bf16.msra.mxu0 %v2172
        %2298 = vmatpush.bf16.msra.mxu0 %v2167
        %2299 = vmatpush.bf16.msra.mxu0 %v2162
        %2300 = vmatpush.bf16.msra.mxu0 %v2157
        %2301 = vmatpush.bf16.msra.mxu0 %v2152
        %2302 = vmatpush.bf16.msra.mxu0 %v2147
        %2303 = vmatmul.bf16.gmra.mxu0 %v2206
        %v2304 = vpop.f32.mrf.mxu0
        %v2305 = vadd.f32 0.0, %v2304
        %v2306 = vpop.f32.mrf.mxu0
        %v2307 = vadd.f32 0.0, %v2306
        %2308 = vmatmul.bf16.gmra.mxu0 %v2208
        %v2309 = vpop.f32.mrf.mxu0
        %v2310 = vadd.f32 0.0, %v2309
        %v2311 = vpop.f32.mrf.mxu0
        %v2312 = vadd.f32 0.0, %v2311
        %2313 = vdwg.mxu0
        %2314 = vmatpush.bf16.msra.mxu0 0
        %2315 = vmatpush.bf16.msra.mxu0 0
        %2316 = vmatpush.bf16.msra.mxu0 0
        %2317 = vmatpush.bf16.msra.mxu0 0
        %2318 = vmatpush.bf16.msra.mxu0 0
        %2319 = vmatpush.bf16.msra.mxu0 0
        %2320 = vmatpush.bf16.msra.mxu0 0
        %2321 = vmatpush.bf16.msra.mxu0 %v2187
        %2322 = vmatmul.bf16.gmra.mxu0 %v2214
        %v2323 = vpop.f32.mrf.mxu0
        %v2324 = vadd.f32 %v2305, %v2323
        %v2325 = vpop.f32.mrf.mxu0
        %v2326 = vadd.f32 %v2307, %v2325
        %2327 = vmatmul.bf16.gmra.mxu0 %v2217
        %v2328 = vpop.f32.mrf.mxu0
        %v2329 = vadd.f32 %v2310, %v2328
        %v2330 = vpop.f32.mrf.mxu0
        %v2331 = vadd.f32 %v2312, %v2330
        %2332 = vdwg.mxu0
        %2333 = vmatpush.bf16.msra.mxu0 %v2183
        %2334 = vmatpush.bf16.msra.mxu0 %v2178
        %2335 = vmatpush.bf16.msra.mxu0 %v2173
        %2336 = vmatpush.bf16.msra.mxu0 %v2168
        %2337 = vmatpush.bf16.msra.mxu0 %v2163
        %2338 = vmatpush.bf16.msra.mxu0 %v2158
        %2339 = vmatpush.bf16.msra.mxu0 %v2153
        %2340 = vmatpush.bf16.msra.mxu0 %v2148
        %2341 = vmatmul.bf16.gmra.mxu0 %v2206
        %v2342 = vpop.f32.mrf.mxu0
        %v2343 = vadd.f32 0.0, %v2342
        %v2344 = vpop.f32.mrf.mxu0
        %v2345 = vadd.f32 0.0, %v2344
        %2346 = vmatmul.bf16.gmra.mxu0 %v2208
        %v2347 = vpop.f32.mrf.mxu0
        %v2348 = vadd.f32 0.0, %v2347
        %v2349 = vpop.f32.mrf.mxu0
        %v2350 = vadd.f32 0.0, %v2349
        %2351 = vdwg.mxu0
        %2352 = vmatpush.bf16.msra.mxu0 0
        %2353 = vmatpush.bf16.msra.mxu0 0
        %2354 = vmatpush.bf16.msra.mxu0 0
        %2355 = vmatpush.bf16.msra.mxu0 0
        %2356 = vmatpush.bf16.msra.mxu0 0
        %2357 = vmatpush.bf16.msra.mxu0 0
        %2358 = vmatpush.bf16.msra.mxu0 0
        %2359 = vmatpush.bf16.msra.mxu0 %v2188
        %2360 = vmatmul.bf16.gmra.mxu0 %v2214
        %v2361 = vpop.f32.mrf.mxu0
        %v2362 = vadd.f32 %v2343, %v2361
        %v2363 = vpop.f32.mrf.mxu0
        %v2364 = vadd.f32 %v2345, %v2363
        %2365 = vmatmul.bf16.gmra.mxu0 %v2217
        %v2366 = vpop.f32.mrf.mxu0
        %v2367 = vadd.f32 %v2348, %v2366
        %v2368 = vpop.f32.mrf.mxu0
        %v2369 = vadd.f32 %v2350, %v2368
        %2370 = vdwg.mxu0
        %2371 = vmatpush.bf16.msra.mxu0 %v2184
        %2372 = vmatpush.bf16.msra.mxu0 %v2179
        %2373 = vmatpush.bf16.msra.mxu0 %v2174
        %2374 = vmatpush.bf16.msra.mxu0 %v2169
        %2375 = vmatpush.bf16.msra.mxu0 %v2164
        %2376 = vmatpush.bf16.msra.mxu0 %v2159
        %2377 = vmatpush.bf16.msra.mxu0 %v2154
        %2378 = vmatpush.bf16.msra.mxu0 %v2149
        %2379 = vmatmul.bf16.gmra.mxu0 %v2206
        %v2380 = vpop.f32.mrf.mxu0
        %v2381 = vadd.f32 0.0, %v2380
        %v2382 = vpop.f32.mrf.mxu0
        %v2383 = vadd.f32 0.0, %v2382
        %2384 = vmatmul.bf16.gmra.mxu0 %v2208
        %v2385 = vpop.f32.mrf.mxu0
        %v2386 = vadd.f32 0.0, %v2385
        %v2387 = vpop.f32.mrf.mxu0
        %v2388 = vadd.f32 0.0, %v2387
        %2389 = vdwg.mxu0
        %2390 = vmatpush.bf16.msra.mxu0 0
        %2391 = vmatpush.bf16.msra.mxu0 0
        %2392 = vmatpush.bf16.msra.mxu0 0
        %2393 = vmatpush.bf16.msra.mxu0 0
        %2394 = vmatpush.bf16.msra.mxu0 0
        %2395 = vmatpush.bf16.msra.mxu0 0
        %2396 = vmatpush.bf16.msra.mxu0 0
        %2397 = vmatpush.bf16.msra.mxu0 %v2189
        %2398 = vmatmul.bf16.gmra.mxu0 %v2214
        %v2399 = vpop.f32.mrf.mxu0
        %v2400 = vadd.f32 %v2381, %v2399
        %v2401 = vpop.f32.mrf.mxu0
        %v2402 = vadd.f32 %v2383, %v2401
        %2403 = vmatmul.bf16.gmra.mxu0 %v2217
        %v2404 = vpop.f32.mrf.mxu0
        %v2405 = vadd.f32 %v2386, %v2404
        %v2406 = vpop.f32.mrf.mxu0
        %v2407 = vadd.f32 %v2388, %v2406
        %2408 = vdwg.mxu0
        %v2409 = vmax.f32 %v2248, 0.0
        %v2410 = vmax.f32 %v2286, 0.0
        %v2411 = vmax.f32 %v2324, 0.0
        %v2412 = vmax.f32 %v2362, 0.0
        %v2413 = vmax.f32 %v2400, 0.0
        %v2414 = vmax.f32 %v2250, 0.0
        %v2415 = vmax.f32 %v2288, 0.0
        %v2416 = vmax.f32 %v2326, 0.0
        %v2417 = vmax.f32 %v2364, 0.0
        %v2418 = vmax.f32 %v2402, 0.0
        %v2419 = vmax.f32 %v2253, 0.0
        %v2420 = vmax.f32 %v2291, 0.0
        %v2421 = vmax.f32 %v2329, 0.0
        %v2422 = vmax.f32 %v2367, 0.0
        %v2423 = vmax.f32 %v2405, 0.0
        %v2424 = vmax.f32 %v2255, 0.0
        %v2425 = vmax.f32 %v2293, 0.0
        %v2426 = vmax.f32 %v2331, 0.0
        %v2427 = vmax.f32 %v2369, 0.0
        %v2428 = vmax.f32 %v2407, 0.0
        %v2429 = vld [vmem:[%s29] sm:$0xff]
        %v2430 = vld [vmem:[%s29 + $0x8] sm:$0xff]
        %v2431 = vld [vmem:[%s29 + $0x10] sm:$0xff]
        %v2432 = vld [vmem:[%s29 + $0x18] sm:$0xff]
        %2434 = vset.pattern.permute.xlu0 0
        %2435 = vperm.xlu0 %2434, %v2429
        %v2436 = vpop.permute.xlu0 %2435
        %2439 = vset.pattern.permute.xlu0 0
        %2440 = vperm.xlu0 %2439, %v2430
        %v2441 = vpop.permute.xlu0 %2440
        %2444 = vset.pattern.permute.xlu0 0
        %2445 = vperm.xlu0 %2444, %v2431
        %v2446 = vpop.permute.xlu0 %2445
        %2449 = vset.pattern.permute.xlu0 0
        %2450 = vperm.xlu0 %2449, %v2432
        %v2451 = vpop.permute.xlu0 %2450
        %v2453 = vmul.f32 %v2409, %v2436
        %v2454 = vmul.f32 %v2410, %v2436
        %v2455 = vmul.f32 %v2411, %v2436
        %v2456 = vmul.f32 %v2412, %v2436
        %v2457 = vmul.f32 %v2413, %v2436
        %v2458 = vmul.f32 %v2414, %v2441
        %v2459 = vmul.f32 %v2415, %v2441
        %v2460 = vmul.f32 %v2416, %v2441
        %v2461 = vmul.f32 %v2417, %v2441
        %v2462 = vmul.f32 %v2418, %v2441
        %v2463 = vmul.f32 %v2419, %v2446
        %v2464 = vmul.f32 %v2420, %v2446
        %v2465 = vmul.f32 %v2421, %v2446
        %v2466 = vmul.f32 %v2422, %v2446
        %v2467 = vmul.f32 %v2423, %v2446
        %v2468 = vmul.f32 %v2424, %v2451
        %v2469 = vmul.f32 %v2425, %v2451
        %v2470 = vmul.f32 %v2426, %v2451
        %v2471 = vmul.f32 %v2427, %v2451
        %v2472 = vmul.f32 %v2428, %v2451
        %v2473 = vld [vmem:[%s31] sm:$0xff]
        %v2474 = vld [vmem:[%s31 + $0x8] sm:$0xff]
        %v2475 = vld [vmem:[%s31 + $0x10] sm:$0xff]
        %v2476 = vld [vmem:[%s31 + $0x18] sm:$0xff]
        %2478 = vset.pattern.permute.xlu0 0
        %2479 = vperm.xlu0 %2478, %v2473
        %v2480 = vpop.permute.xlu0 %2479
        %2483 = vset.pattern.permute.xlu0 0
        %2484 = vperm.xlu0 %2483, %v2474
        %v2485 = vpop.permute.xlu0 %2484
        %2488 = vset.pattern.permute.xlu0 0
        %2489 = vperm.xlu0 %2488, %v2475
        %v2490 = vpop.permute.xlu0 %2489
        %2493 = vset.pattern.permute.xlu0 0
        %2494 = vperm.xlu0 %2493, %v2476
        %v2495 = vpop.permute.xlu0 %2494
        %v2497 = vadd.f32 %v2453, %v2480
        %v2498 = vadd.f32 %v2454, %v2480
        %v2499 = vadd.f32 %v2455, %v2480
        %v2500 = vadd.f32 %v2456, %v2480
        %v2501 = vadd.f32 %v2457, %v2480
        %v2502 = vadd.f32 %v2458, %v2485
        %v2503 = vadd.f32 %v2459, %v2485
        %v2504 = vadd.f32 %v2460, %v2485
        %v2505 = vadd.f32 %v2461, %v2485
        %v2506 = vadd.f32 %v2462, %v2485
        %v2507 = vadd.f32 %v2463, %v2490
        %v2508 = vadd.f32 %v2464, %v2490
        %v2509 = vadd.f32 %v2465, %v2490
        %v2510 = vadd.f32 %v2466, %v2490
        %v2511 = vadd.f32 %v2467, %v2490
        %v2512 = vadd.f32 %v2468, %v2495
        %v2513 = vadd.f32 %v2469, %v2495
        %v2514 = vadd.f32 %v2470, %v2495
        %v2515 = vadd.f32 %v2471, %v2495
        %v2516 = vadd.f32 %v2472, %v2495
        %2517 = vrot.lane.b32.xlu0 %v2497, 127
        %v2518 = vpop.permute.xlu0 %2517
        %2519 = vrot.lane.b32.xlu0 %v2502, 127
        %v2520 = vpop.permute.xlu0 %2519
        %2521 = vrot.lane.b32.xlu0 %v2507, 127
        %v2522 = vpop.permute.xlu0 %2521
        %2523 = vrot.lane.b32.xlu0 %v2512, 127
        %v2524 = vpop.permute.xlu0 %2523
        %2525 = vrot.lane.b32.xlu0 %v2498, 127
        %v2526 = vpop.permute.xlu0 %2525
        %2527 = vrot.lane.b32.xlu0 %v2503, 127
        %v2528 = vpop.permute.xlu0 %2527
        %2529 = vrot.lane.b32.xlu0 %v2508, 127
        %v2530 = vpop.permute.xlu0 %2529
        %2531 = vrot.lane.b32.xlu0 %v2513, 127
        %v2532 = vpop.permute.xlu0 %2531
        %2533 = vrot.lane.b32.xlu0 %v2499, 127
        %v2534 = vpop.permute.xlu0 %2533
        %2535 = vrot.lane.b32.xlu0 %v2504, 127
        %v2536 = vpop.permute.xlu0 %2535
        %2537 = vrot.lane.b32.xlu0 %v2509, 127
        %v2538 = vpop.permute.xlu0 %2537
        %2539 = vrot.lane.b32.xlu0 %v2514, 127
        %v2540 = vpop.permute.xlu0 %2539
        %2541 = vrot.lane.b32.xlu0 %v2500, 127
        %v2542 = vpop.permute.xlu0 %2541
        %2543 = vrot.lane.b32.xlu0 %v2505, 127
        %v2544 = vpop.permute.xlu0 %2543
        %2545 = vrot.lane.b32.xlu0 %v2510, 127
        %v2546 = vpop.permute.xlu0 %2545
        %2547 = vrot.lane.b32.xlu0 %v2515, 127
        %v2548 = vpop.permute.xlu0 %2547
        %2549 = vrot.lane.b32.xlu0 %v2501, 127
        %v2550 = vpop.permute.xlu0 %2549
        %2551 = vrot.lane.b32.xlu0 %v2506, 127
        %v2552 = vpop.permute.xlu0 %2551
        %2553 = vrot.lane.b32.xlu0 %v2511, 127
        %v2554 = vpop.permute.xlu0 %2553
        %2555 = vrot.lane.b32.xlu0 %v2516, 127
        %v2556 = vpop.permute.xlu0 %2555
        %v2557 = vsel %vm1244, %v2542, %v2550
        %v2558 = vsel %vm1244, %v2544, %v2552
        %v2559 = vsel %vm1244, %v2546, %v2554
        %v2560 = vsel %vm1244, %v2548, %v2556
        %v2561 = vsel %vm1244, %v2534, %v2542
        %v2562 = vsel %vm1244, %v2536, %v2544
        %v2563 = vsel %vm1244, %v2538, %v2546
        %v2564 = vsel %vm1244, %v2540, %v2548
        %v2565 = vsel %vm1244, %v2526, %v2534
        %v2566 = vsel %vm1244, %v2528, %v2536
        %v2567 = vsel %vm1244, %v2530, %v2538
        %v2568 = vsel %vm1244, %v2532, %v2540
        %v2569 = vsel %vm1244, %v2518, %v2526
        %v2570 = vsel %vm1244, %v2520, %v2528
        %v2571 = vsel %vm1244, %v2522, %v2530
        %v2572 = vsel %vm1244, %v2524, %v2532
        %v2573 = vsel %vm1244, %v2550, %v2518
        %v2574 = vsel %vm1244, %v2552, %v2520
        %v2575 = vsel %vm1244, %v2554, %v2522
        %v2576 = vsel %vm1244, %v2556, %v2524
        %v2577 = vmax.f32 %v2497, %v2569
        %v2578 = vmax.f32 %v2498, %v2565
        %v2579 = vmax.f32 %v2499, %v2561
        %v2580 = vmax.f32 %v2500, %v2557
        %v2581 = vmax.f32 %v2501, %v2573
        %v2582 = vmax.f32 %v2502, %v2570
        %v2583 = vmax.f32 %v2503, %v2566
        %v2584 = vmax.f32 %v2504, %v2562
        %v2585 = vmax.f32 %v2505, %v2558
        %v2586 = vmax.f32 %v2506, %v2574
        %v2587 = vmax.f32 %v2507, %v2571
        %v2588 = vmax.f32 %v2508, %v2567
        %v2589 = vmax.f32 %v2509, %v2563
        %v2590 = vmax.f32 %v2510, %v2559
        %v2591 = vmax.f32 %v2511, %v2575
        %v2592 = vmax.f32 %v2512, %v2572
        %v2593 = vmax.f32 %v2513, %v2568
        %v2594 = vmax.f32 %v2514, %v2564
        %v2595 = vmax.f32 %v2515, %v2560
        %v2596 = vmax.f32 %v2516, %v2576
        %2597 = vrot.lane.b32.xlu0 %v2577, 104
        %v2598 = vpop.permute.xlu0 %2597
        %2599 = vrot.lane.b32.xlu0 %v2582, 104
        %v2600 = vpop.permute.xlu0 %2599
        %2601 = vrot.lane.b32.xlu0 %v2587, 104
        %v2602 = vpop.permute.xlu0 %2601
        %2603 = vrot.lane.b32.xlu0 %v2592, 104
        %v2604 = vpop.permute.xlu0 %2603
        %2605 = vrot.lane.b32.xlu0 %v2578, 104
        %v2606 = vpop.permute.xlu0 %2605
        %2607 = vrot.lane.b32.xlu0 %v2583, 104
        %v2608 = vpop.permute.xlu0 %2607
        %2609 = vrot.lane.b32.xlu0 %v2588, 104
        %v2610 = vpop.permute.xlu0 %2609
        %2611 = vrot.lane.b32.xlu0 %v2593, 104
        %v2612 = vpop.permute.xlu0 %2611
        %2613 = vrot.lane.b32.xlu0 %v2579, 104
        %v2614 = vpop.permute.xlu0 %2613
        %2615 = vrot.lane.b32.xlu0 %v2584, 104
        %v2616 = vpop.permute.xlu0 %2615
        %2617 = vrot.lane.b32.xlu0 %v2589, 104
        %v2618 = vpop.permute.xlu0 %2617
        %2619 = vrot.lane.b32.xlu0 %v2594, 104
        %v2620 = vpop.permute.xlu0 %2619
        %2621 = vrot.lane.b32.xlu0 %v2580, 104
        %v2622 = vpop.permute.xlu0 %2621
        %2623 = vrot.lane.b32.xlu0 %v2585, 104
        %v2624 = vpop.permute.xlu0 %2623
        %2625 = vrot.lane.b32.xlu0 %v2590, 104
        %v2626 = vpop.permute.xlu0 %2625
        %2627 = vrot.lane.b32.xlu0 %v2595, 104
        %v2628 = vpop.permute.xlu0 %2627
        %2629 = vrot.lane.b32.xlu0 %v2581, 104
        %v2630 = vpop.permute.xlu0 %2629
        %2631 = vrot.lane.b32.xlu0 %v2586, 104
        %v2632 = vpop.permute.xlu0 %2631
        %2633 = vrot.lane.b32.xlu0 %v2591, 104
        %v2634 = vpop.permute.xlu0 %2633
        %2635 = vrot.lane.b32.xlu0 %v2596, 104
        %v2636 = vpop.permute.xlu0 %2635
        %v2637 = vsel %vm1296, %v2622, %v2630
        %v2638 = vsel %vm1296, %v2624, %v2632
        %v2639 = vsel %vm1296, %v2626, %v2634
        %v2640 = vsel %vm1296, %v2628, %v2636
        %v2641 = vsel %vm1296, %v2614, %v2622
        %v2642 = vsel %vm1296, %v2616, %v2624
        %v2643 = vsel %vm1296, %v2618, %v2626
        %v2644 = vsel %vm1296, %v2620, %v2628
        %v2645 = vsel %vm1296, %v2606, %v2614
        %v2646 = vsel %vm1296, %v2608, %v2616
        %v2647 = vsel %vm1296, %v2610, %v2618
        %v2648 = vsel %vm1296, %v2612, %v2620
        %v2649 = vsel %vm1296, %v2598, %v2606
        %v2650 = vsel %vm1296, %v2600, %v2608
        %v2651 = vsel %vm1296, %v2602, %v2610
        %v2652 = vsel %vm1296, %v2604, %v2612
        %v2653 = vsel %vm1296, %v2630, %v2598
        %v2654 = vsel %vm1296, %v2632, %v2600
        %v2655 = vsel %vm1296, %v2634, %v2602
        %v2656 = vsel %vm1296, %v2636, %v2604
        %v2657 = vmax.f32 %v2577, %v2649
        %v2658 = vmax.f32 %v2578, %v2645
        %v2659 = vmax.f32 %v2579, %v2641
        %v2660 = vmax.f32 %v2580, %v2637
        %v2661 = vmax.f32 %v2581, %v2653
        %v2662 = vmax.f32 %v2582, %v2650
        %v2663 = vmax.f32 %v2583, %v2646
        %v2664 = vmax.f32 %v2584, %v2642
        %v2665 = vmax.f32 %v2585, %v2638
        %v2666 = vmax.f32 %v2586, %v2654
        %v2667 = vmax.f32 %v2587, %v2651
        %v2668 = vmax.f32 %v2588, %v2647
        %v2669 = vmax.f32 %v2589, %v2643
        %v2670 = vmax.f32 %v2590, %v2639
        %v2671 = vmax.f32 %v2591, %v2655
        %v2672 = vmax.f32 %v2592, %v2652
        %v2673 = vmax.f32 %v2593, %v2648
        %v2674 = vmax.f32 %v2594, %v2644
        %v2675 = vmax.f32 %v2595, %v2640
        %v2676 = vmax.f32 %v2596, %v2656
        %v2677 = vpack.c.bf16 %v2662, %v2657
        %v2678 = vpack.c.bf16 %v2663, %v2658
        %v2679 = vpack.c.bf16 %v2664, %v2659
        %v2680 = vpack.c.bf16 %v2665, %v2660
        %v2681 = vpack.c.bf16 %v2666, %v2661
        %v2682 = vpack.c.bf16 %v2672, %v2667
        %v2683 = vpack.c.bf16 %v2673, %v2668
        %v2684 = vpack.c.bf16 %v2674, %v2669
        %v2685 = vpack.c.bf16 %v2675, %v2670
        %v2686 = vpack.c.bf16 %v2676, %v2671
        %v2687 = vld [vmem:[%s33] sm:$0xf]
        %vm2688 = vcmask 261120
        %v2690 = vsel %vm2688, %v2687, 0
        %2692 = vmatpush.bf16.msra.mxu0 0
        %2693 = vmatpush.bf16.msra.mxu0 0
        %2694 = vmatpush.bf16.msra.mxu0 0
        %2695 = vmatpush.bf16.msra.mxu0 0
        %2696 = vmatpush.bf16.msra.mxu0 0
        %2697 = vmatpush.bf16.msra.mxu0 0
        %2698 = vmatpush.bf16.msra.mxu0 %v2682
        %2699 = vmatpush.bf16.msra.mxu0 %v2677
        %2700 = vmatmul.bf16.gmra.mxu0 %v2690
        %v2701 = vpop.f32.mrf.mxu0
        %v2702 = vadd.f32 0.0, %v2701
        %v2703 = vpop.f32.mrf.mxu0
        %2704 = vdwg.mxu0
        %2705 = vmatpush.bf16.msra.mxu0 0
        %2706 = vmatpush.bf16.msra.mxu0 0
        %2707 = vmatpush.bf16.msra.mxu0 0
        %2708 = vmatpush.bf16.msra.mxu0 0
        %2709 = vmatpush.bf16.msra.mxu0 0
        %2710 = vmatpush.bf16.msra.mxu0 0
        %2711 = vmatpush.bf16.msra.mxu0 %v2683
        %2712 = vmatpush.bf16.msra.mxu0 %v2678
        %2713 = vmatmul.bf16.gmra.mxu0 %v2690
        %v2714 = vpop.f32.mrf.mxu0
        %v2715 = vadd.f32 0.0, %v2714
        %v2716 = vpop.f32.mrf.mxu0
        %2717 = vdwg.mxu0
        %2718 = vmatpush.bf16.msra.mxu0 0
        %2719 = vmatpush.bf16.msra.mxu0 0
        %2720 = vmatpush.bf16.msra.mxu0 0
        %2721 = vmatpush.bf16.msra.mxu0 0
        %2722 = vmatpush.bf16.msra.mxu0 0
        %2723 = vmatpush.bf16.msra.mxu0 0
        %2724 = vmatpush.bf16.msra.mxu0 %v2684
        %2725 = vmatpush.bf16.msra.mxu0 %v2679
        %2726 = vmatmul.bf16.gmra.mxu0 %v2690
        %v2727 = vpop.f32.mrf.mxu0
        %v2728 = vadd.f32 0.0, %v2727
        %v2729 = vpop.f32.mrf.mxu0
        %2730 = vdwg.mxu0
        %2731 = vmatpush.bf16.msra.mxu0 0
        %2732 = vmatpush.bf16.msra.mxu0 0
        %2733 = vmatpush.bf16.msra.mxu0 0
        %2734 = vmatpush.bf16.msra.mxu0 0
        %2735 = vmatpush.bf16.msra.mxu0 0
        %2736 = vmatpush.bf16.msra.mxu0 0
        %2737 = vmatpush.bf16.msra.mxu0 %v2685
        %2738 = vmatpush.bf16.msra.mxu0 %v2680
        %2739 = vmatmul.bf16.gmra.mxu0 %v2690
        %v2740 = vpop.f32.mrf.mxu0
        %v2741 = vadd.f32 0.0, %v2740
        %v2742 = vpop.f32.mrf.mxu0
        %2743 = vdwg.mxu0
        %2744 = vmatpush.bf16.msra.mxu0 0
        %2745 = vmatpush.bf16.msra.mxu0 0
        %2746 = vmatpush.bf16.msra.mxu0 0
        %2747 = vmatpush.bf16.msra.mxu0 0
        %2748 = vmatpush.bf16.msra.mxu0 0
        %2749 = vmatpush.bf16.msra.mxu0 0
        %2750 = vmatpush.bf16.msra.mxu0 %v2686
        %2751 = vmatpush.bf16.msra.mxu0 %v2681
        %2752 = vmatmul.bf16.gmra.mxu0 %v2690
        %v2753 = vpop.f32.mrf.mxu0
        %v2754 = vadd.f32 0.0, %v2753
        %v2755 = vpop.f32.mrf.mxu0
        %2756 = vdwg.mxu0
        %v2757 = vld [vmem:[#allocation2] sm:$0xff]
        %v2758 = vld [vmem:[#allocation2 + $0x8] sm:$0xff]
        %v2759 = vld [vmem:[#allocation2 + $0x10] sm:$0xff]
        %v2760 = vld [vmem:[#allocation2 + $0x18] sm:$0xff]
        %v2761 = vld [vmem:[#allocation2 + $0x20] sm:$0xff]
        %v2762 = vld [vmem:[#allocation2 + $0x28] sm:$0xff]
        %v2763 = vld [vmem:[#allocation2 + $0x30] sm:$0xff]
        %v2764 = vld [vmem:[#allocation2 + $0x38] sm:$0xff]
        %v2765 = vld [vmem:[#allocation2 + $0x40] sm:$0xff]
        %v2766 = vld [vmem:[#allocation2 + $0x48] sm:$0xff]
        %v2767 = vld [vmem:[#allocation2 + $0x50] sm:$0xff]
        %v2768 = vld [vmem:[#allocation2 + $0x58] sm:$0xff]
        %v2769 = vld [vmem:[#allocation2 + $0x60] sm:$0xff]
        %v2770 = vld [vmem:[#allocation2 + $0x68] sm:$0xff]
        %v2771 = vld [vmem:[#allocation2 + $0x70] sm:$0xff]
        %v2772 = vld [vmem:[#allocation2 + $0x78] sm:$0xff]
        %v2773 = vld [vmem:[#allocation2 + $0x80] sm:$0xff]
        %v2774 = vld [vmem:[#allocation2 + $0x88] sm:$0xff]
        %v2775 = vld [vmem:[#allocation2 + $0x90] sm:$0xff]
        %v2776 = vld [vmem:[#allocation2 + $0x98] sm:$0xff]
        %v2777 = vld [vmem:[#allocation2 + $0xa0] sm:$0xff]
        %v2778 = vld [vmem:[#allocation2 + $0xa8] sm:$0xff]
        %v2779 = vld [vmem:[#allocation2 + $0xb0] sm:$0xff]
        %v2780 = vld [vmem:[#allocation2 + $0xb8] sm:$0xff]
        %v2781 = vld [vmem:[#allocation2 + $0xc0] sm:$0xff]
        %v2782 = vld [vmem:[#allocation2 + $0xc8] sm:$0xff]
        %v2783 = vld [vmem:[#allocation2 + $0xd0] sm:$0xff]
        %v2784 = vld [vmem:[#allocation2 + $0xd8] sm:$0xff]
        %v2785 = vld [vmem:[#allocation2 + $0xe0] sm:$0xff]
        %v2786 = vld [vmem:[#allocation2 + $0xe8] sm:$0xff]
        %v2787 = vld [vmem:[#allocation2 + $0xf0] sm:$0xff]
        %v2788 = vld [vmem:[#allocation2 + $0xf8] sm:$0xff]
        %v2789 = vld [vmem:[#allocation2 + $0x100] sm:$0xff]
        %v2790 = vld [vmem:[#allocation2 + $0x108] sm:$0xff]
        %v2791 = vld [vmem:[#allocation2 + $0x110] sm:$0xff]
        %v2792 = vld [vmem:[#allocation2 + $0x118] sm:$0xff]
        %v2793 = vld [vmem:[#allocation2 + $0x120] sm:$0xff]
        %v2794 = vld [vmem:[#allocation2 + $0x128] sm:$0xff]
        %v2795 = vld [vmem:[#allocation2 + $0x130] sm:$0xff]
        %v2796 = vld [vmem:[#allocation2 + $0x138] sm:$0xff]
        %v2797 = vld [vmem:[#allocation2 + $0x140] sm:$0xff]
        %v2798 = vld [vmem:[#allocation2 + $0x148] sm:$0xff]
        %v2799 = vld [vmem:[#allocation2 + $0x150] sm:$0xff]
        %v2800 = vld [vmem:[#allocation2 + $0x158] sm:$0xff]
        %v2801 = vld [vmem:[#allocation2 + $0x160] sm:$0xff]
        %v2802 = vld [vmem:[#allocation2 + $0x168] sm:$0xff]
        %v2803 = vld [vmem:[#allocation2 + $0x170] sm:$0xff]
        %v2804 = vld [vmem:[#allocation2 + $0x178] sm:$0xff]
        %v2805 = vld [vmem:[#allocation2 + $0x180] sm:$0xff]
        %v2806 = vld [vmem:[#allocation2 + $0x188] sm:$0xff]
        %v2807 = vld [vmem:[#allocation2 + $0x190] sm:$0xff]
        %v2808 = vld [vmem:[#allocation2 + $0x198] sm:$0xff]
        %v2809 = vld [vmem:[#allocation2 + $0x1a0] sm:$0xff]
        %v2810 = vld [vmem:[#allocation2 + $0x1a8] sm:$0xff]
        %v2811 = vld [vmem:[#allocation2 + $0x1b0] sm:$0xff]
        %v2812 = vld [vmem:[#allocation2 + $0x1b8] sm:$0xff]
        %v2813 = vld [vmem:[#allocation2 + $0x1c0] sm:$0xff]
        %v2814 = vld [vmem:[#allocation2 + $0x1c8] sm:$0xff]
        %v2815 = vld [vmem:[#allocation2 + $0x1d0] sm:$0xff]
        %v2816 = vld [vmem:[#allocation2 + $0x1d8] sm:$0xff]
        %v2817 = vld [vmem:[#allocation2 + $0x1e0] sm:$0xff]
        %v2818 = vld [vmem:[#allocation2 + $0x1e8] sm:$0xff]
        %v2819 = vld [vmem:[#allocation2 + $0x1f0] sm:$0xff]
        %v2820 = vld [vmem:[#allocation2 + $0x1f8] sm:$0xff]
        %v2821 = vld [vmem:[#allocation2 + $0x200] sm:$0xff]
        %v2822 = vld [vmem:[#allocation2 + $0x208] sm:$0xff]
        %v2823 = vld [vmem:[#allocation2 + $0x210] sm:$0xff]
        %v2824 = vld [vmem:[#allocation2 + $0x218] sm:$0xff]
        %v2825 = vld [vmem:[#allocation2 + $0x220] sm:$0xff]
        %v2826 = vld [vmem:[#allocation2 + $0x228] sm:$0xff]
        %v2827 = vld [vmem:[#allocation2 + $0x230] sm:$0xff]
        %v2828 = vld [vmem:[#allocation2 + $0x238] sm:$0xff]
        %v2829 = vld [vmem:[#allocation2 + $0x240] sm:$0xff]
        %v2830 = vld [vmem:[#allocation2 + $0x248] sm:$0xff]
        %v2831 = vld [vmem:[#allocation2 + $0x250] sm:$0xff]
        %v2832 = vld [vmem:[#allocation2 + $0x258] sm:$0xff]
        %v2833 = vld [vmem:[#allocation2 + $0x260] sm:$0xff]
        %v2834 = vld [vmem:[#allocation2 + $0x268] sm:$0xff]
        %v2835 = vld [vmem:[#allocation2 + $0x270] sm:$0xff]
        %v2836 = vld [vmem:[#allocation2 + $0x278] sm:$0xff]
        %v2837 = vld [vmem:[#allocation2 + $0x280] sm:$0xff]
        %v2838 = vld [vmem:[#allocation2 + $0x288] sm:$0xff]
        %v2839 = vld [vmem:[#allocation2 + $0x290] sm:$0xff]
        %v2840 = vld [vmem:[#allocation2 + $0x298] sm:$0xff]
        %v2841 = vld [vmem:[#allocation2 + $0x2a0] sm:$0xff]
        %v2842 = vld [vmem:[#allocation2 + $0x2a8] sm:$0xff]
        %v2843 = vld [vmem:[#allocation2 + $0x2b0] sm:$0xff]
        %v2844 = vld [vmem:[#allocation2 + $0x2b8] sm:$0xff]
        %v2845 = vld [vmem:[#allocation2 + $0x2c0] sm:$0xff]
        %v2846 = vld [vmem:[#allocation2 + $0x2c8] sm:$0xff]
        %v2847 = vld [vmem:[#allocation2 + $0x2d0] sm:$0xff]
        %v2848 = vld [vmem:[#allocation2 + $0x2d8] sm:$0xff]
        %v2849 = vld [vmem:[#allocation2 + $0x2e0] sm:$0xff]
        %v2850 = vld [vmem:[#allocation2 + $0x2e8] sm:$0xff]
        %v2851 = vld [vmem:[#allocation2 + $0x2f0] sm:$0xff]
        %v2852 = vld [vmem:[#allocation2 + $0x2f8] sm:$0xff]
        %v2853 = vld [vmem:[#allocation2 + $0x300] sm:$0xff]
        %v2854 = vld [vmem:[#allocation2 + $0x308] sm:$0xff]
        %v2855 = vld [vmem:[#allocation2 + $0x310] sm:$0xff]
        %v2856 = vld [vmem:[#allocation2 + $0x318] sm:$0xff]
        %v2857 = vld [vmem:[#allocation2 + $0x320] sm:$0xff]
        %v2858 = vld [vmem:[#allocation2 + $0x328] sm:$0xff]
        %v2859 = vld [vmem:[#allocation2 + $0x330] sm:$0xff]
        %v2860 = vld [vmem:[#allocation2 + $0x338] sm:$0xff]
        %v2861 = vld [vmem:[#allocation2 + $0x340] sm:$0xff]
        %v2862 = vld [vmem:[#allocation2 + $0x348] sm:$0xff]
        %v2863 = vld [vmem:[#allocation2 + $0x350] sm:$0xff]
        %v2864 = vld [vmem:[#allocation2 + $0x358] sm:$0xff]
        %v2865 = vld [vmem:[#allocation2 + $0x360] sm:$0xff]
        %v2866 = vld [vmem:[#allocation2 + $0x368] sm:$0xff]
        %v2867 = vld [vmem:[#allocation2 + $0x370] sm:$0xff]
        %v2868 = vld [vmem:[#allocation2 + $0x378] sm:$0xff]
        %v2869 = vld [vmem:[#allocation2 + $0x380] sm:$0xff]
        %v2870 = vld [vmem:[#allocation2 + $0x388] sm:$0xff]
        %v2871 = vld [vmem:[#allocation2 + $0x390] sm:$0xff]
        %v2872 = vld [vmem:[#allocation2 + $0x398] sm:$0xff]
        %v2873 = vld [vmem:[#allocation2 + $0x3a0] sm:$0xff]
        %v2874 = vld [vmem:[#allocation2 + $0x3a8] sm:$0xff]
        %v2875 = vld [vmem:[#allocation2 + $0x3b0] sm:$0xff]
        %v2876 = vld [vmem:[#allocation2 + $0x3b8] sm:$0xff]
        %v2877 = vld [vmem:[#allocation2 + $0x3c0] sm:$0xff]
        %v2878 = vld [vmem:[#allocation2 + $0x3c8] sm:$0xff]
        %v2879 = vld [vmem:[#allocation2 + $0x3d0] sm:$0xff]
        %v2880 = vld [vmem:[#allocation2 + $0x3d8] sm:$0xff]
        %v2881 = vld [vmem:[#allocation2 + $0x3e0] sm:$0xff]
        %v2882 = vld [vmem:[#allocation2 + $0x3e8] sm:$0xff]
        %v2883 = vld [vmem:[#allocation2 + $0x3f0] sm:$0xff]
        %v2884 = vld [vmem:[#allocation2 + $0x3f8] sm:$0xff]
        %v2885 = vld [vmem:[#allocation2 + $0x400] sm:$0xff]
        %v2886 = vld [vmem:[#allocation2 + $0x408] sm:$0xff]
        %v2887 = vld [vmem:[#allocation2 + $0x410] sm:$0xff]
        %v2888 = vld [vmem:[#allocation2 + $0x418] sm:$0xff]
        %v2889 = vld [vmem:[#allocation2 + $0x420] sm:$0xff]
        %v2890 = vld [vmem:[#allocation2 + $0x428] sm:$0xff]
        %v2891 = vld [vmem:[#allocation2 + $0x430] sm:$0xff]
        %v2892 = vld [vmem:[#allocation2 + $0x438] sm:$0xff]
        %v2893 = vld [vmem:[#allocation2 + $0x440] sm:$0xff]
        %v2894 = vld [vmem:[#allocation2 + $0x448] sm:$0xff]
        %v2895 = vld [vmem:[#allocation2 + $0x450] sm:$0xff]
        %v2896 = vld [vmem:[#allocation2 + $0x458] sm:$0xff]
        %v2897 = vld [vmem:[#allocation2 + $0x460] sm:$0xff]
        %v2898 = vld [vmem:[#allocation2 + $0x468] sm:$0xff]
        %v2899 = vld [vmem:[#allocation2 + $0x470] sm:$0xff]
        %v2900 = vld [vmem:[#allocation2 + $0x478] sm:$0xff]
        %v2901 = vld [vmem:[#allocation2 + $0x480] sm:$0xff]
        %v2902 = vld [vmem:[#allocation2 + $0x488] sm:$0xff]
        %v2903 = vld [vmem:[#allocation2 + $0x490] sm:$0xff]
        %v2904 = vld [vmem:[#allocation2 + $0x498] sm:$0xff]
        %v2905 = vld [vmem:[#allocation2 + $0x4a0] sm:$0xff]
        %v2906 = vld [vmem:[#allocation2 + $0x4a8] sm:$0xff]
        %v2907 = vld [vmem:[#allocation2 + $0x4b0] sm:$0xff]
        %v2908 = vld [vmem:[#allocation2 + $0x4b8] sm:$0xff]
        %v2909 = vld [vmem:[#allocation2 + $0x4c0] sm:$0xff]
        %v2910 = vld [vmem:[#allocation2 + $0x4c8] sm:$0xff]
        %v2911 = vld [vmem:[#allocation2 + $0x4d0] sm:$0xff]
        %v2912 = vld [vmem:[#allocation2 + $0x4d8] sm:$0xff]
        %v2913 = vld [vmem:[#allocation2 + $0x4e0] sm:$0xff]
        %v2914 = vld [vmem:[#allocation2 + $0x4e8] sm:$0xff]
        %v2915 = vld [vmem:[#allocation2 + $0x4f0] sm:$0xff]
        %v2916 = vld [vmem:[#allocation2 + $0x4f8] sm:$0xff]
        %2917 = vmatpush.msra.mxu0 %v2787
        %2918 = vmatpush.msra.mxu0 %v2785
        %2919 = vmatpush.msra.mxu0 %v2783
        %2920 = vmatpush.msra.mxu0 %v2781
        %2921 = vmatpush.msra.mxu0 %v2779
        %2922 = vmatpush.msra.mxu0 %v2777
        %2923 = vmatpush.msra.mxu0 %v2775
        %2924 = vmatpush.msra.mxu0 %v2773
        %2925 = vmatpush.msra.mxu0 %v2771
        %2926 = vmatpush.msra.mxu0 %v2769
        %2927 = vmatpush.msra.mxu0 %v2767
        %2928 = vmatpush.msra.mxu0 %v2765
        %2929 = vmatpush.msra.mxu0 %v2763
        %2930 = vmatpush.msra.mxu0 %v2761
        %2931 = vmatpush.msra.mxu0 %v2759
        %2932 = vmatpush.msra.mxu0 %v2757
        %2933 = vmatmul.f32.gmra.mxu0 %v2702
        %v2934 = vpop.f32.mrf.mxu0
        %v2935 = vadd.f32 0.0, %v2934
        %2936 = vdwg.mxu0
        %2937 = vmatpush.msra.mxu0 %v2819
        %2938 = vmatpush.msra.mxu0 %v2817
        %2939 = vmatpush.msra.mxu0 %v2815
        %2940 = vmatpush.msra.mxu0 %v2813
        %2941 = vmatpush.msra.mxu0 %v2811
        %2942 = vmatpush.msra.mxu0 %v2809
        %2943 = vmatpush.msra.mxu0 %v2807
        %2944 = vmatpush.msra.mxu0 %v2805
        %2945 = vmatpush.msra.mxu0 %v2803
        %2946 = vmatpush.msra.mxu0 %v2801
        %2947 = vmatpush.msra.mxu0 %v2799
        %2948 = vmatpush.msra.mxu0 %v2797
        %2949 = vmatpush.msra.mxu0 %v2795
        %2950 = vmatpush.msra.mxu0 %v2793
        %2951 = vmatpush.msra.mxu0 %v2791
        %2952 = vmatpush.msra.mxu0 %v2789
        %2953 = vmatmul.f32.gmra.mxu0 %v2715
        %v2954 = vpop.f32.mrf.mxu0
        %v2955 = vadd.f32 %v2935, %v2954
        %2956 = vdwg.mxu0
        %2957 = vmatpush.msra.mxu0 %v2851
        %2958 = vmatpush.msra.mxu0 %v2849
        %2959 = vmatpush.msra.mxu0 %v2847
        %2960 = vmatpush.msra.mxu0 %v2845
        %2961 = vmatpush.msra.mxu0 %v2843
        %2962 = vmatpush.msra.mxu0 %v2841
        %2963 = vmatpush.msra.mxu0 %v2839
        %2964 = vmatpush.msra.mxu0 %v2837
        %2965 = vmatpush.msra.mxu0 %v2835
        %2966 = vmatpush.msra.mxu0 %v2833
        %2967 = vmatpush.msra.mxu0 %v2831
        %2968 = vmatpush.msra.mxu0 %v2829
        %2969 = vmatpush.msra.mxu0 %v2827
        %2970 = vmatpush.msra.mxu0 %v2825
        %2971 = vmatpush.msra.mxu0 %v2823
        %2972 = vmatpush.msra.mxu0 %v2821
        %2973 = vmatmul.f32.gmra.mxu0 %v2728
        %v2974 = vpop.f32.mrf.mxu0
        %v2975 = vadd.f32 %v2955, %v2974
        %2976 = vdwg.mxu0
        %2977 = vmatpush.msra.mxu0 %v2883
        %2978 = vmatpush.msra.mxu0 %v2881
        %2979 = vmatpush.msra.mxu0 %v2879
        %2980 = vmatpush.msra.mxu0 %v2877
        %2981 = vmatpush.msra.mxu0 %v2875
        %2982 = vmatpush.msra.mxu0 %v2873
        %2983 = vmatpush.msra.mxu0 %v2871
        %2984 = vmatpush.msra.mxu0 %v2869
        %2985 = vmatpush.msra.mxu0 %v2867
        %2986 = vmatpush.msra.mxu0 %v2865
        %2987 = vmatpush.msra.mxu0 %v2863
        %2988 = vmatpush.msra.mxu0 %v2861
        %2989 = vmatpush.msra.mxu0 %v2859
        %2990 = vmatpush.msra.mxu0 %v2857
        %2991 = vmatpush.msra.mxu0 %v2855
        %2992 = vmatpush.msra.mxu0 %v2853
        %2993 = vmatmul.f32.gmra.mxu0 %v2741
        %v2994 = vpop.f32.mrf.mxu0
        %v2995 = vadd.f32 %v2975, %v2994
        %2996 = vdwg.mxu0
        %2997 = vmatpush.msra.mxu0 %v2915
        %2998 = vmatpush.msra.mxu0 %v2913
        %2999 = vmatpush.msra.mxu0 %v2911
        %3000 = vmatpush.msra.mxu0 %v2909
        %3001 = vmatpush.msra.mxu0 %v2907
        %3002 = vmatpush.msra.mxu0 %v2905
        %3003 = vmatpush.msra.mxu0 %v2903
        %3004 = vmatpush.msra.mxu0 %v2901
        %3005 = vmatpush.msra.mxu0 %v2899
        %3006 = vmatpush.msra.mxu0 %v2897
        %3007 = vmatpush.msra.mxu0 %v2895
        %3008 = vmatpush.msra.mxu0 %v2893
        %3009 = vmatpush.msra.mxu0 %v2891
        %3010 = vmatpush.msra.mxu0 %v2889
        %3011 = vmatpush.msra.mxu0 %v2887
        %3012 = vmatpush.msra.mxu0 %v2885
        %3013 = vmatmul.f32.gmra.mxu0 %v2754
        %v3014 = vpop.f32.mrf.mxu0
        %v3015 = vadd.f32 %v2995, %v3014
        %3016 = vdwg.mxu0
        %3017 = vmatpush.msra.mxu0 %v2788
        %3018 = vmatpush.msra.mxu0 %v2786
        %3019 = vmatpush.msra.mxu0 %v2784
        %3020 = vmatpush.msra.mxu0 %v2782
        %3021 = vmatpush.msra.mxu0 %v2780
        %3022 = vmatpush.msra.mxu0 %v2778
        %3023 = vmatpush.msra.mxu0 %v2776
        %3024 = vmatpush.msra.mxu0 %v2774
        %3025 = vmatpush.msra.mxu0 %v2772
        %3026 = vmatpush.msra.mxu0 %v2770
        %3027 = vmatpush.msra.mxu0 %v2768
        %3028 = vmatpush.msra.mxu0 %v2766
        %3029 = vmatpush.msra.mxu0 %v2764
        %3030 = vmatpush.msra.mxu0 %v2762
        %3031 = vmatpush.msra.mxu0 %v2760
        %3032 = vmatpush.msra.mxu0 %v2758
        %3033 = vmatmul.f32.gmra.mxu0 %v2702
        %v3034 = vpop.f32.mrf.mxu0
        %v3035 = vadd.f32 0.0, %v3034
        %3036 = vdwg.mxu0
        %3037 = vmatpush.msra.mxu0 %v2820
        %3038 = vmatpush.msra.mxu0 %v2818
        %3039 = vmatpush.msra.mxu0 %v2816
        %3040 = vmatpush.msra.mxu0 %v2814
        %3041 = vmatpush.msra.mxu0 %v2812
        %3042 = vmatpush.msra.mxu0 %v2810
        %3043 = vmatpush.msra.mxu0 %v2808
        %3044 = vmatpush.msra.mxu0 %v2806
        %3045 = vmatpush.msra.mxu0 %v2804
        %3046 = vmatpush.msra.mxu0 %v2802
        %3047 = vmatpush.msra.mxu0 %v2800
        %3048 = vmatpush.msra.mxu0 %v2798
        %3049 = vmatpush.msra.mxu0 %v2796
        %3050 = vmatpush.msra.mxu0 %v2794
        %3051 = vmatpush.msra.mxu0 %v2792
        %3052 = vmatpush.msra.mxu0 %v2790
        %3053 = vmatmul.f32.gmra.mxu0 %v2715
        %v3054 = vpop.f32.mrf.mxu0
        %v3055 = vadd.f32 %v3035, %v3054
        %3056 = vdwg.mxu0
        %3057 = vmatpush.msra.mxu0 %v2852
        %3058 = vmatpush.msra.mxu0 %v2850
        %3059 = vmatpush.msra.mxu0 %v2848
        %3060 = vmatpush.msra.mxu0 %v2846
        %3061 = vmatpush.msra.mxu0 %v2844
        %3062 = vmatpush.msra.mxu0 %v2842
        %3063 = vmatpush.msra.mxu0 %v2840
        %3064 = vmatpush.msra.mxu0 %v2838
        %3065 = vmatpush.msra.mxu0 %v2836
        %3066 = vmatpush.msra.mxu0 %v2834
        %3067 = vmatpush.msra.mxu0 %v2832
        %3068 = vmatpush.msra.mxu0 %v2830
        %3069 = vmatpush.msra.mxu0 %v2828
        %3070 = vmatpush.msra.mxu0 %v2826
        %3071 = vmatpush.msra.mxu0 %v2824
        %3072 = vmatpush.msra.mxu0 %v2822
        %3073 = vmatmul.f32.gmra.mxu0 %v2728
        %v3074 = vpop.f32.mrf.mxu0
        %v3075 = vadd.f32 %v3055, %v3074
        %3076 = vdwg.mxu0
        %3077 = vmatpush.msra.mxu0 %v2884
        %3078 = vmatpush.msra.mxu0 %v2882
        %3079 = vmatpush.msra.mxu0 %v2880
        %3080 = vmatpush.msra.mxu0 %v2878
        %3081 = vmatpush.msra.mxu0 %v2876
        %3082 = vmatpush.msra.mxu0 %v2874
        %3083 = vmatpush.msra.mxu0 %v2872
        %3084 = vmatpush.msra.mxu0 %v2870
        %3085 = vmatpush.msra.mxu0 %v2868
        %3086 = vmatpush.msra.mxu0 %v2866
        %3087 = vmatpush.msra.mxu0 %v2864
        %3088 = vmatpush.msra.mxu0 %v2862
        %3089 = vmatpush.msra.mxu0 %v2860
        %3090 = vmatpush.msra.mxu0 %v2858
        %3091 = vmatpush.msra.mxu0 %v2856
        %3092 = vmatpush.msra.mxu0 %v2854
        %3093 = vmatmul.f32.gmra.mxu0 %v2741
        %v3094 = vpop.f32.mrf.mxu0
        %v3095 = vadd.f32 %v3075, %v3094
        %3096 = vdwg.mxu0
        %3097 = vmatpush.msra.mxu0 %v2916
        %3098 = vmatpush.msra.mxu0 %v2914
        %3099 = vmatpush.msra.mxu0 %v2912
        %3100 = vmatpush.msra.mxu0 %v2910
        %3101 = vmatpush.msra.mxu0 %v2908
        %3102 = vmatpush.msra.mxu0 %v2906
        %3103 = vmatpush.msra.mxu0 %v2904
        %3104 = vmatpush.msra.mxu0 %v2902
        %3105 = vmatpush.msra.mxu0 %v2900
        %3106 = vmatpush.msra.mxu0 %v2898
        %3107 = vmatpush.msra.mxu0 %v2896
        %3108 = vmatpush.msra.mxu0 %v2894
        %3109 = vmatpush.msra.mxu0 %v2892
        %3110 = vmatpush.msra.mxu0 %v2890
        %3111 = vmatpush.msra.mxu0 %v2888
        %3112 = vmatpush.msra.mxu0 %v2886
        %3113 = vmatmul.f32.gmra.mxu0 %v2754
        %v3114 = vpop.f32.mrf.mxu0
        %v3115 = vadd.f32 %v3095, %v3114
        %3116 = vdwg.mxu0
        %v3117 = vld [vmem:[%s35] sm:$0xff]
        %3119 = vset.pattern.permute.xlu0 0
        %3120 = vperm.xlu0 %3119, %v3117
        %v3121 = vpop.permute.xlu0 %3120
        %v3123 = vmul.f32 %v3015, %v3121
        %v3124 = vmul.f32 %v3115, %v3121
        %v3125 = vld [vmem:[%s37] sm:$0xff]
        %3127 = vset.pattern.permute.xlu0 0
        %3128 = vperm.xlu0 %3127, %v3125
        %v3129 = vpop.permute.xlu0 %3128
        %v3131 = vadd.f32 %v3123, %v3129
        %v3132 = vadd.f32 %v3124, %v3129
        %v3133 = vld [vmem:[%s5] sm:$0xff]
        %v3134 = vld [vmem:[%s5 + $0x8] sm:$0xff]
        %v3135 = vld [vmem:[%s5 + $0x10] sm:$0x1]
        %v3136 = vld [vmem:[%s5 + $0x18] sm:$0x1]
        %3137 = vrot.lane.b32.xlu0 %v3131, 13
        %v3138 = vpop.permute.xlu0 %3137
        %3139 = vrot.lane.b32.xlu0 %v3132, 13
        %v3140 = vpop.permute.xlu0 %3139
        %vm3141 = vcmp.lt.s32.totalorder %v1129, 13
        %v3142 = vsel %vm3141, %v3138, %v3140
        %v3143 = vsel %vm3141, %v3140, %v3138
        %v3144 = vperm.slane %v3133, 0
        %v3145 = vperm.slane %v3134, 0
        %v3146 = vmul.f32 %v3143, %v3144
        %v3147 = vmul.f32 %v3142, %v3145
        %3148 = vrot.lane.b32.xlu0 %v3131, 12
        %v3149 = vpop.permute.xlu0 %3148
        %3150 = vrot.lane.b32.xlu0 %v3132, 12
        %v3151 = vpop.permute.xlu0 %3150
        %vm3152 = vcmp.lt.s32.totalorder %v1129, 12
        %v3153 = vsel %vm3152, %v3149, %v3151
        %v3154 = vsel %vm3152, %v3151, %v3149
        %v3155 = vperm.slane %v3133, 1
        %v3156 = vperm.slane %v3134, 1
        %v3157 = vmul.f32 %v3154, %v3155
        %v3158 = vmul.f32 %v3153, %v3156
        %3159 = vrot.lane.b32.xlu0 %v3131, 11
        %v3160 = vpop.permute.xlu0 %3159
        %3161 = vrot.lane.b32.xlu0 %v3132, 11
        %v3162 = vpop.permute.xlu0 %3161
        %vm3163 = vcmp.lt.s32.totalorder %v1129, 11
        %v3164 = vsel %vm3163, %v3160, %v3162
        %v3165 = vsel %vm3163, %v3162, %v3160
        %v3166 = vperm.slane %v3133, 2
        %v3167 = vperm.slane %v3134, 2
        %v3168 = vmul.f32 %v3165, %v3166
        %v3169 = vmul.f32 %v3164, %v3167
        %3170 = vrot.lane.b32.xlu0 %v3131, 1
        %v3171 = vpop.permute.xlu0 %3170
        %3172 = vrot.lane.b32.xlu0 %v3132, 1
        %v3173 = vpop.permute.xlu0 %3172
        %v3174 = vsel %vm1208, %v3171, %v3173
        %v3175 = vsel %vm1208, %v3173, %v3171
        %v3176 = vperm.slane %v3133, 3
        %v3177 = vperm.slane %v3134, 3
        %v3178 = vmul.f32 %v3175, %v3176
        %v3179 = vmul.f32 %v3174, %v3177
        %v3180 = vperm.slane %v3133, 4
        %v3181 = vperm.slane %v3134, 4
        %v3182 = vmul.f32 %v3131, %v3180
        %v3183 = vmul.f32 %v3132, %v3181
        %3184 = vrot.lane.b32.xlu0 %v3131, 127
        %v3185 = vpop.permute.xlu0 %3184
        %3186 = vrot.lane.b32.xlu0 %v3132, 127
        %v3187 = vpop.permute.xlu0 %3186
        %v3188 = vsel %vm1244, %v3185, %v3187
        %v3189 = vsel %vm1244, %v3187, %v3185
        %v3190 = vperm.slane %v3133, 5
        %v3191 = vperm.slane %v3134, 5
        %v3192 = vmul.f32 %v3188, %v3190
        %v3193 = vmul.f32 %v3189, %v3191
        %3194 = vrot.lane.b32.xlu0 %v3131, 117
        %v3195 = vpop.permute.xlu0 %3194
        %3196 = vrot.lane.b32.xlu0 %v3132, 117
        %v3197 = vpop.permute.xlu0 %3196
        %vm3198 = vcmp.lt.s32.totalorder %v1129, 117
        %v3199 = vsel %vm3198, %v3195, %v3197
        %v3200 = vsel %vm3198, %v3197, %v3195
        %v3201 = vperm.slane %v3133, 6
        %v3202 = vperm.slane %v3134, 6
        %v3203 = vmul.f32 %v3199, %v3201
        %v3204 = vmul.f32 %v3200, %v3202
        %3205 = vrot.lane.b32.xlu0 %v3131, 116
        %v3206 = vpop.permute.xlu0 %3205
        %3207 = vrot.lane.b32.xlu0 %v3132, 116
        %v3208 = vpop.permute.xlu0 %3207
        %vm3209 = vcmp.lt.s32.totalorder %v1129, 116
        %v3210 = vsel %vm3209, %v3206, %v3208
        %v3211 = vsel %vm3209, %v3208, %v3206
        %v3212 = vperm.slane %v3133, 7
        %v3213 = vperm.slane %v3134, 7
        %v3214 = vmul.f32 %v3210, %v3212
        %v3215 = vmul.f32 %v3211, %v3213
        %3216 = vrot.lane.b32.xlu0 %v3131, 115
        %v3217 = vpop.permute.xlu0 %3216
        %3218 = vrot.lane.b32.xlu0 %v3132, 115
        %v3219 = vpop.permute.xlu0 %3218
        %vm3220 = vcmp.lt.s32.totalorder %v1129, 115
        %v3221 = vsel %vm3220, %v3217, %v3219
        %v3222 = vsel %vm3220, %v3219, %v3217
        %v3223 = vperm.slane %v3135, 0
        %v3224 = vperm.slane %v3136, 0
        %v3225 = vmul.f32 %v3221, %v3223
        %v3226 = vmul.f32 %v3222, %v3224
        %v3227 = vpack.c.bf16 %v3157, %v3146
        %v3228 = vpack.c.bf16 %v3158, %v3147
        %v3229 = vpack.c.bf16 %v3178, %v3168
        %v3230 = vpack.c.bf16 %v3179, %v3169
        %v3231 = vpack.c.bf16 %v3192, %v3182
        %v3232 = vpack.c.bf16 %v3193, %v3183
        %v3233 = vpack.c.bf16 %v3214, %v3203
        %v3234 = vpack.c.bf16 %v3215, %v3204
        %v3235 = vpack.c.bf16 %v3225, %v3225
        %v3236 = vpack.c.bf16 %v3226, %v3226
        %v3237 = vld [vmem:[%s39] sm:$0xf]
        %v3238 = vld [vmem:[%s39 + $0x4] sm:$0xf]
        %v3241 = vunpack.c.l.b16 %v3237
        %v3242 = vunpack.c.l.b16 %v3238
        %v3243 = vpack.c.b16 %v3242, %v3241
        %v3245 = vsel %vm1364, %v3243, 0
        %v3248 = vsel %vm1368, %v3235, 0
        %v3251 = vsel %vm1368, %v3236, 0
        %3253 = vmatpush.bf16.msra.mxu0 0
        %3254 = vmatpush.bf16.msra.mxu0 0
        %3255 = vmatpush.bf16.msra.mxu0 0
        %3256 = vmatpush.bf16.msra.mxu0 %v3248
        %3257 = vmatpush.bf16.msra.mxu0 %v3233
        %3258 = vmatpush.bf16.msra.mxu0 %v3231
        %3259 = vmatpush.bf16.msra.mxu0 %v3229
        %3260 = vmatpush.bf16.msra.mxu0 %v3227
        %3261 = vmatmul.bf16.gmra.mxu0 %v3245
        %v3262 = vpop.f32.mrf.mxu0
        %v3263 = vadd.f32 0.0, %v3262
        %v3264 = vpop.f32.mrf.mxu0
        %v3265 = vadd.f32 0.0, %v3264
        %3266 = vdwg.mxu0
        %3267 = vmatpush.bf16.msra.mxu0 0
        %3268 = vmatpush.bf16.msra.mxu0 0
        %3269 = vmatpush.bf16.msra.mxu0 0
        %3270 = vmatpush.bf16.msra.mxu0 %v3251
        %3271 = vmatpush.bf16.msra.mxu0 %v3234
        %3272 = vmatpush.bf16.msra.mxu0 %v3232
        %3273 = vmatpush.bf16.msra.mxu0 %v3230
        %3274 = vmatpush.bf16.msra.mxu0 %v3228
        %3275 = vmatmul.bf16.gmra.mxu0 %v3245
        %v3276 = vpop.f32.mrf.mxu0
        %v3277 = vadd.f32 0.0, %v3276
        %v3278 = vpop.f32.mrf.mxu0
        %v3279 = vadd.f32 0.0, %v3278
        %3280 = vdwg.mxu0
        %v3281 = vmax.f32 %v3263, 0.0
        %v3282 = vmax.f32 %v3277, 0.0
        %v3283 = vmax.f32 %v3265, 0.0
        %v3284 = vmax.f32 %v3279, 0.0
        %v3285 = vld [vmem:[%s41] sm:$0xff]
        %v3286 = vld [vmem:[%s41 + $0x8] sm:$0xff]
        %3288 = vset.pattern.permute.xlu0 0
        %3289 = vperm.xlu0 %3288, %v3285
        %v3290 = vpop.permute.xlu0 %3289
        %3293 = vset.pattern.permute.xlu0 0
        %3294 = vperm.xlu0 %3293, %v3286
        %v3295 = vpop.permute.xlu0 %3294
        %v3297 = vmul.f32 %v3281, %v3290
        %v3298 = vmul.f32 %v3282, %v3290
        %v3299 = vmul.f32 %v3283, %v3295
        %v3300 = vmul.f32 %v3284, %v3295
        %v3301 = vld [vmem:[%s43] sm:$0xff]
        %v3302 = vld [vmem:[%s43 + $0x8] sm:$0xff]
        %3304 = vset.pattern.permute.xlu0 0
        %3305 = vperm.xlu0 %3304, %v3301
        %v3306 = vpop.permute.xlu0 %3305
        %3309 = vset.pattern.permute.xlu0 0
        %3310 = vperm.xlu0 %3309, %v3302
        %v3311 = vpop.permute.xlu0 %3310
        %v3313 = vadd.f32 %v3297, %v3306
        %v3314 = vadd.f32 %v3298, %v3306
        %v3315 = vadd.f32 %v3299, %v3311
        %v3316 = vadd.f32 %v3300, %v3311
        %3317 = vrot.lane.b32.xlu0 %v3313, 13
        %v3318 = vpop.permute.xlu0 %3317
        %3319 = vrot.lane.b32.xlu0 %v3315, 13
        %v3320 = vpop.permute.xlu0 %3319
        %3321 = vrot.lane.b32.xlu0 %v3314, 13
        %v3322 = vpop.permute.xlu0 %3321
        %3323 = vrot.lane.b32.xlu0 %v3316, 13
        %v3324 = vpop.permute.xlu0 %3323
        %v3325 = vsel %vm3141, %v3318, %v3322
        %v3326 = vsel %vm3141, %v3320, %v3324
        %v3327 = vsel %vm3141, %v3322, %v3318
        %v3328 = vsel %vm3141, %v3324, %v3320
        %v3329 = vmul.f32 %v3327, %v3144
        %v3330 = vmul.f32 %v3325, %v3145
        %v3331 = vmul.f32 %v3328, %v3144
        %v3332 = vmul.f32 %v3326, %v3145
        %3333 = vrot.lane.b32.xlu0 %v3313, 12
        %v3334 = vpop.permute.xlu0 %3333
        %3335 = vrot.lane.b32.xlu0 %v3315, 12
        %v3336 = vpop.permute.xlu0 %3335
        %3337 = vrot.lane.b32.xlu0 %v3314, 12
        %v3338 = vpop.permute.xlu0 %3337
        %3339 = vrot.lane.b32.xlu0 %v3316, 12
        %v3340 = vpop.permute.xlu0 %3339
        %v3341 = vsel %vm3152, %v3334, %v3338
        %v3342 = vsel %vm3152, %v3336, %v3340
        %v3343 = vsel %vm3152, %v3338, %v3334
        %v3344 = vsel %vm3152, %v3340, %v3336
        %v3345 = vmul.f32 %v3343, %v3155
        %v3346 = vmul.f32 %v3341, %v3156
        %v3347 = vmul.f32 %v3344, %v3155
        %v3348 = vmul.f32 %v3342, %v3156
        %3349 = vrot.lane.b32.xlu0 %v3313, 11
        %v3350 = vpop.permute.xlu0 %3349
        %3351 = vrot.lane.b32.xlu0 %v3315, 11
        %v3352 = vpop.permute.xlu0 %3351
        %3353 = vrot.lane.b32.xlu0 %v3314, 11
        %v3354 = vpop.permute.xlu0 %3353
        %3355 = vrot.lane.b32.xlu0 %v3316, 11
        %v3356 = vpop.permute.xlu0 %3355
        %v3357 = vsel %vm3163, %v3350, %v3354
        %v3358 = vsel %vm3163, %v3352, %v3356
        %v3359 = vsel %vm3163, %v3354, %v3350
        %v3360 = vsel %vm3163, %v3356, %v3352
        %v3361 = vmul.f32 %v3359, %v3166
        %v3362 = vmul.f32 %v3357, %v3167
        %v3363 = vmul.f32 %v3360, %v3166
        %v3364 = vmul.f32 %v3358, %v3167
        %3365 = vrot.lane.b32.xlu0 %v3313, 1
        %v3366 = vpop.permute.xlu0 %3365
        %3367 = vrot.lane.b32.xlu0 %v3315, 1
        %v3368 = vpop.permute.xlu0 %3367
        %3369 = vrot.lane.b32.xlu0 %v3314, 1
        %v3370 = vpop.permute.xlu0 %3369
        %3371 = vrot.lane.b32.xlu0 %v3316, 1
        %v3372 = vpop.permute.xlu0 %3371
        %v3373 = vsel %vm1208, %v3366, %v3370
        %v3374 = vsel %vm1208, %v3368, %v3372
        %v3375 = vsel %vm1208, %v3370, %v3366
        %v3376 = vsel %vm1208, %v3372, %v3368
        %v3377 = vmul.f32 %v3375, %v3176
        %v3378 = vmul.f32 %v3373, %v3177
        %v3379 = vmul.f32 %v3376, %v3176
        %v3380 = vmul.f32 %v3374, %v3177
        %v3381 = vmul.f32 %v3313, %v3180
        %v3382 = vmul.f32 %v3314, %v3181
        %v3383 = vmul.f32 %v3315, %v3180
        %v3384 = vmul.f32 %v3316, %v3181
        %3385 = vrot.lane.b32.xlu0 %v3313, 127
        %v3386 = vpop.permute.xlu0 %3385
        %3387 = vrot.lane.b32.xlu0 %v3315, 127
        %v3388 = vpop.permute.xlu0 %3387
        %3389 = vrot.lane.b32.xlu0 %v3314, 127
        %v3390 = vpop.permute.xlu0 %3389
        %3391 = vrot.lane.b32.xlu0 %v3316, 127
        %v3392 = vpop.permute.xlu0 %3391
        %v3393 = vsel %vm1244, %v3386, %v3390
        %v3394 = vsel %vm1244, %v3388, %v3392
        %v3395 = vsel %vm1244, %v3390, %v3386
        %v3396 = vsel %vm1244, %v3392, %v3388
        %v3397 = vmul.f32 %v3393, %v3190
        %v3398 = vmul.f32 %v3395, %v3191
        %v3399 = vmul.f32 %v3394, %v3190
        %v3400 = vmul.f32 %v3396, %v3191
        %3401 = vrot.lane.b32.xlu0 %v3313, 117
        %v3402 = vpop.permute.xlu0 %3401
        %3403 = vrot.lane.b32.xlu0 %v3315, 117
        %v3404 = vpop.permute.xlu0 %3403
        %3405 = vrot.lane.b32.xlu0 %v3314, 117
        %v3406 = vpop.permute.xlu0 %3405
        %3407 = vrot.lane.b32.xlu0 %v3316, 117
        %v3408 = vpop.permute.xlu0 %3407
        %v3409 = vsel %vm3198, %v3402, %v3406
        %v3410 = vsel %vm3198, %v3404, %v3408
        %v3411 = vsel %vm3198, %v3406, %v3402
        %v3412 = vsel %vm3198, %v3408, %v3404
        %v3413 = vmul.f32 %v3409, %v3201
        %v3414 = vmul.f32 %v3411, %v3202
        %v3415 = vmul.f32 %v3410, %v3201
        %v3416 = vmul.f32 %v3412, %v3202
        %3417 = vrot.lane.b32.xlu0 %v3313, 116
        %v3418 = vpop.permute.xlu0 %3417
        %3419 = vrot.lane.b32.xlu0 %v3315, 116
        %v3420 = vpop.permute.xlu0 %3419
        %3421 = vrot.lane.b32.xlu0 %v3314, 116
        %v3422 = vpop.permute.xlu0 %3421
        %3423 = vrot.lane.b32.xlu0 %v3316, 116
        %v3424 = vpop.permute.xlu0 %3423
        %v3425 = vsel %vm3209, %v3418, %v3422
        %v3426 = vsel %vm3209, %v3420, %v3424
        %v3427 = vsel %vm3209, %v3422, %v3418
        %v3428 = vsel %vm3209, %v3424, %v3420
        %v3429 = vmul.f32 %v3425, %v3212
        %v3430 = vmul.f32 %v3427, %v3213
        %v3431 = vmul.f32 %v3426, %v3212
        %v3432 = vmul.f32 %v3428, %v3213
        %3433 = vrot.lane.b32.xlu0 %v3313, 115
        %v3434 = vpop.permute.xlu0 %3433
        %3435 = vrot.lane.b32.xlu0 %v3315, 115
        %v3436 = vpop.permute.xlu0 %3435
        %3437 = vrot.lane.b32.xlu0 %v3314, 115
        %v3438 = vpop.permute.xlu0 %3437
        %3439 = vrot.lane.b32.xlu0 %v3316, 115
        %v3440 = vpop.permute.xlu0 %3439
        %v3441 = vsel %vm3220, %v3434, %v3438
        %v3442 = vsel %vm3220, %v3436, %v3440
        %v3443 = vsel %vm3220, %v3438, %v3434
        %v3444 = vsel %vm3220, %v3440, %v3436
        %v3445 = vmul.f32 %v3441, %v3223
        %v3446 = vmul.f32 %v3443, %v3224
        %v3447 = vmul.f32 %v3442, %v3223
        %v3448 = vmul.f32 %v3444, %v3224
        %v3449 = vpack.c.bf16 %v3331, %v3329
        %v3450 = vpack.c.bf16 %v3332, %v3330
        %v3451 = vpack.c.bf16 %v3347, %v3345
        %v3452 = vpack.c.bf16 %v3348, %v3346
        %v3453 = vpack.c.bf16 %v3363, %v3361
        %v3454 = vpack.c.bf16 %v3364, %v3362
        %v3455 = vpack.c.bf16 %v3379, %v3377
        %v3456 = vpack.c.bf16 %v3380, %v3378
        %v3457 = vpack.c.bf16 %v3383, %v3381
        %v3458 = vpack.c.bf16 %v3384, %v3382
        %v3459 = vpack.c.bf16 %v3399, %v3397
        %v3460 = vpack.c.bf16 %v3400, %v3398
        %v3461 = vpack.c.bf16 %v3415, %v3413
        %v3462 = vpack.c.bf16 %v3416, %v3414
        %v3463 = vpack.c.bf16 %v3431, %v3429
        %v3464 = vpack.c.bf16 %v3432, %v3430
        %v3465 = vpack.c.bf16 %v3447, %v3445
        %v3466 = vpack.c.bf16 %v3448, %v3446
        %v3467 = vld [vmem:[%s45] sm:$0xff]
        %v3468 = vld [vmem:[%s45 + $0x8] sm:$0xff]
        %v3469 = vld [vmem:[%s45 + $0x10] sm:$0xff]
        %v3470 = vld [vmem:[%s45 + $0x18] sm:$0xff]
        %v3475 = vunpack.c.l.b16 %v3467
        %v3476 = vunpack.c.h.b16 %v3467
        %v3477 = vunpack.c.l.b16 %v3468
        %v3478 = vunpack.c.h.b16 %v3468
        %v3479 = vunpack.c.l.b16 %v3469
        %v3480 = vunpack.c.h.b16 %v3469
        %v3481 = vunpack.c.l.b16 %v3470
        %v3482 = vunpack.c.h.b16 %v3470
        %v3483 = vpack.c.b16 %v3477, %v3475
        %v3484 = vpack.c.b16 %v3478, %v3476
        %v3485 = vpack.c.b16 %v3481, %v3479
        %v3486 = vpack.c.b16 %v3482, %v3480
        %v3490 = vsel %vm2212, %v3484, 0
        %v3493 = vsel %vm2212, %v3486, 0
        %3495 = vmatpush.bf16.msra.mxu0 %v3463
        %3496 = vmatpush.bf16.msra.mxu0 %v3461
        %3497 = vmatpush.bf16.msra.mxu0 %v3459
        %3498 = vmatpush.bf16.msra.mxu0 %v3457
        %3499 = vmatpush.bf16.msra.mxu0 %v3455
        %3500 = vmatpush.bf16.msra.mxu0 %v3453
        %3501 = vmatpush.bf16.msra.mxu0 %v3451
        %3502 = vmatpush.bf16.msra.mxu0 %v3449
        %3503 = vmatmul.bf16.gmra.mxu0 %v3483
        %v3504 = vpop.f32.mrf.mxu0
        %v3505 = vadd.f32 0.0, %v3504
        %v3506 = vpop.f32.mrf.mxu0
        %v3507 = vadd.f32 0.0, %v3506
        %3508 = vmatmul.bf16.gmra.mxu0 %v3485
        %v3509 = vpop.f32.mrf.mxu0
        %v3510 = vadd.f32 0.0, %v3509
        %v3511 = vpop.f32.mrf.mxu0
        %v3512 = vadd.f32 0.0, %v3511
        %3513 = vdwg.mxu0
        %3514 = vmatpush.bf16.msra.mxu0 0
        %3515 = vmatpush.bf16.msra.mxu0 0
        %3516 = vmatpush.bf16.msra.mxu0 0
        %3517 = vmatpush.bf16.msra.mxu0 0
        %3518 = vmatpush.bf16.msra.mxu0 0
        %3519 = vmatpush.bf16.msra.mxu0 0
        %3520 = vmatpush.bf16.msra.mxu0 0
        %3521 = vmatpush.bf16.msra.mxu0 %v3465
        %3522 = vmatmul.bf16.gmra.mxu0 %v3490
        %v3523 = vpop.f32.mrf.mxu0
        %v3524 = vadd.f32 %v3505, %v3523
        %v3525 = vpop.f32.mrf.mxu0
        %v3526 = vadd.f32 %v3507, %v3525
        %3527 = vmatmul.bf16.gmra.mxu0 %v3493
        %v3528 = vpop.f32.mrf.mxu0
        %v3529 = vadd.f32 %v3510, %v3528
        %v3530 = vpop.f32.mrf.mxu0
        %v3531 = vadd.f32 %v3512, %v3530
        %3532 = vdwg.mxu0
        %3533 = vmatpush.bf16.msra.mxu0 %v3464
        %3534 = vmatpush.bf16.msra.mxu0 %v3462
        %3535 = vmatpush.bf16.msra.mxu0 %v3460
        %3536 = vmatpush.bf16.msra.mxu0 %v3458
        %3537 = vmatpush.bf16.msra.mxu0 %v3456
        %3538 = vmatpush.bf16.msra.mxu0 %v3454
        %3539 = vmatpush.bf16.msra.mxu0 %v3452
        %3540 = vmatpush.bf16.msra.mxu0 %v3450
        %3541 = vmatmul.bf16.gmra.mxu0 %v3483
        %v3542 = vpop.f32.mrf.mxu0
        %v3543 = vadd.f32 0.0, %v3542
        %v3544 = vpop.f32.mrf.mxu0
        %v3545 = vadd.f32 0.0, %v3544
        %3546 = vmatmul.bf16.gmra.mxu0 %v3485
        %v3547 = vpop.f32.mrf.mxu0
        %v3548 = vadd.f32 0.0, %v3547
        %v3549 = vpop.f32.mrf.mxu0
        %v3550 = vadd.f32 0.0, %v3549
        %3551 = vdwg.mxu0
        %3552 = vmatpush.bf16.msra.mxu0 0
        %3553 = vmatpush.bf16.msra.mxu0 0
        %3554 = vmatpush.bf16.msra.mxu0 0
        %3555 = vmatpush.bf16.msra.mxu0 0
        %3556 = vmatpush.bf16.msra.mxu0 0
        %3557 = vmatpush.bf16.msra.mxu0 0
        %3558 = vmatpush.bf16.msra.mxu0 0
        %3559 = vmatpush.bf16.msra.mxu0 %v3466
        %3560 = vmatmul.bf16.gmra.mxu0 %v3490
        %v3561 = vpop.f32.mrf.mxu0
        %v3562 = vadd.f32 %v3543, %v3561
        %v3563 = vpop.f32.mrf.mxu0
        %v3564 = vadd.f32 %v3545, %v3563
        %3565 = vmatmul.bf16.gmra.mxu0 %v3493
        %v3566 = vpop.f32.mrf.mxu0
        %v3567 = vadd.f32 %v3548, %v3566
        %v3568 = vpop.f32.mrf.mxu0
        %v3569 = vadd.f32 %v3550, %v3568
        %3570 = vdwg.mxu0
        %v3571 = vmax.f32 %v3524, 0.0
        %v3572 = vmax.f32 %v3562, 0.0
        %v3573 = vmax.f32 %v3526, 0.0
        %v3574 = vmax.f32 %v3564, 0.0
        %v3575 = vmax.f32 %v3529, 0.0
        %v3576 = vmax.f32 %v3567, 0.0
        %v3577 = vmax.f32 %v3531, 0.0
        %v3578 = vmax.f32 %v3569, 0.0
        %v3579 = vld [vmem:[%s47] sm:$0xff]
        %v3580 = vld [vmem:[%s47 + $0x8] sm:$0xff]
        %v3581 = vld [vmem:[%s47 + $0x10] sm:$0xff]
        %v3582 = vld [vmem:[%s47 + $0x18] sm:$0xff]
        %3584 = vset.pattern.permute.xlu0 0
        %3585 = vperm.xlu0 %3584, %v3579
        %v3586 = vpop.permute.xlu0 %3585
        %3589 = vset.pattern.permute.xlu0 0
        %3590 = vperm.xlu0 %3589, %v3580
        %v3591 = vpop.permute.xlu0 %3590
        %3594 = vset.pattern.permute.xlu0 0
        %3595 = vperm.xlu0 %3594, %v3581
        %v3596 = vpop.permute.xlu0 %3595
        %3599 = vset.pattern.permute.xlu0 0
        %3600 = vperm.xlu0 %3599, %v3582
        %v3601 = vpop.permute.xlu0 %3600
        %v3603 = vmul.f32 %v3571, %v3586
        %v3604 = vmul.f32 %v3572, %v3586
        %v3605 = vmul.f32 %v3573, %v3591
        %v3606 = vmul.f32 %v3574, %v3591
        %v3607 = vmul.f32 %v3575, %v3596
        %v3608 = vmul.f32 %v3576, %v3596
        %v3609 = vmul.f32 %v3577, %v3601
        %v3610 = vmul.f32 %v3578, %v3601
        %v3611 = vld [vmem:[%s49] sm:$0xff]
        %v3612 = vld [vmem:[%s49 + $0x8] sm:$0xff]
        %v3613 = vld [vmem:[%s49 + $0x10] sm:$0xff]
        %v3614 = vld [vmem:[%s49 + $0x18] sm:$0xff]
        %3616 = vset.pattern.permute.xlu0 0
        %3617 = vperm.xlu0 %3616, %v3611
        %v3618 = vpop.permute.xlu0 %3617
        %3621 = vset.pattern.permute.xlu0 0
        %3622 = vperm.xlu0 %3621, %v3612
        %v3623 = vpop.permute.xlu0 %3622
        %3626 = vset.pattern.permute.xlu0 0
        %3627 = vperm.xlu0 %3626, %v3613
        %v3628 = vpop.permute.xlu0 %3627
        %3631 = vset.pattern.permute.xlu0 0
        %3632 = vperm.xlu0 %3631, %v3614
        %v3633 = vpop.permute.xlu0 %3632
        %v3635 = vadd.f32 %v3603, %v3618
        %v3636 = vadd.f32 %v3604, %v3618
        %v3637 = vadd.f32 %v3605, %v3623
        %v3638 = vadd.f32 %v3606, %v3623
        %v3639 = vadd.f32 %v3607, %v3628
        %v3640 = vadd.f32 %v3608, %v3628
        %v3641 = vadd.f32 %v3609, %v3633
        %v3642 = vadd.f32 %v3610, %v3633
        %3643 = vrot.lane.b32.xlu0 %v3635, 127
        %v3644 = vpop.permute.xlu0 %3643
        %3645 = vrot.lane.b32.xlu0 %v3637, 127
        %v3646 = vpop.permute.xlu0 %3645
        %3647 = vrot.lane.b32.xlu0 %v3639, 127
        %v3648 = vpop.permute.xlu0 %3647
        %3649 = vrot.lane.b32.xlu0 %v3641, 127
        %v3650 = vpop.permute.xlu0 %3649
        %3651 = vrot.lane.b32.xlu0 %v3636, 127
        %v3652 = vpop.permute.xlu0 %3651
        %3653 = vrot.lane.b32.xlu0 %v3638, 127
        %v3654 = vpop.permute.xlu0 %3653
        %3655 = vrot.lane.b32.xlu0 %v3640, 127
        %v3656 = vpop.permute.xlu0 %3655
        %3657 = vrot.lane.b32.xlu0 %v3642, 127
        %v3658 = vpop.permute.xlu0 %3657
        %v3659 = vsel %vm1244, %v3644, %v3652
        %v3660 = vsel %vm1244, %v3646, %v3654
        %v3661 = vsel %vm1244, %v3648, %v3656
        %v3662 = vsel %vm1244, %v3650, %v3658
        %v3663 = vsel %vm1244, %v3652, %v3644
        %v3664 = vsel %vm1244, %v3654, %v3646
        %v3665 = vsel %vm1244, %v3656, %v3648
        %v3666 = vsel %vm1244, %v3658, %v3650
        %v3667 = vmax.f32 %v3635, %v3659
        %v3668 = vmax.f32 %v3636, %v3663
        %v3669 = vmax.f32 %v3637, %v3660
        %v3670 = vmax.f32 %v3638, %v3664
        %v3671 = vmax.f32 %v3639, %v3661
        %v3672 = vmax.f32 %v3640, %v3665
        %v3673 = vmax.f32 %v3641, %v3662
        %v3674 = vmax.f32 %v3642, %v3666
        %3675 = vrot.lane.b32.xlu0 %v3667, 116
        %v3676 = vpop.permute.xlu0 %3675
        %3677 = vrot.lane.b32.xlu0 %v3669, 116
        %v3678 = vpop.permute.xlu0 %3677
        %3679 = vrot.lane.b32.xlu0 %v3671, 116
        %v3680 = vpop.permute.xlu0 %3679
        %3681 = vrot.lane.b32.xlu0 %v3673, 116
        %v3682 = vpop.permute.xlu0 %3681
        %3683 = vrot.lane.b32.xlu0 %v3668, 116
        %v3684 = vpop.permute.xlu0 %3683
        %3685 = vrot.lane.b32.xlu0 %v3670, 116
        %v3686 = vpop.permute.xlu0 %3685
        %3687 = vrot.lane.b32.xlu0 %v3672, 116
        %v3688 = vpop.permute.xlu0 %3687
        %3689 = vrot.lane.b32.xlu0 %v3674, 116
        %v3690 = vpop.permute.xlu0 %3689
        %v3691 = vsel %vm3209, %v3676, %v3684
        %v3692 = vsel %vm3209, %v3678, %v3686
        %v3693 = vsel %vm3209, %v3680, %v3688
        %v3694 = vsel %vm3209, %v3682, %v3690
        %v3695 = vsel %vm3209, %v3684, %v3676
        %v3696 = vsel %vm3209, %v3686, %v3678
        %v3697 = vsel %vm3209, %v3688, %v3680
        %v3698 = vsel %vm3209, %v3690, %v3682
        %v3699 = vmax.f32 %v3667, %v3691
        %v3700 = vmax.f32 %v3668, %v3695
        %v3701 = vmax.f32 %v3669, %v3692
        %v3702 = vmax.f32 %v3670, %v3696
        %v3703 = vmax.f32 %v3671, %v3693
        %v3704 = vmax.f32 %v3672, %v3697
        %v3705 = vmax.f32 %v3673, %v3694
        %v3706 = vmax.f32 %v3674, %v3698
        %v3707 = vpack.c.bf16 %v3701, %v3699
        %v3708 = vpack.c.bf16 %v3702, %v3700
        %v3709 = vpack.c.bf16 %v3705, %v3703
        %v3710 = vpack.c.bf16 %v3706, %v3704
        %v3711 = vld [vmem:[%s51] sm:$0xf]
        %v3713 = vsel %vm2688, %v3711, 0
        %3715 = vmatpush.bf16.msra.mxu0 0
        %3716 = vmatpush.bf16.msra.mxu0 0
        %3717 = vmatpush.bf16.msra.mxu0 0
        %3718 = vmatpush.bf16.msra.mxu0 0
        %3719 = vmatpush.bf16.msra.mxu0 0
        %3720 = vmatpush.bf16.msra.mxu0 0
        %3721 = vmatpush.bf16.msra.mxu0 %v3709
        %3722 = vmatpush.bf16.msra.mxu0 %v3707
        %3723 = vmatmul.bf16.gmra.mxu0 %v3713
        %v3724 = vpop.f32.mrf.mxu0
        %v3725 = vadd.f32 0.0, %v3724
        %v3726 = vpop.f32.mrf.mxu0
        %3727 = vdwg.mxu0
        %3728 = vmatpush.bf16.msra.mxu0 0
        %3729 = vmatpush.bf16.msra.mxu0 0
        %3730 = vmatpush.bf16.msra.mxu0 0
        %3731 = vmatpush.bf16.msra.mxu0 0
        %3732 = vmatpush.bf16.msra.mxu0 0
        %3733 = vmatpush.bf16.msra.mxu0 0
        %3734 = vmatpush.bf16.msra.mxu0 %v3710
        %3735 = vmatpush.bf16.msra.mxu0 %v3708
        %3736 = vmatmul.bf16.gmra.mxu0 %v3713
        %v3737 = vpop.f32.mrf.mxu0
        %v3738 = vadd.f32 0.0, %v3737
        %v3739 = vpop.f32.mrf.mxu0
        %3740 = vdwg.mxu0
        %v3741 = vld [vmem:[#allocation5] sm:$0xff]
        %v3742 = vld [vmem:[#allocation5 + $0x8] sm:$0xff]
        %v3743 = vld [vmem:[#allocation5 + $0x10] sm:$0xff]
        %v3744 = vld [vmem:[#allocation5 + $0x18] sm:$0xff]
        %v3745 = vld [vmem:[#allocation5 + $0x20] sm:$0xff]
        %v3746 = vld [vmem:[#allocation5 + $0x28] sm:$0xff]
        %v3747 = vld [vmem:[#allocation5 + $0x30] sm:$0xff]
        %v3748 = vld [vmem:[#allocation5 + $0x38] sm:$0xff]
        %v3749 = vld [vmem:[#allocation5 + $0x40] sm:$0xff]
        %v3750 = vld [vmem:[#allocation5 + $0x48] sm:$0xff]
        %v3751 = vld [vmem:[#allocation5 + $0x50] sm:$0xff]
        %v3752 = vld [vmem:[#allocation5 + $0x58] sm:$0xff]
        %v3753 = vld [vmem:[#allocation5 + $0x60] sm:$0xff]
        %v3754 = vld [vmem:[#allocation5 + $0x68] sm:$0xff]
        %v3755 = vld [vmem:[#allocation5 + $0x70] sm:$0xff]
        %v3756 = vld [vmem:[#allocation5 + $0x78] sm:$0xff]
        %v3757 = vld [vmem:[#allocation5 + $0x80] sm:$0xff]
        %v3758 = vld [vmem:[#allocation5 + $0x88] sm:$0xff]
        %v3759 = vld [vmem:[#allocation5 + $0x90] sm:$0xff]
        %v3760 = vld [vmem:[#allocation5 + $0x98] sm:$0xff]
        %v3761 = vld [vmem:[#allocation5 + $0xa0] sm:$0xff]
        %v3762 = vld [vmem:[#allocation5 + $0xa8] sm:$0xff]
        %v3763 = vld [vmem:[#allocation5 + $0xb0] sm:$0xff]
        %v3764 = vld [vmem:[#allocation5 + $0xb8] sm:$0xff]
        %v3765 = vld [vmem:[#allocation5 + $0xc0] sm:$0xff]
        %v3766 = vld [vmem:[#allocation5 + $0xc8] sm:$0xff]
        %v3767 = vld [vmem:[#allocation5 + $0xd0] sm:$0xff]
        %v3768 = vld [vmem:[#allocation5 + $0xd8] sm:$0xff]
        %v3769 = vld [vmem:[#allocation5 + $0xe0] sm:$0xff]
        %v3770 = vld [vmem:[#allocation5 + $0xe8] sm:$0xff]
        %v3771 = vld [vmem:[#allocation5 + $0xf0] sm:$0xff]
        %v3772 = vld [vmem:[#allocation5 + $0xf8] sm:$0xff]
        %3773 = vmatpush.msra.mxu0 %v3756
        %3774 = vmatpush.msra.mxu0 %v3755
        %3775 = vmatpush.msra.mxu0 %v3754
        %3776 = vmatpush.msra.mxu0 %v3753
        %3777 = vmatpush.msra.mxu0 %v3752
        %3778 = vmatpush.msra.mxu0 %v3751
        %3779 = vmatpush.msra.mxu0 %v3750
        %3780 = vmatpush.msra.mxu0 %v3749
        %3781 = vmatpush.msra.mxu0 %v3748
        %3782 = vmatpush.msra.mxu0 %v3747
        %3783 = vmatpush.msra.mxu0 %v3746
        %3784 = vmatpush.msra.mxu0 %v3745
        %3785 = vmatpush.msra.mxu0 %v3744
        %3786 = vmatpush.msra.mxu0 %v3743
        %3787 = vmatpush.msra.mxu0 %v3742
        %3788 = vmatpush.msra.mxu0 %v3741
        %3789 = vmatmul.f32.gmra.mxu0 %v3725
        %v3790 = vpop.f32.mrf.mxu0
        %v3791 = vadd.f32 0.0, %v3790
        %3792 = vdwg.mxu0
        %3793 = vmatpush.msra.mxu0 %v3772
        %3794 = vmatpush.msra.mxu0 %v3771
        %3795 = vmatpush.msra.mxu0 %v3770
        %3796 = vmatpush.msra.mxu0 %v3769
        %3797 = vmatpush.msra.mxu0 %v3768
        %3798 = vmatpush.msra.mxu0 %v3767
        %3799 = vmatpush.msra.mxu0 %v3766
        %3800 = vmatpush.msra.mxu0 %v3765
        %3801 = vmatpush.msra.mxu0 %v3764
        %3802 = vmatpush.msra.mxu0 %v3763
        %3803 = vmatpush.msra.mxu0 %v3762
        %3804 = vmatpush.msra.mxu0 %v3761
        %3805 = vmatpush.msra.mxu0 %v3760
        %3806 = vmatpush.msra.mxu0 %v3759
        %3807 = vmatpush.msra.mxu0 %v3758
        %3808 = vmatpush.msra.mxu0 %v3757
        %3809 = vmatmul.f32.gmra.mxu0 %v3738
        %v3810 = vpop.f32.mrf.mxu0
        %v3811 = vadd.f32 %v3791, %v3810
        %3812 = vdwg.mxu0
        %v3813 = vld [vmem:[%s53] sm:$0xff]
        %3815 = vset.pattern.permute.xlu0 0
        %3816 = vperm.xlu0 %3815, %v3813
        %v3817 = vpop.permute.xlu0 %3816
        %v3819 = vmul.f32 %v3811, %v3817
        %v3820 = vld [vmem:[%s55] sm:$0xff]
        %3822 = vset.pattern.permute.xlu0 0
        %3823 = vperm.xlu0 %3822, %v3820
        %v3824 = vpop.permute.xlu0 %3823
        %v3826 = vadd.f32 %v3819, %v3824
        %v3827 = vld [vmem:[%s7] sm:$0xff]
        %v3828 = vld [vmem:[%s7 + $0x8] sm:$0x1]
        %3829 = vrot.lane.b32.xlu0 %v3826, 7
        %v3830 = vpop.permute.xlu0 %3829
        %v3831 = vperm.slane %v3827, 0
        %v3832 = vmul.f32 %v3830, %v3831
        %3833 = vrot.lane.b32.xlu0 %v3826, 6
        %v3834 = vpop.permute.xlu0 %3833
        %v3835 = vperm.slane %v3827, 1
        %v3836 = vmul.f32 %v3834, %v3835
        %3837 = vrot.lane.b32.xlu0 %v3826, 5
        %v3838 = vpop.permute.xlu0 %3837
        %v3839 = vperm.slane %v3827, 2
        %v3840 = vmul.f32 %v3838, %v3839
        %3841 = vrot.lane.b32.xlu0 %v3826, 1
        %v3842 = vpop.permute.xlu0 %3841
        %v3843 = vperm.slane %v3827, 3
        %v3844 = vmul.f32 %v3842, %v3843
        %v3845 = vperm.slane %v3827, 4
        %v3846 = vmul.f32 %v3826, %v3845
        %3847 = vrot.lane.b32.xlu0 %v3826, 127
        %v3848 = vpop.permute.xlu0 %3847
        %v3849 = vperm.slane %v3827, 5
        %v3850 = vmul.f32 %v3848, %v3849
        %3851 = vrot.lane.b32.xlu0 %v3826, 123
        %v3852 = vpop.permute.xlu0 %3851
        %v3853 = vperm.slane %v3827, 6
        %v3854 = vmul.f32 %v3852, %v3853
        %3855 = vrot.lane.b32.xlu0 %v3826, 122
        %v3856 = vpop.permute.xlu0 %3855
        %v3857 = vperm.slane %v3827, 7
        %v3858 = vmul.f32 %v3856, %v3857
        %3859 = vrot.lane.b32.xlu0 %v3826, 121
        %v3860 = vpop.permute.xlu0 %3859
        %v3861 = vperm.slane %v3828, 0
        %v3862 = vmul.f32 %v3860, %v3861
        %v3863 = vpack.c.bf16 %v3836, %v3832
        %v3864 = vpack.c.bf16 %v3844, %v3840
        %v3865 = vpack.c.bf16 %v3850, %v3846
        %v3866 = vpack.c.bf16 %v3858, %v3854
        %v3867 = vpack.c.bf16 %v3862, %v3862
        %v3868 = vld [vmem:[%s57] sm:$0xf]
        %v3869 = vld [vmem:[%s57 + $0x4] sm:$0xf]
        %v3872 = vunpack.c.l.b16 %v3868
        %v3873 = vunpack.c.l.b16 %v3869
        %v3874 = vpack.c.b16 %v3873, %v3872
        %v3876 = vsel %vm1364, %v3874, 0
        %v3879 = vsel %vm1368, %v3867, 0
        %3881 = vmatpush.bf16.msra.mxu0 0
        %3882 = vmatpush.bf16.msra.mxu0 0
        %3883 = vmatpush.bf16.msra.mxu0 0
        %3884 = vmatpush.bf16.msra.mxu0 %v3879
        %3885 = vmatpush.bf16.msra.mxu0 %v3866
        %3886 = vmatpush.bf16.msra.mxu0 %v3865
        %3887 = vmatpush.bf16.msra.mxu0 %v3864
        %3888 = vmatpush.bf16.msra.mxu0 %v3863
        %3889 = vmatmul.bf16.gmra.mxu0 %v3876
        %v3890 = vpop.f32.mrf.mxu0
        %v3891 = vadd.f32 0.0, %v3890
        %v3892 = vpop.f32.mrf.mxu0
        %v3893 = vadd.f32 0.0, %v3892
        %3894 = vdwg.mxu0
        %v3895 = vmax.f32 %v3891, 0.0
        %v3896 = vmax.f32 %v3893, 0.0
        %v3897 = vld [vmem:[%s59] sm:$0xff]
        %v3898 = vld [vmem:[%s59 + $0x8] sm:$0xff]
        %3900 = vset.pattern.permute.xlu0 0
        %3901 = vperm.xlu0 %3900, %v3897
        %v3902 = vpop.permute.xlu0 %3901
        %3905 = vset.pattern.permute.xlu0 0
        %3906 = vperm.xlu0 %3905, %v3898
        %v3907 = vpop.permute.xlu0 %3906
        %v3909 = vmul.f32 %v3895, %v3902
        %v3910 = vmul.f32 %v3896, %v3907
        %v3911 = vld [vmem:[%s61] sm:$0xff]
        %v3912 = vld [vmem:[%s61 + $0x8] sm:$0xff]
        %3914 = vset.pattern.permute.xlu0 0
        %3915 = vperm.xlu0 %3914, %v3911
        %v3916 = vpop.permute.xlu0 %3915
        %3919 = vset.pattern.permute.xlu0 0
        %3920 = vperm.xlu0 %3919, %v3912
        %v3921 = vpop.permute.xlu0 %3920
        %v3923 = vadd.f32 %v3909, %v3916
        %v3924 = vadd.f32 %v3910, %v3921
        %3925 = vrot.lane.b32.xlu0 %v3923, 7
        %v3926 = vpop.permute.xlu0 %3925
        %3927 = vrot.lane.b32.xlu0 %v3924, 7
        %v3928 = vpop.permute.xlu0 %3927
        %v3929 = vmul.f32 %v3926, %v3831
        %v3930 = vmul.f32 %v3928, %v3831
        %3931 = vrot.lane.b32.xlu0 %v3923, 6
        %v3932 = vpop.permute.xlu0 %3931
        %3933 = vrot.lane.b32.xlu0 %v3924, 6
        %v3934 = vpop.permute.xlu0 %3933
        %v3935 = vmul.f32 %v3932, %v3835
        %v3936 = vmul.f32 %v3934, %v3835
        %3937 = vrot.lane.b32.xlu0 %v3923, 5
        %v3938 = vpop.permute.xlu0 %3937
        %3939 = vrot.lane.b32.xlu0 %v3924, 5
        %v3940 = vpop.permute.xlu0 %3939
        %v3941 = vmul.f32 %v3938, %v3839
        %v3942 = vmul.f32 %v3940, %v3839
        %3943 = vrot.lane.b32.xlu0 %v3923, 1
        %v3944 = vpop.permute.xlu0 %3943
        %3945 = vrot.lane.b32.xlu0 %v3924, 1
        %v3946 = vpop.permute.xlu0 %3945
        %v3947 = vmul.f32 %v3944, %v3843
        %v3948 = vmul.f32 %v3946, %v3843
        %v3949 = vmul.f32 %v3923, %v3845
        %v3950 = vmul.f32 %v3924, %v3845
        %3951 = vrot.lane.b32.xlu0 %v3923, 127
        %v3952 = vpop.permute.xlu0 %3951
        %3953 = vrot.lane.b32.xlu0 %v3924, 127
        %v3954 = vpop.permute.xlu0 %3953
        %v3955 = vmul.f32 %v3952, %v3849
        %v3956 = vmul.f32 %v3954, %v3849
        %3957 = vrot.lane.b32.xlu0 %v3923, 123
        %v3958 = vpop.permute.xlu0 %3957
        %3959 = vrot.lane.b32.xlu0 %v3924, 123
        %v3960 = vpop.permute.xlu0 %3959
        %v3961 = vmul.f32 %v3958, %v3853
        %v3962 = vmul.f32 %v3960, %v3853
        %3963 = vrot.lane.b32.xlu0 %v3923, 122
        %v3964 = vpop.permute.xlu0 %3963
        %3965 = vrot.lane.b32.xlu0 %v3924, 122
        %v3966 = vpop.permute.xlu0 %3965
        %v3967 = vmul.f32 %v3964, %v3857
        %v3968 = vmul.f32 %v3966, %v3857
        %3969 = vrot.lane.b32.xlu0 %v3923, 121
        %v3970 = vpop.permute.xlu0 %3969
        %3971 = vrot.lane.b32.xlu0 %v3924, 121
        %v3972 = vpop.permute.xlu0 %3971
        %v3973 = vmul.f32 %v3970, %v3861
        %v3974 = vmul.f32 %v3972, %v3861
        %v3975 = vpack.c.bf16 %v3930, %v3929
        %v3976 = vpack.c.bf16 %v3936, %v3935
        %v3977 = vpack.c.bf16 %v3942, %v3941
        %v3978 = vpack.c.bf16 %v3948, %v3947
        %v3979 = vpack.c.bf16 %v3950, %v3949
        %v3980 = vpack.c.bf16 %v3956, %v3955
        %v3981 = vpack.c.bf16 %v3962, %v3961
        %v3982 = vpack.c.bf16 %v3968, %v3967
        %v3983 = vpack.c.bf16 %v3974, %v3973
        %v3984 = vld [vmem:[%s63] sm:$0xff]
        %v3985 = vld [vmem:[%s63 + $0x8] sm:$0xff]
        %v3986 = vld [vmem:[%s63 + $0x10] sm:$0xff]
        %v3987 = vld [vmem:[%s63 + $0x18] sm:$0xff]
        %v3992 = vunpack.c.l.b16 %v3984
        %v3993 = vunpack.c.h.b16 %v3984
        %v3994 = vunpack.c.l.b16 %v3985
        %v3995 = vunpack.c.h.b16 %v3985
        %v3996 = vunpack.c.l.b16 %v3986
        %v3997 = vunpack.c.h.b16 %v3986
        %v3998 = vunpack.c.l.b16 %v3987
        %v3999 = vunpack.c.h.b16 %v3987
        %v4000 = vpack.c.b16 %v3994, %v3992
        %v4001 = vpack.c.b16 %v3995, %v3993
        %v4002 = vpack.c.b16 %v3998, %v3996
        %v4003 = vpack.c.b16 %v3999, %v3997
        %v4007 = vsel %vm2212, %v4001, 0
        %v4010 = vsel %vm2212, %v4003, 0
        %4012 = vmatpush.bf16.msra.mxu0 %v3982
        %4013 = vmatpush.bf16.msra.mxu0 %v3981
        %4014 = vmatpush.bf16.msra.mxu0 %v3980
        %4015 = vmatpush.bf16.msra.mxu0 %v3979
        %4016 = vmatpush.bf16.msra.mxu0 %v3978
        %4017 = vmatpush.bf16.msra.mxu0 %v3977
        %4018 = vmatpush.bf16.msra.mxu0 %v3976
        %4019 = vmatpush.bf16.msra.mxu0 %v3975
        %4020 = vmatmul.bf16.gmra.mxu0 %v4000
        %v4021 = vpop.f32.mrf.mxu0
        %v4022 = vadd.f32 0.0, %v4021
        %v4023 = vpop.f32.mrf.mxu0
        %v4024 = vadd.f32 0.0, %v4023
        %4025 = vmatmul.bf16.gmra.mxu0 %v4002
        %v4026 = vpop.f32.mrf.mxu0
        %v4027 = vadd.f32 0.0, %v4026
        %v4028 = vpop.f32.mrf.mxu0
        %v4029 = vadd.f32 0.0, %v4028
        %4030 = vdwg.mxu0
        %4031 = vmatpush.bf16.msra.mxu0 0
        %4032 = vmatpush.bf16.msra.mxu0 0
        %4033 = vmatpush.bf16.msra.mxu0 0
        %4034 = vmatpush.bf16.msra.mxu0 0
        %4035 = vmatpush.bf16.msra.mxu0 0
        %4036 = vmatpush.bf16.msra.mxu0 0
        %4037 = vmatpush.bf16.msra.mxu0 0
        %4038 = vmatpush.bf16.msra.mxu0 %v3983
        %4039 = vmatmul.bf16.gmra.mxu0 %v4007
        %v4040 = vpop.f32.mrf.mxu0
        %v4041 = vadd.f32 %v4022, %v4040
        %v4042 = vpop.f32.mrf.mxu0
        %v4043 = vadd.f32 %v4024, %v4042
        %4044 = vmatmul.bf16.gmra.mxu0 %v4010
        %v4045 = vpop.f32.mrf.mxu0
        %v4046 = vadd.f32 %v4027, %v4045
        %v4047 = vpop.f32.mrf.mxu0
        %v4048 = vadd.f32 %v4029, %v4047
        %4049 = vdwg.mxu0
        %v4050 = vmax.f32 %v4041, 0.0
        %v4051 = vmax.f32 %v4043, 0.0
        %v4052 = vmax.f32 %v4046, 0.0
        %v4053 = vmax.f32 %v4048, 0.0
        %v4054 = vld [vmem:[%s65] sm:$0xff]
        %v4055 = vld [vmem:[%s65 + $0x8] sm:$0xff]
        %v4056 = vld [vmem:[%s65 + $0x10] sm:$0xff]
        %v4057 = vld [vmem:[%s65 + $0x18] sm:$0xff]
        %4059 = vset.pattern.permute.xlu0 0
        %4060 = vperm.xlu0 %4059, %v4054
        %v4061 = vpop.permute.xlu0 %4060
        %4064 = vset.pattern.permute.xlu0 0
        %4065 = vperm.xlu0 %4064, %v4055
        %v4066 = vpop.permute.xlu0 %4065
        %4069 = vset.pattern.permute.xlu0 0
        %4070 = vperm.xlu0 %4069, %v4056
        %v4071 = vpop.permute.xlu0 %4070
        %4074 = vset.pattern.permute.xlu0 0
        %4075 = vperm.xlu0 %4074, %v4057
        %v4076 = vpop.permute.xlu0 %4075
        %v4078 = vmul.f32 %v4050, %v4061
        %v4079 = vmul.f32 %v4051, %v4066
        %v4080 = vmul.f32 %v4052, %v4071
        %v4081 = vmul.f32 %v4053, %v4076
        %v4082 = vld [vmem:[%s67] sm:$0xff]
        %v4083 = vld [vmem:[%s67 + $0x8] sm:$0xff]
        %v4084 = vld [vmem:[%s67 + $0x10] sm:$0xff]
        %v4085 = vld [vmem:[%s67 + $0x18] sm:$0xff]
        %4087 = vset.pattern.permute.xlu0 0
        %4088 = vperm.xlu0 %4087, %v4082
        %v4089 = vpop.permute.xlu0 %4088
        %4092 = vset.pattern.permute.xlu0 0
        %4093 = vperm.xlu0 %4092, %v4083
        %v4094 = vpop.permute.xlu0 %4093
        %4097 = vset.pattern.permute.xlu0 0
        %4098 = vperm.xlu0 %4097, %v4084
        %v4099 = vpop.permute.xlu0 %4098
        %4102 = vset.pattern.permute.xlu0 0
        %4103 = vperm.xlu0 %4102, %v4085
        %v4104 = vpop.permute.xlu0 %4103
        %v4106 = vadd.f32 %v4078, %v4089
        %v4107 = vadd.f32 %v4079, %v4094
        %v4108 = vadd.f32 %v4080, %v4099
        %v4109 = vadd.f32 %v4081, %v4104
        %4110 = vrot.lane.b32.xlu0 %v4106, 127
        %v4111 = vpop.permute.xlu0 %4110
        %4112 = vrot.lane.b32.xlu0 %v4107, 127
        %v4113 = vpop.permute.xlu0 %4112
        %4114 = vrot.lane.b32.xlu0 %v4108, 127
        %v4115 = vpop.permute.xlu0 %4114
        %4116 = vrot.lane.b32.xlu0 %v4109, 127
        %v4117 = vpop.permute.xlu0 %4116
        %v4118 = vmax.f32 %v4106, %v4111
        %v4119 = vmax.f32 %v4107, %v4113
        %v4120 = vmax.f32 %v4108, %v4115
        %v4121 = vmax.f32 %v4109, %v4117
        %4122 = vrot.lane.b32.xlu0 %v4118, 122
        %v4123 = vpop.permute.xlu0 %4122
        %4124 = vrot.lane.b32.xlu0 %v4119, 122
        %v4125 = vpop.permute.xlu0 %4124
        %4126 = vrot.lane.b32.xlu0 %v4120, 122
        %v4127 = vpop.permute.xlu0 %4126
        %4128 = vrot.lane.b32.xlu0 %v4121, 122
        %v4129 = vpop.permute.xlu0 %4128
        %v4130 = vmax.f32 %v4118, %v4123
        %v4131 = vmax.f32 %v4119, %v4125
        %v4132 = vmax.f32 %v4120, %v4127
        %v4133 = vmax.f32 %v4121, %v4129
        %v4134 = vld [vmem:[%s13] sm:$0x1]
        %4135 = vmatpush.xpose.msra.mxu0 0.0
        %4136 = vmatpush.xpose.msra.mxu0 0.0
        %4137 = vmatpush.xpose.msra.mxu0 0.0
        %4138 = vmatpush.xpose.msra.mxu0 0.0
        %4139 = vmatpush.xpose.msra.mxu0 0.0
        %4140 = vmatpush.xpose.msra.mxu0 0.0
        %4141 = vmatpush.xpose.msra.mxu0 0.0
        %4142 = vmatpush.xpose.msra.mxu0 0.0
        %4143 = vmatpush.xpose.msra.mxu0 0.0
        %4144 = vmatpush.xpose.msra.mxu0 0.0
        %4145 = vmatpush.xpose.msra.mxu0 0.0
        %4146 = vmatpush.xpose.msra.mxu0 0.0
        %4147 = vmatpush.xpose.msra.mxu0 %v4133
        %4148 = vmatpush.xpose.msra.mxu0 %v4132
        %4149 = vmatpush.xpose.msra.mxu0 %v4131
        %4150 = vmatpush.xpose.msra.mxu0 %v4130
        %4151 = vmatmul.f32.gmra.mxu0 %v4134
        %v4152 = vpop.f32.mrf.mxu0
        %v4153 = vadd.f32 0.0, %v4152
        %4154 = vdwg.mxu0
        %v4155 = vld [vmem:[%s69] sm:$0xff]
        %v4156 = vld [vmem:[%s69 + $0x8] sm:$0xff]
        %v4157 = vld [vmem:[%s69 + $0x10] sm:$0xff]
        %v4158 = vld [vmem:[%s69 + $0x18] sm:$0xff]
        %v4160 = vsel %vm2688, %v4153, 0
        %4162 = vmatpush.msra.mxu0 0.0
        %4163 = vmatpush.msra.mxu0 0.0
        %4164 = vmatpush.msra.mxu0 0.0
        %4165 = vmatpush.msra.mxu0 0.0
        %4166 = vmatpush.msra.mxu0 0.0
        %4167 = vmatpush.msra.mxu0 0.0
        %4168 = vmatpush.msra.mxu0 0.0
        %4169 = vmatpush.msra.mxu0 0.0
        %4170 = vmatpush.msra.mxu0 0.0
        %4171 = vmatpush.msra.mxu0 0.0
        %4172 = vmatpush.msra.mxu0 0.0
        %4173 = vmatpush.msra.mxu0 0.0
        %4174 = vmatpush.msra.mxu0 %v4158
        %4175 = vmatpush.msra.mxu0 %v4157
        %4176 = vmatpush.msra.mxu0 %v4156
        %4177 = vmatpush.msra.mxu0 %v4155
        %4178 = vmatmul.f32.gmra.mxu0 %v4160
        %v4179 = vpop.f32.mrf.mxu0
        %v4180 = vadd.f32 0.0, %v4179
        %4181 = vdwg.mxu0
        %vm4182 = vcmask 73728
        %v4183 = vsel %vm4182, %v4180, -inf
        %4184 = vmax.xlane.f32.xlu0 %v4183
        %v4185 = vpop.xlane.xlu0 %4184
        %v4186 = vsub.f32 %v4180, %v4185
        %v4187 = vmul.f32 %v4186, 1.442695
        %v4188 = vpow.pop %v4187
        %v4189 = vsel %vm4182, %v4188, 0.0
        %4190 = vadd.xlane.f32.xlu0 %v4189
        %v4191 = vpop.xlane.xlu0 %4190
        %v4192 = vlog2.pop %v4191
        %v4193 = vmul.f32 %v4192, 0.6931472
        %v4194 = vsub.f32 %v4186, %v4193
        %4195 = vst.msk [vmem:[%s1096] sm:$0x1] %vm4182, %v4194
        %s4196 = sand.u32 %s835, 1
        %s4197 = scalar_lea.sflag [#allocation4], %s4196
        %s4198 = sand.u32 %s835, 1
        %s4199 = scalar_lea.vmem [#allocation7], %s4198
        // Predicated region
        $region169: #{nets6_forward.1} parent=159 // pred_check
          %p4200 = pneg %p845
        $region170: #{nets6_forward.1} parent=159 // pred_check_branch
          %4202 = sbr.rel (%p4200) target = $region172
        $region171: #{nets6_forward.1} parent=159 // pred_region
          %4204 = vsyncadd %s4197, 0
          %s4205 = scalar_lea.hbm %s71, %s87
          %s4207 = sshll.u32 %s4199, 4
          %s4208 = int_to_ptr.vmem [resolvable:$true] %s4207
          %s4209 = sshll.u32 %s4205, 4
          %s4210 = int_to_ptr.hbm [resolvable:$true] %s4209
          %4212 = dma.vmem_to_hbm [thread:$0]  %s4208, 16, %s4210, %s4197
        $region172: #{nets6_forward.1} parent=159 // pred_fallthru
          _
      $region160: #{nets6_forward.1} parent=5 // pred_fallthru
        _
      %p4213 = scmp.le.s32.totalorder 2, %s82
      // Predicated region
      $region173: #{nets6_forward.1} parent=5 // pred_check
        %p4214 = pneg %p4213
      $region174: #{nets6_forward.1} parent=5 // pred_check_branch
        %4216 = sbr.rel (%p4214) target = $region176
      $region175: #{nets6_forward.1} parent=5 // pred_region
        %s4217 = ssub.s32 %s82, 2
        // Predicated region
        $region177: #{nets6_forward.1} parent=175 // pred_check
          %p4218 = pneg %p851
        $region178: #{nets6_forward.1} parent=175 // pred_check_branch
          %4220 = sbr.rel (%p4218) target = $region180
        $region179: #{nets6_forward.1} parent=175 // pred_region
          %s4221 = sand.u32 %s836, 1
          %s4222 = scalar_lea.sflag [#allocation4], %s4221
          %s4223 = sand.u32 %s836, 1
          %s4224 = scalar_lea.vmem [#allocation7], %s4223
          %4226 = dma.done %s4222, 16
        $region180: #{nets6_forward.1} parent=175 // pred_fallthru
          _
      $region176: #{nets6_forward.1} parent=5 // pred_fallthru
        _
    $region6: #{nets6_forward.1} parent=1 // loop_footer
      %s86 = sadd.s32 1, %s82
    $region7: #{nets6_forward.1} parent=1 // loop_footer_branch
      %81 = sbr.rel target = $region3
    $region8: #{nets6_forward.1} parent=1 // loop_exit
      _
    %4227 = vsyncpa [#allocation3], 1
    %s4228 = scalar_lea.sflag [#allocation3], 1
    %4229 = vsyncpa %s4228, 1
    %4230 = vsyncpa [#allocation6], 1
    %4231 = vsyncpa [#allocation4], 1
    %s4232 = scalar_lea.sflag [#allocation4], 1
    %4233 = vsyncpa %s4232, 1

</llo_original>
